<compile_context>
chip_gen: v7x
topology: tpu7x:2x2x1
jax: 0.10.0
libtpu: 0.0.40
codegen_flags: <defaults>
</compile_context>

<pallas_src>
import jax
import jax.numpy as jnp
from jax import lax
from jax.experimental import pallas as pl
from jax.experimental.pallas import tpu as pltpu

EPS = 1e-5      # PyTorch BatchNorm1d default eps
LEAK = 0.3      # LeakyReLU negative_slope

_VMEM = pl.BlockSpec(memory_space=pltpu.MemorySpace.VMEM)


# -----------------------------------------------------------------------------
# Single fused kernel: whole CatEncoder forward
# -----------------------------------------------------------------------------
def _cat_encoder_kernel(
    xp_ref, xt_ref,                                   # padded-flat input / time-major-flat input
    sdn_ref, sup_ref, vm_ref, mm_ref,                 # shift-down / shift-up mats, valid mask, mean mat
    wc0_ref, cb0_ref, g0_ref, be0_ref,                # conv layer 0 (packed) + BN affine
    wc1_ref, cb1_ref, g1_ref, be1_ref,                # conv layer 1
    wc2_ref, cb2_ref, g2_ref, be2_ref,                # conv layer 2
    wih0_ref, bl0_ref, whh0_ref,                      # BiLSTM layer 0 (gate-major packed)
    wih1_ref, bl1_ref, whh1_ref,                      # BiLSTM layer 1
    wa_ref, wb_ref, gh_ref, bh_ref,                   # head Linear split + BN affine
    out_ref,                                          # (N, dim_out)
    out0_scr,                                         # VMEM scratch: BiLSTM layer-0 sequence
):
    Np = mm_ref.shape[0]                   # batch
    L = out0_scr.shape[0] // Np            # true sequence length
    H = whh0_ref.shape[0] // 2             # LSTM hidden size per direction
    inv_nl = 1.0 / float(Np * L)

    vm = vm_ref[...]                       # (R,1) 1.0 on data rows, 0.0 on pad rows
    sdn = sdn_ref[...]                     # (R,R) row r <- row r-1
    sup = sup_ref[...]                     # (R,R) row r <- row r+1

    def lrelu(v):
        return jnp.where(v > 0.0, v, LEAK * v)

    # ---------------------------------------------------------------- CNN branch
    # Per-sample row layout (block of Lp rows): row 0 zero, rows 1..L data, rest zero.
    # One aligned matmul produces all three conv taps; taps at pad rows are exactly zero because
    # the source pad rows are zero, so the +/-1 row shifts implement Conv1d(padding=1) exactly.
    # Pad rows pick up bias/BN-shift garbage, which the final *vm mask re-zeroes so the padded
    # layout is preserved for the next layer.
    def conv_bn_lrelu(src, wc_ref, cb_ref, gm_ref, bt_ref):
        co = gm_ref.shape[1]
        taps = jnp.dot(src, wc_ref[...], preferred_element_type=jnp.float32)   # (R, 3*co)
        y = (jnp.dot(sdn, taps[:, 0:co], preferred_element_type=jnp.float32)   # x[t-1] @ W0^T
             + taps[:, co:2 * co]                                              # x[t]   @ W1^T
             + jnp.dot(sup, taps[:, 2 * co:3 * co],                            # x[t+1] @ W2^T
                       preferred_element_type=jnp.float32)
             + cb_ref[...])
        # BatchNorm1d, training-mode biased stats over the (N, L) valid positions
        mu = jnp.sum(y * vm, axis=0, keepdims=True) * inv_nl
        d = y - mu
        var = jnp.sum(d * d * vm, axis=0, keepdims=True) * inv_nl
        scale = lax.rsqrt(var + EPS) * gm_ref[...]
        shift = bt_ref[...] - mu * scale
        return lrelu(y * scale + shift) * vm                                   # (R, co), pad rows 0

    h0 = conv_bn_lrelu(xp_ref[...], wc0_ref, cb0_ref, g0_ref, be0_ref)
    h1 = conv_bn_lrelu(h0, wc1_ref, cb1_ref, g1_ref, be1_ref)
    h2 = conv_bn_lrelu(h1, wc2_ref, cb2_ref, g2_ref, be2_ref)
    # torch.mean(a, 1): one (N, R) @ (R, co) matmul (mean matrix has 1/L on each sample's rows)
    a_mean = jnp.dot(mm_ref[...], h2, preferred_element_type=jnp.float32)      # (N, hidden[2])

    # ---------------------------------------------------------------- BiLSTM branch
    H2, H4, H8 = 2 * H, 4 * H, 8 * H
    # gate-major packed lanes: [i_f i_b | f_f f_b | g_f g_b | o_f o_b]; forward-direction lanes
    # are the first H of every 2H block.
    lane = lax.broadcasted_iota(jnp.int32, (1, H8), 1)
    is_fwd = (lane % H2) < H

    def sigmoid(v):                      # exact sigmoid on the EUP tanh path (no VPU divide)
        return 0.5 * jnp.tanh(0.5 * v) + 0.5

    def bilstm(xp, whh_ref, seq_scr):
        # xp: (L*N, 8H) time-major hoisted input projection (bias already folded in).
        # Runs the forward cell (t = 0..L-1) and backward cell (t = L-1..0) in lockstep;
        # one 256-lane (2H x 8H) recurrent matmul per step feeds both directions.
        whh = whh_ref[...]
        h = jnp.zeros((Np, H2), jnp.float32)           # [h_fwd | h_bwd]
        c = jnp.zeros((Np, H2), jnp.float32)
        acc = jnp.zeros((Np, H2), jnp.float32)
        for t in range(L):                              # fully unrolled: L is small & static
            r = L - 1 - t
            x_f = xp[t * Np:(t + 1) * Np, :]            # forward-cell input  (time t)
            x_b = xp[r * Np:(r + 1) * Np, :]            # backward-cell input (time L-1-t)
            gates = (jnp.dot(h, whh, preferred_element_type=jnp.float32)
                     + jnp.where(is_fwd, x_f, x_b))     # (N, 8H)
            i_g = sigmoid(gates[:, 0:H2])
            f_g = sigmoid(gates[:, H2:H4])
            g_g = jnp.tanh(gates[:, H4:H4 + H2])
            o_g = sigmoid(gates[:, H4 + H2:H8])
            c = f_g * c + i_g * g_g
            h = o_g * jnp.tanh(c)
            acc = acc + h
            if seq_scr is not None:
                # forward output belongs to time t, backward output to time L-1-t
                seq_scr[t * Np:(t + 1) * Np, 0:H] = h[:, 0:H]
                seq_scr[r * Np:(r + 1) * Np, H:H2] = h[:, H:H2]
        return acc

    # layer 0: hoist the input projection out of the recurrence (one (L*N, D)@(D, 8H) matmul)
    xp0 = jnp.dot(xt_ref[...], wih0_ref[...],
                  preferred_element_type=jnp.float32) + bl0_ref[...]
    bilstm(xp0, whh0_ref, out0_scr)
    # layer 1: consumes the full layer-0 sequence ([h_fwd | h_bwd] per time step)
    xp1 = jnp.dot(out0_scr[...], wih1_ref[...],
                  preferred_element_type=jnp.float32) + bl1_ref[...]
    acc1 = bilstm(xp1, whh1_ref, None)
    # TODO(synk): BiLSTM class source not provided; per-step fwd/bwd outputs are SUMMED so the
    # branch width equals hidden[3], as required by Linear(hidden[2]+hidden[3], dim_out).
    b_mean = (acc1[:, 0:H] + acc1[:, H:H2]) * (1.0 / float(L))        # torch.mean(b, 1)

    # ---------------------------------------------------------------- head
    # cat([a, b], 1) @ W^T  ==  a @ W[:, :h2]^T + b @ W[:, h2:]^T  (no lane concat needed)
    y = (jnp.dot(a_mean, wa_ref[...], preferred_element_type=jnp.float32)
         + jnp.dot(b_mean, wb_ref[...], preferred_element_type=jnp.float32))
    mu = jnp.mean(y, axis=0, keepdims=True)              # BatchNorm1d over the batch (training)
    d = y - mu
    var = jnp.mean(d * d, axis=0, keepdims=True)
    y = d * lax.rsqrt(var + EPS) * gh_ref[...] + bh_ref[...]
    y = y - jnp.max(y, axis=1, keepdims=True)            # Softmax(dim=1)
    e = jnp.exp(y)
    out_ref[...] = e / jnp.sum(e, axis=1, keepdims=True)


# -----------------------------------------------------------------------------
# Wrapper: one pallas_call; only input prep (pad / time-major flatten / tiny constant
# shift + mask matrices) stays in XLA glue.
# -----------------------------------------------------------------------------
def cat_encoder_forward(x, params):
    n, l, d = x.shape
    (wc0, cb0, g0, be0), (wc1, cb1, g1, be1), (wc2, cb2, g2, be2) = params["cnn"]
    (wih0, b0, whh0), (wih1, b1, whh1) = params["lstm"]
    wa, wb, gh, bh = params["head"]
    h = whh0.shape[0] // 2
    dim_out = wa.shape[1]

    # pad the sequence axis to a tile-friendly length: one leading zero row (conv padding) and
    # zeros up to the next multiple of 8 (>= l + 2), then flatten -> kernel tensors stay 2-D.
    lp = ((l + 2 + 7) // 8) * 8
    r = n * lp
    xp = jnp.pad(x, ((0, 0), (1, lp - l - 1), (0, 0))).reshape(r, d)
    # time-major flatten for the LSTM branch (row index = t * N + n)
    xt = jnp.transpose(x, (1, 0, 2)).reshape(l * n, d)

    # constant helper matrices (exact 0/1 row-shift permutations, valid-row mask, mean matrix)
    sdn = jnp.eye(r, k=-1, dtype=jnp.float32)           # (sdn @ v)[i] = v[i-1]
    sup = jnp.eye(r, k=1, dtype=jnp.float32)            # (sup @ v)[i] = v[i+1]
    idx = jnp.arange(r, dtype=jnp.int32)
    pos = idx % lp
    valid = (pos >= 1) & (pos <= l)
    vm = valid.astype(jnp.float32).reshape(r, 1)
    own = (idx // lp)[None, :] == jnp.arange(n, dtype=jnp.int32)[:, None]   # (n, r)
    mm = jnp.where(own & valid[None, :], jnp.float32(1.0 / l), jnp.float32(0.0))

    return pl.pallas_call(
        _cat_encoder_kernel,
        out_shape=jax.ShapeDtypeStruct((n, dim_out), jnp.float32),
        in_specs=[_VMEM] * 28,
        out_specs=_VMEM,
        scratch_shapes=[
            pltpu.VMEM((l * n, 2 * h), jnp.float32),    # BiLSTM layer-0 output sequence
        ],
    )(xp, xt, sdn, sup, vm, mm,
      wc0, cb0, g0, be0, wc1, cb1, g1, be1, wc2, cb2, g2, be2,
      wih0, b0, whh0, wih1, b1, whh1,
      wa, wb, gh, bh)


# -----------------------------------------------------------------------------
# Deterministic synthetic parameter init (shapes mirror the nn.Module __init__),
# packed into the layouts the fused kernel expects.
# -----------------------------------------------------------------------------
def init_params(key, dim_in, dim_out, hidden=(32, 32, 32, 32), kernel=3):
    ks = jax.random.split(key, 16)
    H = hidden[3]

    def kaiming(k, shape, fan_in):
        return jax.random.normal(k, shape, jnp.float32) * jnp.float32((2.0 / fan_in) ** 0.5)

    # --- CNN: Conv1d(k, pad=k//2) weight packed as (Cin, K*Cout): lane block k == W[:, :, k]^T
    cnn = []
    cins = [dim_in, hidden[0], hidden[1]]
    couts = [hidden[0], hidden[1], hidden[2]]
    for i in range(3):
        w = kaiming(ks[i], (kernel, cins[i], couts[i]), cins[i] * kernel)
        wc = jnp.concatenate([w[k] for k in range(kernel)], axis=1)      # (Cin, K*Cout)
        cb = jnp.zeros((1, couts[i]), jnp.float32)    # conv bias: init.constant_(0)
        gm = jnp.ones((1, couts[i]), jnp.float32)     # BN gamma
        bt = jnp.zeros((1, couts[i]), jnp.float32)    # BN beta
        cnn.append((wc, cb, gm, bt))

    # --- BiLSTM: 2 layers x 2 directions, columns packed gate-major so both directions' gates
    #     come from one 256-lane matmul: [i_f i_b | f_f f_b | g_f g_b | o_f o_b]
    def interleave_cols(m_f, m_b):
        blocks = []
        for q in range(4):                       # PyTorch gate order i, f, g, o
            blocks.append(m_f[:, q * H:(q + 1) * H])
            blocks.append(m_b[:, q * H:(q + 1) * H])
        return jnp.concatenate(blocks, axis=1)

    bound = 1.0 / (H ** 0.5)                     # PyTorch LSTM default uniform init

    def lstm_dir(k, d_in):
        k1, k2, k3, k4 = jax.random.split(k, 4)
        w_ih = jax.random.uniform(k1, (d_in, 4 * H), jnp.float32, -bound, bound)  # W_ih^T
        w_hh = jax.random.uniform(k2, (H, 4 * H), jnp.float32, -bound, bound)     # W_hh^T
        b_ih = jax.random.uniform(k3, (1, 4 * H), jnp.float32, -bound, bound)
        b_hh = jax.random.uniform(k4, (1, 4 * H), jnp.float32, -bound, bound)
        return w_ih, w_hh, b_ih + b_hh

    def bilstm_layer_params(kf, kb, d_in):
        wif, whf, bf = lstm_dir(kf, d_in)
        wib, whb, bb = lstm_dir(kb, d_in)
        wih = interleave_cols(wif, wib)                           # (d_in, 8H)
        b = interleave_cols(bf, bb)                               # (1, 8H)
        zf = jnp.zeros_like(whf)
        whh = jnp.concatenate([interleave_cols(whf, zf),          # rows 0:H  <- h_fwd
                               interleave_cols(zf, whb)],         # rows H:2H <- h_bwd
                              axis=0)                             # (2H, 8H) block structure
        return wih, b, whh

    lstm = [bilstm_layer_params(ks[3], ks[4], dim_in),
            bilstm_layer_params(ks[5], ks[6], 2 * H)]

    # --- Head: Linear(hidden[2]+hidden[3] -> dim_out, bias=False) split into two halves + BN
    fan_in = hidden[2] + hidden[3]
    wa = kaiming(ks[7], (hidden[2], dim_out), fan_in)             # W[:, :hidden[2]]^T
    wb = kaiming(ks[8], (hidden[3], dim_out), fan_in)             # W[:, hidden[2]:]^T
    gh = jnp.ones((1, dim_out), jnp.float32)
    bh = jnp.zeros((1, dim_out), jnp.float32)
    return {"cnn": cnn, "lstm": lstm, "head": (wa, wb, gh, bh)}


if __name__ == "__main__":
    N, L, DIM_IN, DIM_OUT = 2, 8, 4, 8
    key = jax.random.PRNGKey(0)
    kx, kp = jax.random.split(key)
    x = jax.random.normal(kx, (N, L, DIM_IN), jnp.float32)
    params = init_params(kp, DIM_IN, DIM_OUT)

    out = jax.jit(cat_encoder_forward)(x, params)
    out = jax.block_until_ready(out)

    assert out.shape == (N, DIM_OUT), out.shape
    assert bool(jnp.all(jnp.isfinite(out)))
    # softmax rows should sum to ~1
    assert bool(jnp.allclose(jnp.sum(out, axis=1), 1.0, atol=1e-4))
    print("KERNEL_OK")
</pallas_src>

<mosaic_0001>
module attributes {stable_mosaic.version = 11 : i64} {
  func.func @_cat_encoder_kernel(%arg0: memref<32x4xf32, #tpu.memory_space<vmem>>, %arg1: memref<16x4xf32, #tpu.memory_space<vmem>>, %arg2: memref<32x32xf32, #tpu.memory_space<vmem>>, %arg3: memref<32x32xf32, #tpu.memory_space<vmem>>, %arg4: memref<32x1xf32, #tpu.memory_space<vmem>>, %arg5: memref<2x32xf32, #tpu.memory_space<vmem>>, %arg6: memref<4x96xf32, #tpu.memory_space<vmem>>, %arg7: memref<1x32xf32, #tpu.memory_space<vmem>>, %arg8: memref<1x32xf32, #tpu.memory_space<vmem>>, %arg9: memref<1x32xf32, #tpu.memory_space<vmem>>, %arg10: memref<32x96xf32, #tpu.memory_space<vmem>>, %arg11: memref<1x32xf32, #tpu.memory_space<vmem>>, %arg12: memref<1x32xf32, #tpu.memory_space<vmem>>, %arg13: memref<1x32xf32, #tpu.memory_space<vmem>>, %arg14: memref<32x96xf32, #tpu.memory_space<vmem>>, %arg15: memref<1x32xf32, #tpu.memory_space<vmem>>, %arg16: memref<1x32xf32, #tpu.memory_space<vmem>>, %arg17: memref<1x32xf32, #tpu.memory_space<vmem>>, %arg18: memref<4x256xf32, #tpu.memory_space<vmem>>, %arg19: memref<1x256xf32, #tpu.memory_space<vmem>>, %arg20: memref<64x256xf32, #tpu.memory_space<vmem>>, %arg21: memref<64x256xf32, #tpu.memory_space<vmem>>, %arg22: memref<1x256xf32, #tpu.memory_space<vmem>>, %arg23: memref<64x256xf32, #tpu.memory_space<vmem>>, %arg24: memref<32x8xf32, #tpu.memory_space<vmem>>, %arg25: memref<32x8xf32, #tpu.memory_space<vmem>>, %arg26: memref<1x8xf32, #tpu.memory_space<vmem>>, %arg27: memref<1x8xf32, #tpu.memory_space<vmem>>, %arg28: memref<2x8xf32, #tpu.memory_space<vmem>>, %arg29: memref<16x64xf32, #tpu.memory_space<vmem>>) attributes {dimension_semantics = [], scalar_prefetch = 0 : i64, scratch_operands = 1 : i64, tpu.core_type = #tpu.core_type<tc>} {
    %c0 = arith.constant 0 : index
    %c0_0 = arith.constant 0 : index
    %0 = vector.load %arg4[%c0, %c0_0] : memref<32x1xf32, #tpu.memory_space<vmem>>, vector<32x1xf32>
    %c0_1 = arith.constant 0 : index
    %c0_2 = arith.constant 0 : index
    %1 = vector.load %arg2[%c0_1, %c0_2] : memref<32x32xf32, #tpu.memory_space<vmem>>, vector<32x32xf32>
    %c0_3 = arith.constant 0 : index
    %c0_4 = arith.constant 0 : index
    %2 = vector.load %arg3[%c0_3, %c0_4] : memref<32x32xf32, #tpu.memory_space<vmem>>, vector<32x32xf32>
    %c0_5 = arith.constant 0 : index
    %c0_6 = arith.constant 0 : index
    %3 = vector.load %arg0[%c0_5, %c0_6] : memref<32x4xf32, #tpu.memory_space<vmem>>, vector<32x4xf32>
    %c0_7 = arith.constant 0 : index
    %c0_8 = arith.constant 0 : index
    %4 = vector.load %arg6[%c0_7, %c0_8] : memref<4x96xf32, #tpu.memory_space<vmem>>, vector<4x96xf32>
    %cst = arith.constant dense<0.000000e+00> : vector<32x96xf32>
    %5 = tpu.matmul %3, %4, %cst {dimension_numbers = #tpu.dot_dimension_numbers<[1], [0], [0], [1], [0, 0, 1, 1], [], []>} : vector<32x4xf32>, vector<4x96xf32>, vector<32x96xf32> -> vector<32x96xf32>
    %6 = vector.extract_strided_slice %5 {offsets = [0, 0], sizes = [32, 32], strides = [1, 1]} : vector<32x96xf32> to vector<32x32xf32>
    %cst_9 = arith.constant dense<0.000000e+00> : vector<32x32xf32>
    %7 = tpu.matmul %1, %6, %cst_9 {dimension_numbers = #tpu.dot_dimension_numbers<[1], [0], [0], [1], [0, 0, 1, 1], [], []>} : vector<32x32xf32>, vector<32x32xf32>, vector<32x32xf32> -> vector<32x32xf32>
    %8 = vector.extract_strided_slice %5 {offsets = [0, 32], sizes = [32, 32], strides = [1, 1]} : vector<32x96xf32> to vector<32x32xf32>
    %9 = arith.addf %7, %8 : vector<32x32xf32>
    %10 = vector.extract_strided_slice %5 {offsets = [0, 64], sizes = [32, 32], strides = [1, 1]} : vector<32x96xf32> to vector<32x32xf32>
    %cst_10 = arith.constant dense<0.000000e+00> : vector<32x32xf32>
    %11 = tpu.matmul %2, %10, %cst_10 {dimension_numbers = #tpu.dot_dimension_numbers<[1], [0], [0], [1], [0, 0, 1, 1], [], []>} : vector<32x32xf32>, vector<32x32xf32>, vector<32x32xf32> -> vector<32x32xf32>
    %12 = arith.addf %9, %11 : vector<32x32xf32>
    %c0_11 = arith.constant 0 : index
    %c0_12 = arith.constant 0 : index
    %13 = vector.load %arg7[%c0_11, %c0_12] : memref<1x32xf32, #tpu.memory_space<vmem>>, vector<1x32xf32>
    %14 = vector.broadcast %13 : vector<1x32xf32> to vector<32x32xf32>
    %15 = arith.addf %12, %14 : vector<32x32xf32>
    %16 = vector.broadcast %0 : vector<32x1xf32> to vector<32x32xf32>
    %17 = arith.mulf %15, %16 : vector<32x32xf32>
    %cst_13 = arith.constant dense<0.000000e+00> : vector<32xf32>
    %18 = vector.multi_reduction <add>, %17, %cst_13 [0] : vector<32x32xf32> to vector<32xf32>
    %19 = vector.shape_cast %18 : vector<32xf32> to vector<1x32xf32>
    %cst_14 = arith.constant 6.250000e-02 : f32
    %20 = vector.broadcast %cst_14 : f32 to vector<1x32xf32>
    %21 = arith.mulf %19, %20 : vector<1x32xf32>
    %22 = vector.broadcast %21 : vector<1x32xf32> to vector<32x32xf32>
    %23 = arith.subf %15, %22 : vector<32x32xf32>
    %24 = arith.mulf %23, %23 : vector<32x32xf32>
    %25 = vector.broadcast %0 : vector<32x1xf32> to vector<32x32xf32>
    %26 = arith.mulf %24, %25 : vector<32x32xf32>
    %cst_15 = arith.constant dense<0.000000e+00> : vector<32xf32>
    %27 = vector.multi_reduction <add>, %26, %cst_15 [0] : vector<32x32xf32> to vector<32xf32>
    %28 = vector.shape_cast %27 : vector<32xf32> to vector<1x32xf32>
    %cst_16 = arith.constant 6.250000e-02 : f32
    %29 = vector.broadcast %cst_16 : f32 to vector<1x32xf32>
    %30 = arith.mulf %28, %29 : vector<1x32xf32>
    %cst_17 = arith.constant 9.99999974E-6 : f32
    %31 = vector.broadcast %cst_17 : f32 to vector<1x32xf32>
    %32 = arith.addf %30, %31 : vector<1x32xf32>
    %33 = math.rsqrt %32 : vector<1x32xf32>
    %c0_18 = arith.constant 0 : index
    %c0_19 = arith.constant 0 : index
    %34 = vector.load %arg8[%c0_18, %c0_19] : memref<1x32xf32, #tpu.memory_space<vmem>>, vector<1x32xf32>
    %35 = arith.mulf %33, %34 : vector<1x32xf32>
    %c0_20 = arith.constant 0 : index
    %c0_21 = arith.constant 0 : index
    %36 = vector.load %arg9[%c0_20, %c0_21] : memref<1x32xf32, #tpu.memory_space<vmem>>, vector<1x32xf32>
    %37 = arith.mulf %21, %35 : vector<1x32xf32>
    %38 = arith.subf %36, %37 : vector<1x32xf32>
    %39 = vector.broadcast %35 : vector<1x32xf32> to vector<32x32xf32>
    %40 = arith.mulf %15, %39 : vector<32x32xf32>
    %41 = vector.broadcast %38 : vector<1x32xf32> to vector<32x32xf32>
    %42 = arith.addf %40, %41 : vector<32x32xf32>
    %cst_22 = arith.constant 0.000000e+00 : f32
    %43 = vector.broadcast %cst_22 : f32 to vector<32x32xf32>
    %44 = arith.cmpf ogt, %42, %43 : vector<32x32xf32>
    %cst_23 = arith.constant 3.000000e-01 : f32
    %45 = vector.broadcast %cst_23 : f32 to vector<32x32xf32>
    %46 = arith.mulf %45, %42 : vector<32x32xf32>
    %47 = arith.select %44, %42, %46 : vector<32x32xi1>, vector<32x32xf32>
    %48 = vector.broadcast %0 : vector<32x1xf32> to vector<32x32xf32>
    %49 = arith.mulf %47, %48 : vector<32x32xf32>
    %c0_24 = arith.constant 0 : index
    %c0_25 = arith.constant 0 : index
    %50 = vector.load %arg10[%c0_24, %c0_25] : memref<32x96xf32, #tpu.memory_space<vmem>>, vector<32x96xf32>
    %cst_26 = arith.constant dense<0.000000e+00> : vector<32x96xf32>
    %51 = tpu.matmul %49, %50, %cst_26 {dimension_numbers = #tpu.dot_dimension_numbers<[1], [0], [0], [1], [0, 0, 1, 1], [], []>} : vector<32x32xf32>, vector<32x96xf32>, vector<32x96xf32> -> vector<32x96xf32>
    %52 = vector.extract_strided_slice %51 {offsets = [0, 0], sizes = [32, 32], strides = [1, 1]} : vector<32x96xf32> to vector<32x32xf32>
    %cst_27 = arith.constant dense<0.000000e+00> : vector<32x32xf32>
    %53 = tpu.matmul %1, %52, %cst_27 {dimension_numbers = #tpu.dot_dimension_numbers<[1], [0], [0], [1], [0, 0, 1, 1], [], []>} : vector<32x32xf32>, vector<32x32xf32>, vector<32x32xf32> -> vector<32x32xf32>
    %54 = vector.extract_strided_slice %51 {offsets = [0, 32], sizes = [32, 32], strides = [1, 1]} : vector<32x96xf32> to vector<32x32xf32>
    %55 = arith.addf %53, %54 : vector<32x32xf32>
    %56 = vector.extract_strided_slice %51 {offsets = [0, 64], sizes = [32, 32], strides = [1, 1]} : vector<32x96xf32> to vector<32x32xf32>
    %cst_28 = arith.constant dense<0.000000e+00> : vector<32x32xf32>
    %57 = tpu.matmul %2, %56, %cst_28 {dimension_numbers = #tpu.dot_dimension_numbers<[1], [0], [0], [1], [0, 0, 1, 1], [], []>} : vector<32x32xf32>, vector<32x32xf32>, vector<32x32xf32> -> vector<32x32xf32>
    %58 = arith.addf %55, %57 : vector<32x32xf32>
    %c0_29 = arith.constant 0 : index
    %c0_30 = arith.constant 0 : index
    %59 = vector.load %arg11[%c0_29, %c0_30] : memref<1x32xf32, #tpu.memory_space<vmem>>, vector<1x32xf32>
    %60 = vector.broadcast %59 : vector<1x32xf32> to vector<32x32xf32>
    %61 = arith.addf %58, %60 : vector<32x32xf32>
    %62 = vector.broadcast %0 : vector<32x1xf32> to vector<32x32xf32>
    %63 = arith.mulf %61, %62 : vector<32x32xf32>
    %cst_31 = arith.constant dense<0.000000e+00> : vector<32xf32>
    %64 = vector.multi_reduction <add>, %63, %cst_31 [0] : vector<32x32xf32> to vector<32xf32>
    %65 = vector.shape_cast %64 : vector<32xf32> to vector<1x32xf32>
    %cst_32 = arith.constant 6.250000e-02 : f32
    %66 = vector.broadcast %cst_32 : f32 to vector<1x32xf32>
    %67 = arith.mulf %65, %66 : vector<1x32xf32>
    %68 = vector.broadcast %67 : vector<1x32xf32> to vector<32x32xf32>
    %69 = arith.subf %61, %68 : vector<32x32xf32>
    %70 = arith.mulf %69, %69 : vector<32x32xf32>
    %71 = vector.broadcast %0 : vector<32x1xf32> to vector<32x32xf32>
    %72 = arith.mulf %70, %71 : vector<32x32xf32>
    %cst_33 = arith.constant dense<0.000000e+00> : vector<32xf32>
    %73 = vector.multi_reduction <add>, %72, %cst_33 [0] : vector<32x32xf32> to vector<32xf32>
    %74 = vector.shape_cast %73 : vector<32xf32> to vector<1x32xf32>
    %cst_34 = arith.constant 6.250000e-02 : f32
    %75 = vector.broadcast %cst_34 : f32 to vector<1x32xf32>
    %76 = arith.mulf %74, %75 : vector<1x32xf32>
    %cst_35 = arith.constant 9.99999974E-6 : f32
    %77 = vector.broadcast %cst_35 : f32 to vector<1x32xf32>
    %78 = arith.addf %76, %77 : vector<1x32xf32>
    %79 = math.rsqrt %78 : vector<1x32xf32>
    %c0_36 = arith.constant 0 : index
    %c0_37 = arith.constant 0 : index
    %80 = vector.load %arg12[%c0_36, %c0_37] : memref<1x32xf32, #tpu.memory_space<vmem>>, vector<1x32xf32>
    %81 = arith.mulf %79, %80 : vector<1x32xf32>
    %c0_38 = arith.constant 0 : index
    %c0_39 = arith.constant 0 : index
    %82 = vector.load %arg13[%c0_38, %c0_39] : memref<1x32xf32, #tpu.memory_space<vmem>>, vector<1x32xf32>
    %83 = arith.mulf %67, %81 : vector<1x32xf32>
    %84 = arith.subf %82, %83 : vector<1x32xf32>
    %85 = vector.broadcast %81 : vector<1x32xf32> to vector<32x32xf32>
    %86 = arith.mulf %61, %85 : vector<32x32xf32>
    %87 = vector.broadcast %84 : vector<1x32xf32> to vector<32x32xf32>
    %88 = arith.addf %86, %87 : vector<32x32xf32>
    %cst_40 = arith.constant 0.000000e+00 : f32
    %89 = vector.broadcast %cst_40 : f32 to vector<32x32xf32>
    %90 = arith.cmpf ogt, %88, %89 : vector<32x32xf32>
    %cst_41 = arith.constant 3.000000e-01 : f32
    %91 = vector.broadcast %cst_41 : f32 to vector<32x32xf32>
    %92 = arith.mulf %91, %88 : vector<32x32xf32>
    %93 = arith.select %90, %88, %92 : vector<32x32xi1>, vector<32x32xf32>
    %94 = vector.broadcast %0 : vector<32x1xf32> to vector<32x32xf32>
    %95 = arith.mulf %93, %94 : vector<32x32xf32>
    %c0_42 = arith.constant 0 : index
    %c0_43 = arith.constant 0 : index
    %96 = vector.load %arg14[%c0_42, %c0_43] : memref<32x96xf32, #tpu.memory_space<vmem>>, vector<32x96xf32>
    %cst_44 = arith.constant dense<0.000000e+00> : vector<32x96xf32>
    %97 = tpu.matmul %95, %96, %cst_44 {dimension_numbers = #tpu.dot_dimension_numbers<[1], [0], [0], [1], [0, 0, 1, 1], [], []>} : vector<32x32xf32>, vector<32x96xf32>, vector<32x96xf32> -> vector<32x96xf32>
    %98 = vector.extract_strided_slice %97 {offsets = [0, 0], sizes = [32, 32], strides = [1, 1]} : vector<32x96xf32> to vector<32x32xf32>
    %cst_45 = arith.constant dense<0.000000e+00> : vector<32x32xf32>
    %99 = tpu.matmul %1, %98, %cst_45 {dimension_numbers = #tpu.dot_dimension_numbers<[1], [0], [0], [1], [0, 0, 1, 1], [], []>} : vector<32x32xf32>, vector<32x32xf32>, vector<32x32xf32> -> vector<32x32xf32>
    %100 = vector.extract_strided_slice %97 {offsets = [0, 32], sizes = [32, 32], strides = [1, 1]} : vector<32x96xf32> to vector<32x32xf32>
    %101 = arith.addf %99, %100 : vector<32x32xf32>
    %102 = vector.extract_strided_slice %97 {offsets = [0, 64], sizes = [32, 32], strides = [1, 1]} : vector<32x96xf32> to vector<32x32xf32>
    %cst_46 = arith.constant dense<0.000000e+00> : vector<32x32xf32>
    %103 = tpu.matmul %2, %102, %cst_46 {dimension_numbers = #tpu.dot_dimension_numbers<[1], [0], [0], [1], [0, 0, 1, 1], [], []>} : vector<32x32xf32>, vector<32x32xf32>, vector<32x32xf32> -> vector<32x32xf32>
    %104 = arith.addf %101, %103 : vector<32x32xf32>
    %c0_47 = arith.constant 0 : index
    %c0_48 = arith.constant 0 : index
    %105 = vector.load %arg15[%c0_47, %c0_48] : memref<1x32xf32, #tpu.memory_space<vmem>>, vector<1x32xf32>
    %106 = vector.broadcast %105 : vector<1x32xf32> to vector<32x32xf32>
    %107 = arith.addf %104, %106 : vector<32x32xf32>
    %108 = vector.broadcast %0 : vector<32x1xf32> to vector<32x32xf32>
    %109 = arith.mulf %107, %108 : vector<32x32xf32>
    %cst_49 = arith.constant dense<0.000000e+00> : vector<32xf32>
    %110 = vector.multi_reduction <add>, %109, %cst_49 [0] : vector<32x32xf32> to vector<32xf32>
    %111 = vector.shape_cast %110 : vector<32xf32> to vector<1x32xf32>
    %cst_50 = arith.constant 6.250000e-02 : f32
    %112 = vector.broadcast %cst_50 : f32 to vector<1x32xf32>
    %113 = arith.mulf %111, %112 : vector<1x32xf32>
    %114 = vector.broadcast %113 : vector<1x32xf32> to vector<32x32xf32>
    %115 = arith.subf %107, %114 : vector<32x32xf32>
    %116 = arith.mulf %115, %115 : vector<32x32xf32>
    %117 = vector.broadcast %0 : vector<32x1xf32> to vector<32x32xf32>
    %118 = arith.mulf %116, %117 : vector<32x32xf32>
    %cst_51 = arith.constant dense<0.000000e+00> : vector<32xf32>
    %119 = vector.multi_reduction <add>, %118, %cst_51 [0] : vector<32x32xf32> to vector<32xf32>
    %120 = vector.shape_cast %119 : vector<32xf32> to vector<1x32xf32>
    %cst_52 = arith.constant 6.250000e-02 : f32
    %121 = vector.broadcast %cst_52 : f32 to vector<1x32xf32>
    %122 = arith.mulf %120, %121 : vector<1x32xf32>
    %cst_53 = arith.constant 9.99999974E-6 : f32
    %123 = vector.broadcast %cst_53 : f32 to vector<1x32xf32>
    %124 = arith.addf %122, %123 : vector<1x32xf32>
    %125 = math.rsqrt %124 : vector<1x32xf32>
    %c0_54 = arith.constant 0 : index
    %c0_55 = arith.constant 0 : index
    %126 = vector.load %arg16[%c0_54, %c0_55] : memref<1x32xf32, #tpu.memory_space<vmem>>, vector<1x32xf32>
    %127 = arith.mulf %125, %126 : vector<1x32xf32>
    %c0_56 = arith.constant 0 : index
    %c0_57 = arith.constant 0 : index
    %128 = vector.load %arg17[%c0_56, %c0_57] : memref<1x32xf32, #tpu.memory_space<vmem>>, vector<1x32xf32>
    %129 = arith.mulf %113, %127 : vector<1x32xf32>
    %130 = arith.subf %128, %129 : vector<1x32xf32>
    %131 = vector.broadcast %127 : vector<1x32xf32> to vector<32x32xf32>
    %132 = arith.mulf %107, %131 : vector<32x32xf32>
    %133 = vector.broadcast %130 : vector<1x32xf32> to vector<32x32xf32>
    %134 = arith.addf %132, %133 : vector<32x32xf32>
    %cst_58 = arith.constant 0.000000e+00 : f32
    %135 = vector.broadcast %cst_58 : f32 to vector<32x32xf32>
    %136 = arith.cmpf ogt, %134, %135 : vector<32x32xf32>
    %cst_59 = arith.constant 3.000000e-01 : f32
    %137 = vector.broadcast %cst_59 : f32 to vector<32x32xf32>
    %138 = arith.mulf %137, %134 : vector<32x32xf32>
    %139 = arith.select %136, %134, %138 : vector<32x32xi1>, vector<32x32xf32>
    %140 = vector.broadcast %0 : vector<32x1xf32> to vector<32x32xf32>
    %141 = arith.mulf %139, %140 : vector<32x32xf32>
    %c0_60 = arith.constant 0 : index
    %c0_61 = arith.constant 0 : index
    %142 = vector.load %arg5[%c0_60, %c0_61] : memref<2x32xf32, #tpu.memory_space<vmem>>, vector<2x32xf32>
    %cst_62 = arith.constant dense<0.000000e+00> : vector<2x32xf32>
    %143 = tpu.matmul %142, %141, %cst_62 {dimension_numbers = #tpu.dot_dimension_numbers<[1], [0], [0], [1], [0, 0, 1, 1], [], []>} : vector<2x32xf32>, vector<32x32xf32>, vector<2x32xf32> -> vector<2x32xf32>
    %144 = tpu.iota {dimensions = array<i32: 1>} : vector<1x256xi32>
    %c64_i32 = arith.constant 64 : i32
    %c0_i32 = arith.constant 0 : i32
    %145 = arith.cmpi eq, %c64_i32, %c0_i32 : i32
    %c1_i32 = arith.constant 1 : i32
    %146 = arith.select %145, %c1_i32, %c64_i32 : i32
    %147 = vector.broadcast %146 : i32 to vector<1x256xi32>
    %148 = arith.remsi %144, %147 : vector<1x256xi32>
    %c0_i32_63 = arith.constant 0 : i32
    %149 = vector.broadcast %c0_i32_63 : i32 to vector<1x256xi32>
    %150 = arith.cmpi ne, %148, %149 : vector<1x256xi32>
    %c0_i32_64 = arith.constant 0 : i32
    %151 = vector.broadcast %c0_i32_64 : i32 to vector<1x256xi32>
    %152 = arith.cmpi slt, %148, %151 : vector<1x256xi32>
    %c0_i32_65 = arith.constant 0 : i32
    %153 = arith.cmpi slt, %146, %c0_i32_65 : i32
    %154 = vector.broadcast %153 : i1 to vector<1x256xi1>
    %155 = vector.broadcast %154 : vector<1x256xi1> to vector<1x256xi1>
    %156 = arith.xori %152, %155 : vector<1x256xi1>
    %157 = arith.andi %156, %150 : vector<1x256xi1>
    %158 = vector.broadcast %146 : i32 to vector<1x256xi32>
    %159 = arith.addi %148, %158 : vector<1x256xi32>
    %160 = arith.select %157, %159, %148 : vector<1x256xi1>, vector<1x256xi32>
    %c32_i32 = arith.constant 32 : i32
    %161 = vector.broadcast %c32_i32 : i32 to vector<1x256xi32>
    %162 = arith.cmpi slt, %160, %161 : vector<1x256xi32>
    %c0_66 = arith.constant 0 : index
    %c0_67 = arith.constant 0 : index
    %163 = vector.load %arg1[%c0_66, %c0_67] : memref<16x4xf32, #tpu.memory_space<vmem>>, vector<16x4xf32>
    %c0_68 = arith.constant 0 : index
    %c0_69 = arith.constant 0 : index
    %164 = vector.load %arg18[%c0_68, %c0_69] : memref<4x256xf32, #tpu.memory_space<vmem>>, vector<4x256xf32>
    %cst_70 = arith.constant dense<0.000000e+00> : vector<16x256xf32>
    %165 = tpu.matmul %163, %164, %cst_70 {dimension_numbers = #tpu.dot_dimension_numbers<[1], [0], [0], [1], [0, 0, 1, 1], [], []>} : vector<16x4xf32>, vector<4x256xf32>, vector<16x256xf32> -> vector<16x256xf32>
    %c0_71 = arith.constant 0 : index
    %c0_72 = arith.constant 0 : index
    %166 = vector.load %arg19[%c0_71, %c0_72] : memref<1x256xf32, #tpu.memory_space<vmem>>, vector<1x256xf32>
    %167 = vector.broadcast %166 : vector<1x256xf32> to vector<16x256xf32>
    %168 = arith.addf %165, %167 : vector<16x256xf32>
    %c0_73 = arith.constant 0 : index
    %c0_74 = arith.constant 0 : index
    %169 = vector.load %arg20[%c0_73, %c0_74] : memref<64x256xf32, #tpu.memory_space<vmem>>, vector<64x256xf32>
    %cst_75 = arith.constant 0.000000e+00 : f32
    %170 = vector.broadcast %cst_75 : f32 to vector<2x64xf32>
    %cst_76 = arith.constant 0.000000e+00 : f32
    %171 = vector.broadcast %cst_76 : f32 to vector<2x64xf32>
    %172 = vector.extract_strided_slice %168 {offsets = [0, 0], sizes = [2, 256], strides = [1, 1]} : vector<16x256xf32> to vector<2x256xf32>
    %173 = vector.extract_strided_slice %168 {offsets = [14, 0], sizes = [2, 256], strides = [1, 1]} : vector<16x256xf32> to vector<2x256xf32>
    %cst_77 = arith.constant dense<0.000000e+00> : vector<2x256xf32>
    %174 = tpu.matmul %170, %169, %cst_77 {dimension_numbers = #tpu.dot_dimension_numbers<[1], [0], [0], [1], [0, 0, 1, 1], [], []>} : vector<2x64xf32>, vector<64x256xf32>, vector<2x256xf32> -> vector<2x256xf32>
    %175 = vector.shape_cast %162 : vector<1x256xi1> to vector<1x256xi1>
    %176 = vector.broadcast %175 : vector<1x256xi1> to vector<2x256xi1>
    %177 = arith.select %176, %172, %173 : vector<2x256xi1>, vector<2x256xf32>
    %178 = arith.addf %174, %177 : vector<2x256xf32>
    %179 = vector.extract_strided_slice %178 {offsets = [0, 0], sizes = [2, 64], strides = [1, 1]} : vector<2x256xf32> to vector<2x64xf32>
    %cst_78 = arith.constant 5.000000e-01 : f32
    %180 = vector.broadcast %cst_78 : f32 to vector<2x64xf32>
    %181 = arith.mulf %180, %179 : vector<2x64xf32>
    %182 = math.tanh %181 : vector<2x64xf32>
    %cst_79 = arith.constant 5.000000e-01 : f32
    %183 = vector.broadcast %cst_79 : f32 to vector<2x64xf32>
    %184 = arith.mulf %183, %182 : vector<2x64xf32>
    %cst_80 = arith.constant 5.000000e-01 : f32
    %185 = vector.broadcast %cst_80 : f32 to vector<2x64xf32>
    %186 = arith.addf %184, %185 : vector<2x64xf32>
    %187 = vector.extract_strided_slice %178 {offsets = [0, 64], sizes = [2, 64], strides = [1, 1]} : vector<2x256xf32> to vector<2x64xf32>
    %cst_81 = arith.constant 5.000000e-01 : f32
    %188 = vector.broadcast %cst_81 : f32 to vector<2x64xf32>
    %189 = arith.mulf %188, %187 : vector<2x64xf32>
    %190 = math.tanh %189 : vector<2x64xf32>
    %cst_82 = arith.constant 5.000000e-01 : f32
    %191 = vector.broadcast %cst_82 : f32 to vector<2x64xf32>
    %192 = arith.mulf %191, %190 : vector<2x64xf32>
    %cst_83 = arith.constant 5.000000e-01 : f32
    %193 = vector.broadcast %cst_83 : f32 to vector<2x64xf32>
    %194 = arith.addf %192, %193 : vector<2x64xf32>
    %195 = vector.extract_strided_slice %178 {offsets = [0, 128], sizes = [2, 64], strides = [1, 1]} : vector<2x256xf32> to vector<2x64xf32>
    %196 = math.tanh %195 : vector<2x64xf32>
    %197 = vector.extract_strided_slice %178 {offsets = [0, 192], sizes = [2, 64], strides = [1, 1]} : vector<2x256xf32> to vector<2x64xf32>
    %cst_84 = arith.constant 5.000000e-01 : f32
    %198 = vector.broadcast %cst_84 : f32 to vector<2x64xf32>
    %199 = arith.mulf %198, %197 : vector<2x64xf32>
    %200 = math.tanh %199 : vector<2x64xf32>
    %cst_85 = arith.constant 5.000000e-01 : f32
    %201 = vector.broadcast %cst_85 : f32 to vector<2x64xf32>
    %202 = arith.mulf %201, %200 : vector<2x64xf32>
    %cst_86 = arith.constant 5.000000e-01 : f32
    %203 = vector.broadcast %cst_86 : f32 to vector<2x64xf32>
    %204 = arith.addf %202, %203 : vector<2x64xf32>
    %205 = arith.mulf %194, %171 : vector<2x64xf32>
    %206 = arith.mulf %186, %196 : vector<2x64xf32>
    %207 = arith.addf %205, %206 : vector<2x64xf32>
    %208 = math.tanh %207 : vector<2x64xf32>
    %209 = arith.mulf %204, %208 : vector<2x64xf32>
    %210 = vector.extract_strided_slice %209 {offsets = [0, 0], sizes = [2, 32], strides = [1, 1]} : vector<2x64xf32> to vector<2x32xf32>
    %c0_87 = arith.constant 0 : index
    %c0_88 = arith.constant 0 : index
    %211 = vector.load %arg29[%c0_87, %c0_88] : memref<16x64xf32, #tpu.memory_space<vmem>>, vector<2x32xf32>
    tpu.vector_store %arg29[%c0_87, %c0_88], %210 {strides = array<i32>} : memref<16x64xf32, #tpu.memory_space<vmem>>, vector<2x32xf32>,
    %212 = vector.extract_strided_slice %209 {offsets = [0, 32], sizes = [2, 32], strides = [1, 1]} : vector<2x64xf32> to vector<2x32xf32>
    %c14 = arith.constant 14 : index
    %c32 = arith.constant 32 : index
    %213 = vector.load %arg29[%c14, %c32] : memref<16x64xf32, #tpu.memory_space<vmem>>, vector<2x32xf32>
    tpu.vector_store %arg29[%c14, %c32], %212 {strides = array<i32>} : memref<16x64xf32, #tpu.memory_space<vmem>>, vector<2x32xf32>,
    %214 = vector.extract_strided_slice %168 {offsets = [2, 0], sizes = [2, 256], strides = [1, 1]} : vector<16x256xf32> to vector<2x256xf32>
    %215 = vector.extract_strided_slice %168 {offsets = [12, 0], sizes = [2, 256], strides = [1, 1]} : vector<16x256xf32> to vector<2x256xf32>
    %cst_89 = arith.constant dense<0.000000e+00> : vector<2x256xf32>
    %216 = tpu.matmul %209, %169, %cst_89 {dimension_numbers = #tpu.dot_dimension_numbers<[1], [0], [0], [1], [0, 0, 1, 1], [], []>} : vector<2x64xf32>, vector<64x256xf32>, vector<2x256xf32> -> vector<2x256xf32>
    %217 = vector.shape_cast %162 : vector<1x256xi1> to vector<1x256xi1>
    %218 = vector.broadcast %217 : vector<1x256xi1> to vector<2x256xi1>
    %219 = arith.select %218, %214, %215 : vector<2x256xi1>, vector<2x256xf32>
    %220 = arith.addf %216, %219 : vector<2x256xf32>
    %221 = vector.extract_strided_slice %220 {offsets = [0, 0], sizes = [2, 64], strides = [1, 1]} : vector<2x256xf32> to vector<2x64xf32>
    %cst_90 = arith.constant 5.000000e-01 : f32
    %222 = vector.broadcast %cst_90 : f32 to vector<2x64xf32>
    %223 = arith.mulf %222, %221 : vector<2x64xf32>
    %224 = math.tanh %223 : vector<2x64xf32>
    %cst_91 = arith.constant 5.000000e-01 : f32
    %225 = vector.broadcast %cst_91 : f32 to vector<2x64xf32>
    %226 = arith.mulf %225, %224 : vector<2x64xf32>
    %cst_92 = arith.constant 5.000000e-01 : f32
    %227 = vector.broadcast %cst_92 : f32 to vector<2x64xf32>
    %228 = arith.addf %226, %227 : vector<2x64xf32>
    %229 = vector.extract_strided_slice %220 {offsets = [0, 64], sizes = [2, 64], strides = [1, 1]} : vector<2x256xf32> to vector<2x64xf32>
    %cst_93 = arith.constant 5.000000e-01 : f32
    %230 = vector.broadcast %cst_93 : f32 to vector<2x64xf32>
    %231 = arith.mulf %230, %229 : vector<2x64xf32>
    %232 = math.tanh %231 : vector<2x64xf32>
    %cst_94 = arith.constant 5.000000e-01 : f32
    %233 = vector.broadcast %cst_94 : f32 to vector<2x64xf32>
    %234 = arith.mulf %233, %232 : vector<2x64xf32>
    %cst_95 = arith.constant 5.000000e-01 : f32
    %235 = vector.broadcast %cst_95 : f32 to vector<2x64xf32>
    %236 = arith.addf %234, %235 : vector<2x64xf32>
    %237 = vector.extract_strided_slice %220 {offsets = [0, 128], sizes = [2, 64], strides = [1, 1]} : vector<2x256xf32> to vector<2x64xf32>
    %238 = math.tanh %237 : vector<2x64xf32>
    %239 = vector.extract_strided_slice %220 {offsets = [0, 192], sizes = [2, 64], strides = [1, 1]} : vector<2x256xf32> to vector<2x64xf32>
    %cst_96 = arith.constant 5.000000e-01 : f32
    %240 = vector.broadcast %cst_96 : f32 to vector<2x64xf32>
    %241 = arith.mulf %240, %239 : vector<2x64xf32>
    %242 = math.tanh %241 : vector<2x64xf32>
    %cst_97 = arith.constant 5.000000e-01 : f32
    %243 = vector.broadcast %cst_97 : f32 to vector<2x64xf32>
    %244 = arith.mulf %243, %242 : vector<2x64xf32>
    %cst_98 = arith.constant 5.000000e-01 : f32
    %245 = vector.broadcast %cst_98 : f32 to vector<2x64xf32>
    %246 = arith.addf %244, %245 : vector<2x64xf32>
    %247 = arith.mulf %236, %207 : vector<2x64xf32>
    %248 = arith.mulf %228, %238 : vector<2x64xf32>
    %249 = arith.addf %247, %248 : vector<2x64xf32>
    %250 = math.tanh %249 : vector<2x64xf32>
    %251 = arith.mulf %246, %250 : vector<2x64xf32>
    %252 = vector.extract_strided_slice %251 {offsets = [0, 0], sizes = [2, 32], strides = [1, 1]} : vector<2x64xf32> to vector<2x32xf32>
    %c2 = arith.constant 2 : index
    %c0_99 = arith.constant 0 : index
    %253 = vector.load %arg29[%c2, %c0_99] : memref<16x64xf32, #tpu.memory_space<vmem>>, vector<2x32xf32>
    tpu.vector_store %arg29[%c2, %c0_99], %252 {strides = array<i32>} : memref<16x64xf32, #tpu.memory_space<vmem>>, vector<2x32xf32>,
    %254 = vector.extract_strided_slice %251 {offsets = [0, 32], sizes = [2, 32], strides = [1, 1]} : vector<2x64xf32> to vector<2x32xf32>
    %c12 = arith.constant 12 : index
    %c32_100 = arith.constant 32 : index
    %255 = vector.load %arg29[%c12, %c32_100] : memref<16x64xf32, #tpu.memory_space<vmem>>, vector<2x32xf32>
    tpu.vector_store %arg29[%c12, %c32_100], %254 {strides = array<i32>} : memref<16x64xf32, #tpu.memory_space<vmem>>, vector<2x32xf32>,
    %256 = vector.extract_strided_slice %168 {offsets = [4, 0], sizes = [2, 256], strides = [1, 1]} : vector<16x256xf32> to vector<2x256xf32>
    %257 = vector.extract_strided_slice %168 {offsets = [10, 0], sizes = [2, 256], strides = [1, 1]} : vector<16x256xf32> to vector<2x256xf32>
    %cst_101 = arith.constant dense<0.000000e+00> : vector<2x256xf32>
    %258 = tpu.matmul %251, %169, %cst_101 {dimension_numbers = #tpu.dot_dimension_numbers<[1], [0], [0], [1], [0, 0, 1, 1], [], []>} : vector<2x64xf32>, vector<64x256xf32>, vector<2x256xf32> -> vector<2x256xf32>
    %259 = vector.shape_cast %162 : vector<1x256xi1> to vector<1x256xi1>
    %260 = vector.broadcast %259 : vector<1x256xi1> to vector<2x256xi1>
    %261 = arith.select %260, %256, %257 : vector<2x256xi1>, vector<2x256xf32>
    %262 = arith.addf %258, %261 : vector<2x256xf32>
    %263 = vector.extract_strided_slice %262 {offsets = [0, 0], sizes = [2, 64], strides = [1, 1]} : vector<2x256xf32> to vector<2x64xf32>
    %cst_102 = arith.constant 5.000000e-01 : f32
    %264 = vector.broadcast %cst_102 : f32 to vector<2x64xf32>
    %265 = arith.mulf %264, %263 : vector<2x64xf32>
    %266 = math.tanh %265 : vector<2x64xf32>
    %cst_103 = arith.constant 5.000000e-01 : f32
    %267 = vector.broadcast %cst_103 : f32 to vector<2x64xf32>
    %268 = arith.mulf %267, %266 : vector<2x64xf32>
    %cst_104 = arith.constant 5.000000e-01 : f32
    %269 = vector.broadcast %cst_104 : f32 to vector<2x64xf32>
    %270 = arith.addf %268, %269 : vector<2x64xf32>
    %271 = vector.extract_strided_slice %262 {offsets = [0, 64], sizes = [2, 64], strides = [1, 1]} : vector<2x256xf32> to vector<2x64xf32>
    %cst_105 = arith.constant 5.000000e-01 : f32
    %272 = vector.broadcast %cst_105 : f32 to vector<2x64xf32>
    %273 = arith.mulf %272, %271 : vector<2x64xf32>
    %274 = math.tanh %273 : vector<2x64xf32>
    %cst_106 = arith.constant 5.000000e-01 : f32
    %275 = vector.broadcast %cst_106 : f32 to vector<2x64xf32>
    %276 = arith.mulf %275, %274 : vector<2x64xf32>
    %cst_107 = arith.constant 5.000000e-01 : f32
    %277 = vector.broadcast %cst_107 : f32 to vector<2x64xf32>
    %278 = arith.addf %276, %277 : vector<2x64xf32>
    %279 = vector.extract_strided_slice %262 {offsets = [0, 128], sizes = [2, 64], strides = [1, 1]} : vector<2x256xf32> to vector<2x64xf32>
    %280 = math.tanh %279 : vector<2x64xf32>
    %281 = vector.extract_strided_slice %262 {offsets = [0, 192], sizes = [2, 64], strides = [1, 1]} : vector<2x256xf32> to vector<2x64xf32>
    %cst_108 = arith.constant 5.000000e-01 : f32
    %282 = vector.broadcast %cst_108 : f32 to vector<2x64xf32>
    %283 = arith.mulf %282, %281 : vector<2x64xf32>
    %284 = math.tanh %283 : vector<2x64xf32>
    %cst_109 = arith.constant 5.000000e-01 : f32
    %285 = vector.broadcast %cst_109 : f32 to vector<2x64xf32>
    %286 = arith.mulf %285, %284 : vector<2x64xf32>
    %cst_110 = arith.constant 5.000000e-01 : f32
    %287 = vector.broadcast %cst_110 : f32 to vector<2x64xf32>
    %288 = arith.addf %286, %287 : vector<2x64xf32>
    %289 = arith.mulf %278, %249 : vector<2x64xf32>
    %290 = arith.mulf %270, %280 : vector<2x64xf32>
    %291 = arith.addf %289, %290 : vector<2x64xf32>
    %292 = math.tanh %291 : vector<2x64xf32>
    %293 = arith.mulf %288, %292 : vector<2x64xf32>
    %294 = vector.extract_strided_slice %293 {offsets = [0, 0], sizes = [2, 32], strides = [1, 1]} : vector<2x64xf32> to vector<2x32xf32>
    %c4 = arith.constant 4 : index
    %c0_111 = arith.constant 0 : index
    %295 = vector.load %arg29[%c4, %c0_111] : memref<16x64xf32, #tpu.memory_space<vmem>>, vector<2x32xf32>
    tpu.vector_store %arg29[%c4, %c0_111], %294 {strides = array<i32>} : memref<16x64xf32, #tpu.memory_space<vmem>>, vector<2x32xf32>,
    %296 = vector.extract_strided_slice %293 {offsets = [0, 32], sizes = [2, 32], strides = [1, 1]} : vector<2x64xf32> to vector<2x32xf32>
    %c10 = arith.constant 10 : index
    %c32_112 = arith.constant 32 : index
    %297 = vector.load %arg29[%c10, %c32_112] : memref<16x64xf32, #tpu.memory_space<vmem>>, vector<2x32xf32>
    tpu.vector_store %arg29[%c10, %c32_112], %296 {strides = array<i32>} : memref<16x64xf32, #tpu.memory_space<vmem>>, vector<2x32xf32>,
    %298 = vector.extract_strided_slice %168 {offsets = [6, 0], sizes = [2, 256], strides = [1, 1]} : vector<16x256xf32> to vector<2x256xf32>
    %299 = vector.extract_strided_slice %168 {offsets = [8, 0], sizes = [2, 256], strides = [1, 1]} : vector<16x256xf32> to vector<2x256xf32>
    %cst_113 = arith.constant dense<0.000000e+00> : vector<2x256xf32>
    %300 = tpu.matmul %293, %169, %cst_113 {dimension_numbers = #tpu.dot_dimension_numbers<[1], [0], [0], [1], [0, 0, 1, 1], [], []>} : vector<2x64xf32>, vector<64x256xf32>, vector<2x256xf32> -> vector<2x256xf32>
    %301 = vector.shape_cast %162 : vector<1x256xi1> to vector<1x256xi1>
    %302 = vector.broadcast %301 : vector<1x256xi1> to vector<2x256xi1>
    %303 = arith.select %302, %298, %299 : vector<2x256xi1>, vector<2x256xf32>
    %304 = arith.addf %300, %303 : vector<2x256xf32>
    %305 = vector.extract_strided_slice %304 {offsets = [0, 0], sizes = [2, 64], strides = [1, 1]} : vector<2x256xf32> to vector<2x64xf32>
    %cst_114 = arith.constant 5.000000e-01 : f32
    %306 = vector.broadcast %cst_114 : f32 to vector<2x64xf32>
    %307 = arith.mulf %306, %305 : vector<2x64xf32>
    %308 = math.tanh %307 : vector<2x64xf32>
    %cst_115 = arith.constant 5.000000e-01 : f32
    %309 = vector.broadcast %cst_115 : f32 to vector<2x64xf32>
    %310 = arith.mulf %309, %308 : vector<2x64xf32>
    %cst_116 = arith.constant 5.000000e-01 : f32
    %311 = vector.broadcast %cst_116 : f32 to vector<2x64xf32>
    %312 = arith.addf %310, %311 : vector<2x64xf32>
    %313 = vector.extract_strided_slice %304 {offsets = [0, 64], sizes = [2, 64], strides = [1, 1]} : vector<2x256xf32> to vector<2x64xf32>
    %cst_117 = arith.constant 5.000000e-01 : f32
    %314 = vector.broadcast %cst_117 : f32 to vector<2x64xf32>
    %315 = arith.mulf %314, %313 : vector<2x64xf32>
    %316 = math.tanh %315 : vector<2x64xf32>
    %cst_118 = arith.constant 5.000000e-01 : f32
    %317 = vector.broadcast %cst_118 : f32 to vector<2x64xf32>
    %318 = arith.mulf %317, %316 : vector<2x64xf32>
    %cst_119 = arith.constant 5.000000e-01 : f32
    %319 = vector.broadcast %cst_119 : f32 to vector<2x64xf32>
    %320 = arith.addf %318, %319 : vector<2x64xf32>
    %321 = vector.extract_strided_slice %304 {offsets = [0, 128], sizes = [2, 64], strides = [1, 1]} : vector<2x256xf32> to vector<2x64xf32>
    %322 = math.tanh %321 : vector<2x64xf32>
    %323 = vector.extract_strided_slice %304 {offsets = [0, 192], sizes = [2, 64], strides = [1, 1]} : vector<2x256xf32> to vector<2x64xf32>
    %cst_120 = arith.constant 5.000000e-01 : f32
    %324 = vector.broadcast %cst_120 : f32 to vector<2x64xf32>
    %325 = arith.mulf %324, %323 : vector<2x64xf32>
    %326 = math.tanh %325 : vector<2x64xf32>
    %cst_121 = arith.constant 5.000000e-01 : f32
    %327 = vector.broadcast %cst_121 : f32 to vector<2x64xf32>
    %328 = arith.mulf %327, %326 : vector<2x64xf32>
    %cst_122 = arith.constant 5.000000e-01 : f32
    %329 = vector.broadcast %cst_122 : f32 to vector<2x64xf32>
    %330 = arith.addf %328, %329 : vector<2x64xf32>
    %331 = arith.mulf %320, %291 : vector<2x64xf32>
    %332 = arith.mulf %312, %322 : vector<2x64xf32>
    %333 = arith.addf %331, %332 : vector<2x64xf32>
    %334 = math.tanh %333 : vector<2x64xf32>
    %335 = arith.mulf %330, %334 : vector<2x64xf32>
    %336 = vector.extract_strided_slice %335 {offsets = [0, 0], sizes = [2, 32], strides = [1, 1]} : vector<2x64xf32> to vector<2x32xf32>
    %c6 = arith.constant 6 : index
    %c0_123 = arith.constant 0 : index
    %337 = vector.load %arg29[%c6, %c0_123] : memref<16x64xf32, #tpu.memory_space<vmem>>, vector<2x32xf32>
    tpu.vector_store %arg29[%c6, %c0_123], %336 {strides = array<i32>} : memref<16x64xf32, #tpu.memory_space<vmem>>, vector<2x32xf32>,
    %338 = vector.extract_strided_slice %335 {offsets = [0, 32], sizes = [2, 32], strides = [1, 1]} : vector<2x64xf32> to vector<2x32xf32>
    %c8 = arith.constant 8 : index
    %c32_124 = arith.constant 32 : index
    %339 = vector.load %arg29[%c8, %c32_124] : memref<16x64xf32, #tpu.memory_space<vmem>>, vector<2x32xf32>
    tpu.vector_store %arg29[%c8, %c32_124], %338 {strides = array<i32>} : memref<16x64xf32, #tpu.memory_space<vmem>>, vector<2x32xf32>,
    %340 = vector.extract_strided_slice %168 {offsets = [8, 0], sizes = [2, 256], strides = [1, 1]} : vector<16x256xf32> to vector<2x256xf32>
    %341 = vector.extract_strided_slice %168 {offsets = [6, 0], sizes = [2, 256], strides = [1, 1]} : vector<16x256xf32> to vector<2x256xf32>
    %cst_125 = arith.constant dense<0.000000e+00> : vector<2x256xf32>
    %342 = tpu.matmul %335, %169, %cst_125 {dimension_numbers = #tpu.dot_dimension_numbers<[1], [0], [0], [1], [0, 0, 1, 1], [], []>} : vector<2x64xf32>, vector<64x256xf32>, vector<2x256xf32> -> vector<2x256xf32>
    %343 = vector.shape_cast %162 : vector<1x256xi1> to vector<1x256xi1>
    %344 = vector.broadcast %343 : vector<1x256xi1> to vector<2x256xi1>
    %345 = arith.select %344, %340, %341 : vector<2x256xi1>, vector<2x256xf32>
    %346 = arith.addf %342, %345 : vector<2x256xf32>
    %347 = vector.extract_strided_slice %346 {offsets = [0, 0], sizes = [2, 64], strides = [1, 1]} : vector<2x256xf32> to vector<2x64xf32>
    %cst_126 = arith.constant 5.000000e-01 : f32
    %348 = vector.broadcast %cst_126 : f32 to vector<2x64xf32>
    %349 = arith.mulf %348, %347 : vector<2x64xf32>
    %350 = math.tanh %349 : vector<2x64xf32>
    %cst_127 = arith.constant 5.000000e-01 : f32
    %351 = vector.broadcast %cst_127 : f32 to vector<2x64xf32>
    %352 = arith.mulf %351, %350 : vector<2x64xf32>
    %cst_128 = arith.constant 5.000000e-01 : f32
    %353 = vector.broadcast %cst_128 : f32 to vector<2x64xf32>
    %354 = arith.addf %352, %353 : vector<2x64xf32>
    %355 = vector.extract_strided_slice %346 {offsets = [0, 64], sizes = [2, 64], strides = [1, 1]} : vector<2x256xf32> to vector<2x64xf32>
    %cst_129 = arith.constant 5.000000e-01 : f32
    %356 = vector.broadcast %cst_129 : f32 to vector<2x64xf32>
    %357 = arith.mulf %356, %355 : vector<2x64xf32>
    %358 = math.tanh %357 : vector<2x64xf32>
    %cst_130 = arith.constant 5.000000e-01 : f32
    %359 = vector.broadcast %cst_130 : f32 to vector<2x64xf32>
    %360 = arith.mulf %359, %358 : vector<2x64xf32>
    %cst_131 = arith.constant 5.000000e-01 : f32
    %361 = vector.broadcast %cst_131 : f32 to vector<2x64xf32>
    %362 = arith.addf %360, %361 : vector<2x64xf32>
    %363 = vector.extract_strided_slice %346 {offsets = [0, 128], sizes = [2, 64], strides = [1, 1]} : vector<2x256xf32> to vector<2x64xf32>
    %364 = math.tanh %363 : vector<2x64xf32>
    %365 = vector.extract_strided_slice %346 {offsets = [0, 192], sizes = [2, 64], strides = [1, 1]} : vector<2x256xf32> to vector<2x64xf32>
    %cst_132 = arith.constant 5.000000e-01 : f32
    %366 = vector.broadcast %cst_132 : f32 to vector<2x64xf32>
    %367 = arith.mulf %366, %365 : vector<2x64xf32>
    %368 = math.tanh %367 : vector<2x64xf32>
    %cst_133 = arith.constant 5.000000e-01 : f32
    %369 = vector.broadcast %cst_133 : f32 to vector<2x64xf32>
    %370 = arith.mulf %369, %368 : vector<2x64xf32>
    %cst_134 = arith.constant 5.000000e-01 : f32
    %371 = vector.broadcast %cst_134 : f32 to vector<2x64xf32>
    %372 = arith.addf %370, %371 : vector<2x64xf32>
    %373 = arith.mulf %362, %333 : vector<2x64xf32>
    %374 = arith.mulf %354, %364 : vector<2x64xf32>
    %375 = arith.addf %373, %374 : vector<2x64xf32>
    %376 = math.tanh %375 : vector<2x64xf32>
    %377 = arith.mulf %372, %376 : vector<2x64xf32>
    %378 = vector.extract_strided_slice %377 {offsets = [0, 0], sizes = [2, 32], strides = [1, 1]} : vector<2x64xf32> to vector<2x32xf32>
    %c8_135 = arith.constant 8 : index
    %c0_136 = arith.constant 0 : index
    %379 = vector.load %arg29[%c8_135, %c0_136] : memref<16x64xf32, #tpu.memory_space<vmem>>, vector<2x32xf32>
    tpu.vector_store %arg29[%c8_135, %c0_136], %378 {strides = array<i32>} : memref<16x64xf32, #tpu.memory_space<vmem>>, vector<2x32xf32>,
    %380 = vector.extract_strided_slice %377 {offsets = [0, 32], sizes = [2, 32], strides = [1, 1]} : vector<2x64xf32> to vector<2x32xf32>
    %c6_137 = arith.constant 6 : index
    %c32_138 = arith.constant 32 : index
    %381 = vector.load %arg29[%c6_137, %c32_138] : memref<16x64xf32, #tpu.memory_space<vmem>>, vector<2x32xf32>
    tpu.vector_store %arg29[%c6_137, %c32_138], %380 {strides = array<i32>} : memref<16x64xf32, #tpu.memory_space<vmem>>, vector<2x32xf32>,
    %382 = vector.extract_strided_slice %168 {offsets = [10, 0], sizes = [2, 256], strides = [1, 1]} : vector<16x256xf32> to vector<2x256xf32>
    %383 = vector.extract_strided_slice %168 {offsets = [4, 0], sizes = [2, 256], strides = [1, 1]} : vector<16x256xf32> to vector<2x256xf32>
    %cst_139 = arith.constant dense<0.000000e+00> : vector<2x256xf32>
    %384 = tpu.matmul %377, %169, %cst_139 {dimension_numbers = #tpu.dot_dimension_numbers<[1], [0], [0], [1], [0, 0, 1, 1], [], []>} : vector<2x64xf32>, vector<64x256xf32>, vector<2x256xf32> -> vector<2x256xf32>
    %385 = vector.shape_cast %162 : vector<1x256xi1> to vector<1x256xi1>
    %386 = vector.broadcast %385 : vector<1x256xi1> to vector<2x256xi1>
    %387 = arith.select %386, %382, %383 : vector<2x256xi1>, vector<2x256xf32>
    %388 = arith.addf %384, %387 : vector<2x256xf32>
    %389 = vector.extract_strided_slice %388 {offsets = [0, 0], sizes = [2, 64], strides = [1, 1]} : vector<2x256xf32> to vector<2x64xf32>
    %cst_140 = arith.constant 5.000000e-01 : f32
    %390 = vector.broadcast %cst_140 : f32 to vector<2x64xf32>
    %391 = arith.mulf %390, %389 : vector<2x64xf32>
    %392 = math.tanh %391 : vector<2x64xf32>
    %cst_141 = arith.constant 5.000000e-01 : f32
    %393 = vector.broadcast %cst_141 : f32 to vector<2x64xf32>
    %394 = arith.mulf %393, %392 : vector<2x64xf32>
    %cst_142 = arith.constant 5.000000e-01 : f32
    %395 = vector.broadcast %cst_142 : f32 to vector<2x64xf32>
    %396 = arith.addf %394, %395 : vector<2x64xf32>
    %397 = vector.extract_strided_slice %388 {offsets = [0, 64], sizes = [2, 64], strides = [1, 1]} : vector<2x256xf32> to vector<2x64xf32>
    %cst_143 = arith.constant 5.000000e-01 : f32
    %398 = vector.broadcast %cst_143 : f32 to vector<2x64xf32>
    %399 = arith.mulf %398, %397 : vector<2x64xf32>
    %400 = math.tanh %399 : vector<2x64xf32>
    %cst_144 = arith.constant 5.000000e-01 : f32
    %401 = vector.broadcast %cst_144 : f32 to vector<2x64xf32>
    %402 = arith.mulf %401, %400 : vector<2x64xf32>
    %cst_145 = arith.constant 5.000000e-01 : f32
    %403 = vector.broadcast %cst_145 : f32 to vector<2x64xf32>
    %404 = arith.addf %402, %403 : vector<2x64xf32>
    %405 = vector.extract_strided_slice %388 {offsets = [0, 128], sizes = [2, 64], strides = [1, 1]} : vector<2x256xf32> to vector<2x64xf32>
    %406 = math.tanh %405 : vector<2x64xf32>
    %407 = vector.extract_strided_slice %388 {offsets = [0, 192], sizes = [2, 64], strides = [1, 1]} : vector<2x256xf32> to vector<2x64xf32>
    %cst_146 = arith.constant 5.000000e-01 : f32
    %408 = vector.broadcast %cst_146 : f32 to vector<2x64xf32>
    %409 = arith.mulf %408, %407 : vector<2x64xf32>
    %410 = math.tanh %409 : vector<2x64xf32>
    %cst_147 = arith.constant 5.000000e-01 : f32
    %411 = vector.broadcast %cst_147 : f32 to vector<2x64xf32>
    %412 = arith.mulf %411, %410 : vector<2x64xf32>
    %cst_148 = arith.constant 5.000000e-01 : f32
    %413 = vector.broadcast %cst_148 : f32 to vector<2x64xf32>
    %414 = arith.addf %412, %413 : vector<2x64xf32>
    %415 = arith.mulf %404, %375 : vector<2x64xf32>
    %416 = arith.mulf %396, %406 : vector<2x64xf32>
    %417 = arith.addf %415, %416 : vector<2x64xf32>
    %418 = math.tanh %417 : vector<2x64xf32>
    %419 = arith.mulf %414, %418 : vector<2x64xf32>
    %420 = vector.extract_strided_slice %419 {offsets = [0, 0], sizes = [2, 32], strides = [1, 1]} : vector<2x64xf32> to vector<2x32xf32>
    %c10_149 = arith.constant 10 : index
    %c0_150 = arith.constant 0 : index
    %421 = vector.load %arg29[%c10_149, %c0_150] : memref<16x64xf32, #tpu.memory_space<vmem>>, vector<2x32xf32>
    tpu.vector_store %arg29[%c10_149, %c0_150], %420 {strides = array<i32>} : memref<16x64xf32, #tpu.memory_space<vmem>>, vector<2x32xf32>,
    %422 = vector.extract_strided_slice %419 {offsets = [0, 32], sizes = [2, 32], strides = [1, 1]} : vector<2x64xf32> to vector<2x32xf32>
    %c4_151 = arith.constant 4 : index
    %c32_152 = arith.constant 32 : index
    %423 = vector.load %arg29[%c4_151, %c32_152] : memref<16x64xf32, #tpu.memory_space<vmem>>, vector<2x32xf32>
    tpu.vector_store %arg29[%c4_151, %c32_152], %422 {strides = array<i32>} : memref<16x64xf32, #tpu.memory_space<vmem>>, vector<2x32xf32>,
    %424 = vector.extract_strided_slice %168 {offsets = [12, 0], sizes = [2, 256], strides = [1, 1]} : vector<16x256xf32> to vector<2x256xf32>
    %425 = vector.extract_strided_slice %168 {offsets = [2, 0], sizes = [2, 256], strides = [1, 1]} : vector<16x256xf32> to vector<2x256xf32>
    %cst_153 = arith.constant dense<0.000000e+00> : vector<2x256xf32>
    %426 = tpu.matmul %419, %169, %cst_153 {dimension_numbers = #tpu.dot_dimension_numbers<[1], [0], [0], [1], [0, 0, 1, 1], [], []>} : vector<2x64xf32>, vector<64x256xf32>, vector<2x256xf32> -> vector<2x256xf32>
    %427 = vector.shape_cast %162 : vector<1x256xi1> to vector<1x256xi1>
    %428 = vector.broadcast %427 : vector<1x256xi1> to vector<2x256xi1>
    %429 = arith.select %428, %424, %425 : vector<2x256xi1>, vector<2x256xf32>
    %430 = arith.addf %426, %429 : vector<2x256xf32>
    %431 = vector.extract_strided_slice %430 {offsets = [0, 0], sizes = [2, 64], strides = [1, 1]} : vector<2x256xf32> to vector<2x64xf32>
    %cst_154 = arith.constant 5.000000e-01 : f32
    %432 = vector.broadcast %cst_154 : f32 to vector<2x64xf32>
    %433 = arith.mulf %432, %431 : vector<2x64xf32>
    %434 = math.tanh %433 : vector<2x64xf32>
    %cst_155 = arith.constant 5.000000e-01 : f32
    %435 = vector.broadcast %cst_155 : f32 to vector<2x64xf32>
    %436 = arith.mulf %435, %434 : vector<2x64xf32>
    %cst_156 = arith.constant 5.000000e-01 : f32
    %437 = vector.broadcast %cst_156 : f32 to vector<2x64xf32>
    %438 = arith.addf %436, %437 : vector<2x64xf32>
    %439 = vector.extract_strided_slice %430 {offsets = [0, 64], sizes = [2, 64], strides = [1, 1]} : vector<2x256xf32> to vector<2x64xf32>
    %cst_157 = arith.constant 5.000000e-01 : f32
    %440 = vector.broadcast %cst_157 : f32 to vector<2x64xf32>
    %441 = arith.mulf %440, %439 : vector<2x64xf32>
    %442 = math.tanh %441 : vector<2x64xf32>
    %cst_158 = arith.constant 5.000000e-01 : f32
    %443 = vector.broadcast %cst_158 : f32 to vector<2x64xf32>
    %444 = arith.mulf %443, %442 : vector<2x64xf32>
    %cst_159 = arith.constant 5.000000e-01 : f32
    %445 = vector.broadcast %cst_159 : f32 to vector<2x64xf32>
    %446 = arith.addf %444, %445 : vector<2x64xf32>
    %447 = vector.extract_strided_slice %430 {offsets = [0, 128], sizes = [2, 64], strides = [1, 1]} : vector<2x256xf32> to vector<2x64xf32>
    %448 = math.tanh %447 : vector<2x64xf32>
    %449 = vector.extract_strided_slice %430 {offsets = [0, 192], sizes = [2, 64], strides = [1, 1]} : vector<2x256xf32> to vector<2x64xf32>
    %cst_160 = arith.constant 5.000000e-01 : f32
    %450 = vector.broadcast %cst_160 : f32 to vector<2x64xf32>
    %451 = arith.mulf %450, %449 : vector<2x64xf32>
    %452 = math.tanh %451 : vector<2x64xf32>
    %cst_161 = arith.constant 5.000000e-01 : f32
    %453 = vector.broadcast %cst_161 : f32 to vector<2x64xf32>
    %454 = arith.mulf %453, %452 : vector<2x64xf32>
    %cst_162 = arith.constant 5.000000e-01 : f32
    %455 = vector.broadcast %cst_162 : f32 to vector<2x64xf32>
    %456 = arith.addf %454, %455 : vector<2x64xf32>
    %457 = arith.mulf %446, %417 : vector<2x64xf32>
    %458 = arith.mulf %438, %448 : vector<2x64xf32>
    %459 = arith.addf %457, %458 : vector<2x64xf32>
    %460 = math.tanh %459 : vector<2x64xf32>
    %461 = arith.mulf %456, %460 : vector<2x64xf32>
    %462 = vector.extract_strided_slice %461 {offsets = [0, 0], sizes = [2, 32], strides = [1, 1]} : vector<2x64xf32> to vector<2x32xf32>
    %c12_163 = arith.constant 12 : index
    %c0_164 = arith.constant 0 : index
    %463 = vector.load %arg29[%c12_163, %c0_164] : memref<16x64xf32, #tpu.memory_space<vmem>>, vector<2x32xf32>
    tpu.vector_store %arg29[%c12_163, %c0_164], %462 {strides = array<i32>} : memref<16x64xf32, #tpu.memory_space<vmem>>, vector<2x32xf32>,
    %464 = vector.extract_strided_slice %461 {offsets = [0, 32], sizes = [2, 32], strides = [1, 1]} : vector<2x64xf32> to vector<2x32xf32>
    %c2_165 = arith.constant 2 : index
    %c32_166 = arith.constant 32 : index
    %465 = vector.load %arg29[%c2_165, %c32_166] : memref<16x64xf32, #tpu.memory_space<vmem>>, vector<2x32xf32>
    tpu.vector_store %arg29[%c2_165, %c32_166], %464 {strides = array<i32>} : memref<16x64xf32, #tpu.memory_space<vmem>>, vector<2x32xf32>,
    %466 = vector.extract_strided_slice %168 {offsets = [14, 0], sizes = [2, 256], strides = [1, 1]} : vector<16x256xf32> to vector<2x256xf32>
    %467 = vector.extract_strided_slice %168 {offsets = [0, 0], sizes = [2, 256], strides = [1, 1]} : vector<16x256xf32> to vector<2x256xf32>
    %cst_167 = arith.constant dense<0.000000e+00> : vector<2x256xf32>
    %468 = tpu.matmul %461, %169, %cst_167 {dimension_numbers = #tpu.dot_dimension_numbers<[1], [0], [0], [1], [0, 0, 1, 1], [], []>} : vector<2x64xf32>, vector<64x256xf32>, vector<2x256xf32> -> vector<2x256xf32>
    %469 = vector.shape_cast %162 : vector<1x256xi1> to vector<1x256xi1>
    %470 = vector.broadcast %469 : vector<1x256xi1> to vector<2x256xi1>
    %471 = arith.select %470, %466, %467 : vector<2x256xi1>, vector<2x256xf32>
    %472 = arith.addf %468, %471 : vector<2x256xf32>
    %473 = vector.extract_strided_slice %472 {offsets = [0, 0], sizes = [2, 64], strides = [1, 1]} : vector<2x256xf32> to vector<2x64xf32>
    %cst_168 = arith.constant 5.000000e-01 : f32
    %474 = vector.broadcast %cst_168 : f32 to vector<2x64xf32>
    %475 = arith.mulf %474, %473 : vector<2x64xf32>
    %476 = math.tanh %475 : vector<2x64xf32>
    %cst_169 = arith.constant 5.000000e-01 : f32
    %477 = vector.broadcast %cst_169 : f32 to vector<2x64xf32>
    %478 = arith.mulf %477, %476 : vector<2x64xf32>
    %cst_170 = arith.constant 5.000000e-01 : f32
    %479 = vector.broadcast %cst_170 : f32 to vector<2x64xf32>
    %480 = arith.addf %478, %479 : vector<2x64xf32>
    %481 = vector.extract_strided_slice %472 {offsets = [0, 64], sizes = [2, 64], strides = [1, 1]} : vector<2x256xf32> to vector<2x64xf32>
    %cst_171 = arith.constant 5.000000e-01 : f32
    %482 = vector.broadcast %cst_171 : f32 to vector<2x64xf32>
    %483 = arith.mulf %482, %481 : vector<2x64xf32>
    %484 = math.tanh %483 : vector<2x64xf32>
    %cst_172 = arith.constant 5.000000e-01 : f32
    %485 = vector.broadcast %cst_172 : f32 to vector<2x64xf32>
    %486 = arith.mulf %485, %484 : vector<2x64xf32>
    %cst_173 = arith.constant 5.000000e-01 : f32
    %487 = vector.broadcast %cst_173 : f32 to vector<2x64xf32>
    %488 = arith.addf %486, %487 : vector<2x64xf32>
    %489 = vector.extract_strided_slice %472 {offsets = [0, 128], sizes = [2, 64], strides = [1, 1]} : vector<2x256xf32> to vector<2x64xf32>
    %490 = math.tanh %489 : vector<2x64xf32>
    %491 = vector.extract_strided_slice %472 {offsets = [0, 192], sizes = [2, 64], strides = [1, 1]} : vector<2x256xf32> to vector<2x64xf32>
    %cst_174 = arith.constant 5.000000e-01 : f32
    %492 = vector.broadcast %cst_174 : f32 to vector<2x64xf32>
    %493 = arith.mulf %492, %491 : vector<2x64xf32>
    %494 = math.tanh %493 : vector<2x64xf32>
    %cst_175 = arith.constant 5.000000e-01 : f32
    %495 = vector.broadcast %cst_175 : f32 to vector<2x64xf32>
    %496 = arith.mulf %495, %494 : vector<2x64xf32>
    %cst_176 = arith.constant 5.000000e-01 : f32
    %497 = vector.broadcast %cst_176 : f32 to vector<2x64xf32>
    %498 = arith.addf %496, %497 : vector<2x64xf32>
    %499 = arith.mulf %488, %459 : vector<2x64xf32>
    %500 = arith.mulf %480, %490 : vector<2x64xf32>
    %501 = arith.addf %499, %500 : vector<2x64xf32>
    %502 = math.tanh %501 : vector<2x64xf32>
    %503 = arith.mulf %498, %502 : vector<2x64xf32>
    %504 = vector.extract_strided_slice %503 {offsets = [0, 0], sizes = [2, 32], strides = [1, 1]} : vector<2x64xf32> to vector<2x32xf32>
    %c14_177 = arith.constant 14 : index
    %c0_178 = arith.constant 0 : index
    %505 = vector.load %arg29[%c14_177, %c0_178] : memref<16x64xf32, #tpu.memory_space<vmem>>, vector<2x32xf32>
    tpu.vector_store %arg29[%c14_177, %c0_178], %504 {strides = array<i32>} : memref<16x64xf32, #tpu.memory_space<vmem>>, vector<2x32xf32>,
    %506 = vector.extract_strided_slice %503 {offsets = [0, 32], sizes = [2, 32], strides = [1, 1]} : vector<2x64xf32> to vector<2x32xf32>
    %c0_179 = arith.constant 0 : index
    %c32_180 = arith.constant 32 : index
    %507 = vector.load %arg29[%c0_179, %c32_180] : memref<16x64xf32, #tpu.memory_space<vmem>>, vector<2x32xf32>
    tpu.vector_store %arg29[%c0_179, %c32_180], %506 {strides = array<i32>} : memref<16x64xf32, #tpu.memory_space<vmem>>, vector<2x32xf32>,
    %c0_181 = arith.constant 0 : index
    %c0_182 = arith.constant 0 : index
    %508 = vector.load %arg29[%c0_181, %c0_182] : memref<16x64xf32, #tpu.memory_space<vmem>>, vector<16x64xf32>
    %c0_183 = arith.constant 0 : index
    %c0_184 = arith.constant 0 : index
    %509 = vector.load %arg21[%c0_183, %c0_184] : memref<64x256xf32, #tpu.memory_space<vmem>>, vector<64x256xf32>
    %cst_185 = arith.constant dense<0.000000e+00> : vector<16x256xf32>
    %510 = tpu.matmul %508, %509, %cst_185 {dimension_numbers = #tpu.dot_dimension_numbers<[1], [0], [0], [1], [0, 0, 1, 1], [], []>} : vector<16x64xf32>, vector<64x256xf32>, vector<16x256xf32> -> vector<16x256xf32>
    %c0_186 = arith.constant 0 : index
    %c0_187 = arith.constant 0 : index
    %511 = vector.load %arg22[%c0_186, %c0_187] : memref<1x256xf32, #tpu.memory_space<vmem>>, vector<1x256xf32>
    %512 = vector.broadcast %511 : vector<1x256xf32> to vector<16x256xf32>
    %513 = arith.addf %510, %512 : vector<16x256xf32>
    %c0_188 = arith.constant 0 : index
    %c0_189 = arith.constant 0 : index
    %514 = vector.load %arg23[%c0_188, %c0_189] : memref<64x256xf32, #tpu.memory_space<vmem>>, vector<64x256xf32>
    %cst_190 = arith.constant 0.000000e+00 : f32
    %515 = vector.broadcast %cst_190 : f32 to vector<2x64xf32>
    %cst_191 = arith.constant 0.000000e+00 : f32
    %516 = vector.broadcast %cst_191 : f32 to vector<2x64xf32>
    %cst_192 = arith.constant 0.000000e+00 : f32
    %517 = vector.broadcast %cst_192 : f32 to vector<2x64xf32>
    %518 = vector.extract_strided_slice %513 {offsets = [0, 0], sizes = [2, 256], strides = [1, 1]} : vector<16x256xf32> to vector<2x256xf32>
    %519 = vector.extract_strided_slice %513 {offsets = [14, 0], sizes = [2, 256], strides = [1, 1]} : vector<16x256xf32> to vector<2x256xf32>
    %cst_193 = arith.constant dense<0.000000e+00> : vector<2x256xf32>
    %520 = tpu.matmul %515, %514, %cst_193 {dimension_numbers = #tpu.dot_dimension_numbers<[1], [0], [0], [1], [0, 0, 1, 1], [], []>} : vector<2x64xf32>, vector<64x256xf32>, vector<2x256xf32> -> vector<2x256xf32>
    %521 = vector.shape_cast %162 : vector<1x256xi1> to vector<1x256xi1>
    %522 = vector.broadcast %521 : vector<1x256xi1> to vector<2x256xi1>
    %523 = arith.select %522, %518, %519 : vector<2x256xi1>, vector<2x256xf32>
    %524 = arith.addf %520, %523 : vector<2x256xf32>
    %525 = vector.extract_strided_slice %524 {offsets = [0, 0], sizes = [2, 64], strides = [1, 1]} : vector<2x256xf32> to vector<2x64xf32>
    %cst_194 = arith.constant 5.000000e-01 : f32
    %526 = vector.broadcast %cst_194 : f32 to vector<2x64xf32>
    %527 = arith.mulf %526, %525 : vector<2x64xf32>
    %528 = math.tanh %527 : vector<2x64xf32>
    %cst_195 = arith.constant 5.000000e-01 : f32
    %529 = vector.broadcast %cst_195 : f32 to vector<2x64xf32>
    %530 = arith.mulf %529, %528 : vector<2x64xf32>
    %cst_196 = arith.constant 5.000000e-01 : f32
    %531 = vector.broadcast %cst_196 : f32 to vector<2x64xf32>
    %532 = arith.addf %530, %531 : vector<2x64xf32>
    %533 = vector.extract_strided_slice %524 {offsets = [0, 64], sizes = [2, 64], strides = [1, 1]} : vector<2x256xf32> to vector<2x64xf32>
    %cst_197 = arith.constant 5.000000e-01 : f32
    %534 = vector.broadcast %cst_197 : f32 to vector<2x64xf32>
    %535 = arith.mulf %534, %533 : vector<2x64xf32>
    %536 = math.tanh %535 : vector<2x64xf32>
    %cst_198 = arith.constant 5.000000e-01 : f32
    %537 = vector.broadcast %cst_198 : f32 to vector<2x64xf32>
    %538 = arith.mulf %537, %536 : vector<2x64xf32>
    %cst_199 = arith.constant 5.000000e-01 : f32
    %539 = vector.broadcast %cst_199 : f32 to vector<2x64xf32>
    %540 = arith.addf %538, %539 : vector<2x64xf32>
    %541 = vector.extract_strided_slice %524 {offsets = [0, 128], sizes = [2, 64], strides = [1, 1]} : vector<2x256xf32> to vector<2x64xf32>
    %542 = math.tanh %541 : vector<2x64xf32>
    %543 = vector.extract_strided_slice %524 {offsets = [0, 192], sizes = [2, 64], strides = [1, 1]} : vector<2x256xf32> to vector<2x64xf32>
    %cst_200 = arith.constant 5.000000e-01 : f32
    %544 = vector.broadcast %cst_200 : f32 to vector<2x64xf32>
    %545 = arith.mulf %544, %543 : vector<2x64xf32>
    %546 = math.tanh %545 : vector<2x64xf32>
    %cst_201 = arith.constant 5.000000e-01 : f32
    %547 = vector.broadcast %cst_201 : f32 to vector<2x64xf32>
    %548 = arith.mulf %547, %546 : vector<2x64xf32>
    %cst_202 = arith.constant 5.000000e-01 : f32
    %549 = vector.broadcast %cst_202 : f32 to vector<2x64xf32>
    %550 = arith.addf %548, %549 : vector<2x64xf32>
    %551 = arith.mulf %540, %516 : vector<2x64xf32>
    %552 = arith.mulf %532, %542 : vector<2x64xf32>
    %553 = arith.addf %551, %552 : vector<2x64xf32>
    %554 = math.tanh %553 : vector<2x64xf32>
    %555 = arith.mulf %550, %554 : vector<2x64xf32>
    %556 = arith.addf %517, %555 : vector<2x64xf32>
    %557 = vector.extract_strided_slice %513 {offsets = [2, 0], sizes = [2, 256], strides = [1, 1]} : vector<16x256xf32> to vector<2x256xf32>
    %558 = vector.extract_strided_slice %513 {offsets = [12, 0], sizes = [2, 256], strides = [1, 1]} : vector<16x256xf32> to vector<2x256xf32>
    %cst_203 = arith.constant dense<0.000000e+00> : vector<2x256xf32>
    %559 = tpu.matmul %555, %514, %cst_203 {dimension_numbers = #tpu.dot_dimension_numbers<[1], [0], [0], [1], [0, 0, 1, 1], [], []>} : vector<2x64xf32>, vector<64x256xf32>, vector<2x256xf32> -> vector<2x256xf32>
    %560 = vector.shape_cast %162 : vector<1x256xi1> to vector<1x256xi1>
    %561 = vector.broadcast %560 : vector<1x256xi1> to vector<2x256xi1>
    %562 = arith.select %561, %557, %558 : vector<2x256xi1>, vector<2x256xf32>
    %563 = arith.addf %559, %562 : vector<2x256xf32>
    %564 = vector.extract_strided_slice %563 {offsets = [0, 0], sizes = [2, 64], strides = [1, 1]} : vector<2x256xf32> to vector<2x64xf32>
    %cst_204 = arith.constant 5.000000e-01 : f32
    %565 = vector.broadcast %cst_204 : f32 to vector<2x64xf32>
    %566 = arith.mulf %565, %564 : vector<2x64xf32>
    %567 = math.tanh %566 : vector<2x64xf32>
    %cst_205 = arith.constant 5.000000e-01 : f32
    %568 = vector.broadcast %cst_205 : f32 to vector<2x64xf32>
    %569 = arith.mulf %568, %567 : vector<2x64xf32>
    %cst_206 = arith.constant 5.000000e-01 : f32
    %570 = vector.broadcast %cst_206 : f32 to vector<2x64xf32>
    %571 = arith.addf %569, %570 : vector<2x64xf32>
    %572 = vector.extract_strided_slice %563 {offsets = [0, 64], sizes = [2, 64], strides = [1, 1]} : vector<2x256xf32> to vector<2x64xf32>
    %cst_207 = arith.constant 5.000000e-01 : f32
    %573 = vector.broadcast %cst_207 : f32 to vector<2x64xf32>
    %574 = arith.mulf %573, %572 : vector<2x64xf32>
    %575 = math.tanh %574 : vector<2x64xf32>
    %cst_208 = arith.constant 5.000000e-01 : f32
    %576 = vector.broadcast %cst_208 : f32 to vector<2x64xf32>
    %577 = arith.mulf %576, %575 : vector<2x64xf32>
    %cst_209 = arith.constant 5.000000e-01 : f32
    %578 = vector.broadcast %cst_209 : f32 to vector<2x64xf32>
    %579 = arith.addf %577, %578 : vector<2x64xf32>
    %580 = vector.extract_strided_slice %563 {offsets = [0, 128], sizes = [2, 64], strides = [1, 1]} : vector<2x256xf32> to vector<2x64xf32>
    %581 = math.tanh %580 : vector<2x64xf32>
    %582 = vector.extract_strided_slice %563 {offsets = [0, 192], sizes = [2, 64], strides = [1, 1]} : vector<2x256xf32> to vector<2x64xf32>
    %cst_210 = arith.constant 5.000000e-01 : f32
    %583 = vector.broadcast %cst_210 : f32 to vector<2x64xf32>
    %584 = arith.mulf %583, %582 : vector<2x64xf32>
    %585 = math.tanh %584 : vector<2x64xf32>
    %cst_211 = arith.constant 5.000000e-01 : f32
    %586 = vector.broadcast %cst_211 : f32 to vector<2x64xf32>
    %587 = arith.mulf %586, %585 : vector<2x64xf32>
    %cst_212 = arith.constant 5.000000e-01 : f32
    %588 = vector.broadcast %cst_212 : f32 to vector<2x64xf32>
    %589 = arith.addf %587, %588 : vector<2x64xf32>
    %590 = arith.mulf %579, %553 : vector<2x64xf32>
    %591 = arith.mulf %571, %581 : vector<2x64xf32>
    %592 = arith.addf %590, %591 : vector<2x64xf32>
    %593 = math.tanh %592 : vector<2x64xf32>
    %594 = arith.mulf %589, %593 : vector<2x64xf32>
    %595 = arith.addf %556, %594 : vector<2x64xf32>
    %596 = vector.extract_strided_slice %513 {offsets = [4, 0], sizes = [2, 256], strides = [1, 1]} : vector<16x256xf32> to vector<2x256xf32>
    %597 = vector.extract_strided_slice %513 {offsets = [10, 0], sizes = [2, 256], strides = [1, 1]} : vector<16x256xf32> to vector<2x256xf32>
    %cst_213 = arith.constant dense<0.000000e+00> : vector<2x256xf32>
    %598 = tpu.matmul %594, %514, %cst_213 {dimension_numbers = #tpu.dot_dimension_numbers<[1], [0], [0], [1], [0, 0, 1, 1], [], []>} : vector<2x64xf32>, vector<64x256xf32>, vector<2x256xf32> -> vector<2x256xf32>
    %599 = vector.shape_cast %162 : vector<1x256xi1> to vector<1x256xi1>
    %600 = vector.broadcast %599 : vector<1x256xi1> to vector<2x256xi1>
    %601 = arith.select %600, %596, %597 : vector<2x256xi1>, vector<2x256xf32>
    %602 = arith.addf %598, %601 : vector<2x256xf32>
    %603 = vector.extract_strided_slice %602 {offsets = [0, 0], sizes = [2, 64], strides = [1, 1]} : vector<2x256xf32> to vector<2x64xf32>
    %cst_214 = arith.constant 5.000000e-01 : f32
    %604 = vector.broadcast %cst_214 : f32 to vector<2x64xf32>
    %605 = arith.mulf %604, %603 : vector<2x64xf32>
    %606 = math.tanh %605 : vector<2x64xf32>
    %cst_215 = arith.constant 5.000000e-01 : f32
    %607 = vector.broadcast %cst_215 : f32 to vector<2x64xf32>
    %608 = arith.mulf %607, %606 : vector<2x64xf32>
    %cst_216 = arith.constant 5.000000e-01 : f32
    %609 = vector.broadcast %cst_216 : f32 to vector<2x64xf32>
    %610 = arith.addf %608, %609 : vector<2x64xf32>
    %611 = vector.extract_strided_slice %602 {offsets = [0, 64], sizes = [2, 64], strides = [1, 1]} : vector<2x256xf32> to vector<2x64xf32>
    %cst_217 = arith.constant 5.000000e-01 : f32
    %612 = vector.broadcast %cst_217 : f32 to vector<2x64xf32>
    %613 = arith.mulf %612, %611 : vector<2x64xf32>
    %614 = math.tanh %613 : vector<2x64xf32>
    %cst_218 = arith.constant 5.000000e-01 : f32
    %615 = vector.broadcast %cst_218 : f32 to vector<2x64xf32>
    %616 = arith.mulf %615, %614 : vector<2x64xf32>
    %cst_219 = arith.constant 5.000000e-01 : f32
    %617 = vector.broadcast %cst_219 : f32 to vector<2x64xf32>
    %618 = arith.addf %616, %617 : vector<2x64xf32>
    %619 = vector.extract_strided_slice %602 {offsets = [0, 128], sizes = [2, 64], strides = [1, 1]} : vector<2x256xf32> to vector<2x64xf32>
    %620 = math.tanh %619 : vector<2x64xf32>
    %621 = vector.extract_strided_slice %602 {offsets = [0, 192], sizes = [2, 64], strides = [1, 1]} : vector<2x256xf32> to vector<2x64xf32>
    %cst_220 = arith.constant 5.000000e-01 : f32
    %622 = vector.broadcast %cst_220 : f32 to vector<2x64xf32>
    %623 = arith.mulf %622, %621 : vector<2x64xf32>
    %624 = math.tanh %623 : vector<2x64xf32>
    %cst_221 = arith.constant 5.000000e-01 : f32
    %625 = vector.broadcast %cst_221 : f32 to vector<2x64xf32>
    %626 = arith.mulf %625, %624 : vector<2x64xf32>
    %cst_222 = arith.constant 5.000000e-01 : f32
    %627 = vector.broadcast %cst_222 : f32 to vector<2x64xf32>
    %628 = arith.addf %626, %627 : vector<2x64xf32>
    %629 = arith.mulf %618, %592 : vector<2x64xf32>
    %630 = arith.mulf %610, %620 : vector<2x64xf32>
    %631 = arith.addf %629, %630 : vector<2x64xf32>
    %632 = math.tanh %631 : vector<2x64xf32>
    %633 = arith.mulf %628, %632 : vector<2x64xf32>
    %634 = arith.addf %595, %633 : vector<2x64xf32>
    %635 = vector.extract_strided_slice %513 {offsets = [6, 0], sizes = [2, 256], strides = [1, 1]} : vector<16x256xf32> to vector<2x256xf32>
    %636 = vector.extract_strided_slice %513 {offsets = [8, 0], sizes = [2, 256], strides = [1, 1]} : vector<16x256xf32> to vector<2x256xf32>
    %cst_223 = arith.constant dense<0.000000e+00> : vector<2x256xf32>
    %637 = tpu.matmul %633, %514, %cst_223 {dimension_numbers = #tpu.dot_dimension_numbers<[1], [0], [0], [1], [0, 0, 1, 1], [], []>} : vector<2x64xf32>, vector<64x256xf32>, vector<2x256xf32> -> vector<2x256xf32>
    %638 = vector.shape_cast %162 : vector<1x256xi1> to vector<1x256xi1>
    %639 = vector.broadcast %638 : vector<1x256xi1> to vector<2x256xi1>
    %640 = arith.select %639, %635, %636 : vector<2x256xi1>, vector<2x256xf32>
    %641 = arith.addf %637, %640 : vector<2x256xf32>
    %642 = vector.extract_strided_slice %641 {offsets = [0, 0], sizes = [2, 64], strides = [1, 1]} : vector<2x256xf32> to vector<2x64xf32>
    %cst_224 = arith.constant 5.000000e-01 : f32
    %643 = vector.broadcast %cst_224 : f32 to vector<2x64xf32>
    %644 = arith.mulf %643, %642 : vector<2x64xf32>
    %645 = math.tanh %644 : vector<2x64xf32>
    %cst_225 = arith.constant 5.000000e-01 : f32
    %646 = vector.broadcast %cst_225 : f32 to vector<2x64xf32>
    %647 = arith.mulf %646, %645 : vector<2x64xf32>
    %cst_226 = arith.constant 5.000000e-01 : f32
    %648 = vector.broadcast %cst_226 : f32 to vector<2x64xf32>
    %649 = arith.addf %647, %648 : vector<2x64xf32>
    %650 = vector.extract_strided_slice %641 {offsets = [0, 64], sizes = [2, 64], strides = [1, 1]} : vector<2x256xf32> to vector<2x64xf32>
    %cst_227 = arith.constant 5.000000e-01 : f32
    %651 = vector.broadcast %cst_227 : f32 to vector<2x64xf32>
    %652 = arith.mulf %651, %650 : vector<2x64xf32>
    %653 = math.tanh %652 : vector<2x64xf32>
    %cst_228 = arith.constant 5.000000e-01 : f32
    %654 = vector.broadcast %cst_228 : f32 to vector<2x64xf32>
    %655 = arith.mulf %654, %653 : vector<2x64xf32>
    %cst_229 = arith.constant 5.000000e-01 : f32
    %656 = vector.broadcast %cst_229 : f32 to vector<2x64xf32>
    %657 = arith.addf %655, %656 : vector<2x64xf32>
    %658 = vector.extract_strided_slice %641 {offsets = [0, 128], sizes = [2, 64], strides = [1, 1]} : vector<2x256xf32> to vector<2x64xf32>
    %659 = math.tanh %658 : vector<2x64xf32>
    %660 = vector.extract_strided_slice %641 {offsets = [0, 192], sizes = [2, 64], strides = [1, 1]} : vector<2x256xf32> to vector<2x64xf32>
    %cst_230 = arith.constant 5.000000e-01 : f32
    %661 = vector.broadcast %cst_230 : f32 to vector<2x64xf32>
    %662 = arith.mulf %661, %660 : vector<2x64xf32>
    %663 = math.tanh %662 : vector<2x64xf32>
    %cst_231 = arith.constant 5.000000e-01 : f32
    %664 = vector.broadcast %cst_231 : f32 to vector<2x64xf32>
    %665 = arith.mulf %664, %663 : vector<2x64xf32>
    %cst_232 = arith.constant 5.000000e-01 : f32
    %666 = vector.broadcast %cst_232 : f32 to vector<2x64xf32>
    %667 = arith.addf %665, %666 : vector<2x64xf32>
    %668 = arith.mulf %657, %631 : vector<2x64xf32>
    %669 = arith.mulf %649, %659 : vector<2x64xf32>
    %670 = arith.addf %668, %669 : vector<2x64xf32>
    %671 = math.tanh %670 : vector<2x64xf32>
    %672 = arith.mulf %667, %671 : vector<2x64xf32>
    %673 = arith.addf %634, %672 : vector<2x64xf32>
    %674 = vector.extract_strided_slice %513 {offsets = [8, 0], sizes = [2, 256], strides = [1, 1]} : vector<16x256xf32> to vector<2x256xf32>
    %675 = vector.extract_strided_slice %513 {offsets = [6, 0], sizes = [2, 256], strides = [1, 1]} : vector<16x256xf32> to vector<2x256xf32>
    %cst_233 = arith.constant dense<0.000000e+00> : vector<2x256xf32>
    %676 = tpu.matmul %672, %514, %cst_233 {dimension_numbers = #tpu.dot_dimension_numbers<[1], [0], [0], [1], [0, 0, 1, 1], [], []>} : vector<2x64xf32>, vector<64x256xf32>, vector<2x256xf32> -> vector<2x256xf32>
    %677 = vector.shape_cast %162 : vector<1x256xi1> to vector<1x256xi1>
    %678 = vector.broadcast %677 : vector<1x256xi1> to vector<2x256xi1>
    %679 = arith.select %678, %674, %675 : vector<2x256xi1>, vector<2x256xf32>
    %680 = arith.addf %676, %679 : vector<2x256xf32>
    %681 = vector.extract_strided_slice %680 {offsets = [0, 0], sizes = [2, 64], strides = [1, 1]} : vector<2x256xf32> to vector<2x64xf32>
    %cst_234 = arith.constant 5.000000e-01 : f32
    %682 = vector.broadcast %cst_234 : f32 to vector<2x64xf32>
    %683 = arith.mulf %682, %681 : vector<2x64xf32>
    %684 = math.tanh %683 : vector<2x64xf32>
    %cst_235 = arith.constant 5.000000e-01 : f32
    %685 = vector.broadcast %cst_235 : f32 to vector<2x64xf32>
    %686 = arith.mulf %685, %684 : vector<2x64xf32>
    %cst_236 = arith.constant 5.000000e-01 : f32
    %687 = vector.broadcast %cst_236 : f32 to vector<2x64xf32>
    %688 = arith.addf %686, %687 : vector<2x64xf32>
    %689 = vector.extract_strided_slice %680 {offsets = [0, 64], sizes = [2, 64], strides = [1, 1]} : vector<2x256xf32> to vector<2x64xf32>
    %cst_237 = arith.constant 5.000000e-01 : f32
    %690 = vector.broadcast %cst_237 : f32 to vector<2x64xf32>
    %691 = arith.mulf %690, %689 : vector<2x64xf32>
    %692 = math.tanh %691 : vector<2x64xf32>
    %cst_238 = arith.constant 5.000000e-01 : f32
    %693 = vector.broadcast %cst_238 : f32 to vector<2x64xf32>
    %694 = arith.mulf %693, %692 : vector<2x64xf32>
    %cst_239 = arith.constant 5.000000e-01 : f32
    %695 = vector.broadcast %cst_239 : f32 to vector<2x64xf32>
    %696 = arith.addf %694, %695 : vector<2x64xf32>
    %697 = vector.extract_strided_slice %680 {offsets = [0, 128], sizes = [2, 64], strides = [1, 1]} : vector<2x256xf32> to vector<2x64xf32>
    %698 = math.tanh %697 : vector<2x64xf32>
    %699 = vector.extract_strided_slice %680 {offsets = [0, 192], sizes = [2, 64], strides = [1, 1]} : vector<2x256xf32> to vector<2x64xf32>
    %cst_240 = arith.constant 5.000000e-01 : f32
    %700 = vector.broadcast %cst_240 : f32 to vector<2x64xf32>
    %701 = arith.mulf %700, %699 : vector<2x64xf32>
    %702 = math.tanh %701 : vector<2x64xf32>
    %cst_241 = arith.constant 5.000000e-01 : f32
    %703 = vector.broadcast %cst_241 : f32 to vector<2x64xf32>
    %704 = arith.mulf %703, %702 : vector<2x64xf32>
    %cst_242 = arith.constant 5.000000e-01 : f32
    %705 = vector.broadcast %cst_242 : f32 to vector<2x64xf32>
    %706 = arith.addf %704, %705 : vector<2x64xf32>
    %707 = arith.mulf %696, %670 : vector<2x64xf32>
    %708 = arith.mulf %688, %698 : vector<2x64xf32>
    %709 = arith.addf %707, %708 : vector<2x64xf32>
    %710 = math.tanh %709 : vector<2x64xf32>
    %711 = arith.mulf %706, %710 : vector<2x64xf32>
    %712 = arith.addf %673, %711 : vector<2x64xf32>
    %713 = vector.extract_strided_slice %513 {offsets = [10, 0], sizes = [2, 256], strides = [1, 1]} : vector<16x256xf32> to vector<2x256xf32>
    %714 = vector.extract_strided_slice %513 {offsets = [4, 0], sizes = [2, 256], strides = [1, 1]} : vector<16x256xf32> to vector<2x256xf32>
    %cst_243 = arith.constant dense<0.000000e+00> : vector<2x256xf32>
    %715 = tpu.matmul %711, %514, %cst_243 {dimension_numbers = #tpu.dot_dimension_numbers<[1], [0], [0], [1], [0, 0, 1, 1], [], []>} : vector<2x64xf32>, vector<64x256xf32>, vector<2x256xf32> -> vector<2x256xf32>
    %716 = vector.shape_cast %162 : vector<1x256xi1> to vector<1x256xi1>
    %717 = vector.broadcast %716 : vector<1x256xi1> to vector<2x256xi1>
    %718 = arith.select %717, %713, %714 : vector<2x256xi1>, vector<2x256xf32>
    %719 = arith.addf %715, %718 : vector<2x256xf32>
    %720 = vector.extract_strided_slice %719 {offsets = [0, 0], sizes = [2, 64], strides = [1, 1]} : vector<2x256xf32> to vector<2x64xf32>
    %cst_244 = arith.constant 5.000000e-01 : f32
    %721 = vector.broadcast %cst_244 : f32 to vector<2x64xf32>
    %722 = arith.mulf %721, %720 : vector<2x64xf32>
    %723 = math.tanh %722 : vector<2x64xf32>
    %cst_245 = arith.constant 5.000000e-01 : f32
    %724 = vector.broadcast %cst_245 : f32 to vector<2x64xf32>
    %725 = arith.mulf %724, %723 : vector<2x64xf32>
    %cst_246 = arith.constant 5.000000e-01 : f32
    %726 = vector.broadcast %cst_246 : f32 to vector<2x64xf32>
    %727 = arith.addf %725, %726 : vector<2x64xf32>
    %728 = vector.extract_strided_slice %719 {offsets = [0, 64], sizes = [2, 64], strides = [1, 1]} : vector<2x256xf32> to vector<2x64xf32>
    %cst_247 = arith.constant 5.000000e-01 : f32
    %729 = vector.broadcast %cst_247 : f32 to vector<2x64xf32>
    %730 = arith.mulf %729, %728 : vector<2x64xf32>
    %731 = math.tanh %730 : vector<2x64xf32>
    %cst_248 = arith.constant 5.000000e-01 : f32
    %732 = vector.broadcast %cst_248 : f32 to vector<2x64xf32>
    %733 = arith.mulf %732, %731 : vector<2x64xf32>
    %cst_249 = arith.constant 5.000000e-01 : f32
    %734 = vector.broadcast %cst_249 : f32 to vector<2x64xf32>
    %735 = arith.addf %733, %734 : vector<2x64xf32>
    %736 = vector.extract_strided_slice %719 {offsets = [0, 128], sizes = [2, 64], strides = [1, 1]} : vector<2x256xf32> to vector<2x64xf32>
    %737 = math.tanh %736 : vector<2x64xf32>
    %738 = vector.extract_strided_slice %719 {offsets = [0, 192], sizes = [2, 64], strides = [1, 1]} : vector<2x256xf32> to vector<2x64xf32>
    %cst_250 = arith.constant 5.000000e-01 : f32
    %739 = vector.broadcast %cst_250 : f32 to vector<2x64xf32>
    %740 = arith.mulf %739, %738 : vector<2x64xf32>
    %741 = math.tanh %740 : vector<2x64xf32>
    %cst_251 = arith.constant 5.000000e-01 : f32
    %742 = vector.broadcast %cst_251 : f32 to vector<2x64xf32>
    %743 = arith.mulf %742, %741 : vector<2x64xf32>
    %cst_252 = arith.constant 5.000000e-01 : f32
    %744 = vector.broadcast %cst_252 : f32 to vector<2x64xf32>
    %745 = arith.addf %743, %744 : vector<2x64xf32>
    %746 = arith.mulf %735, %709 : vector<2x64xf32>
    %747 = arith.mulf %727, %737 : vector<2x64xf32>
    %748 = arith.addf %746, %747 : vector<2x64xf32>
    %749 = math.tanh %748 : vector<2x64xf32>
    %750 = arith.mulf %745, %749 : vector<2x64xf32>
    %751 = arith.addf %712, %750 : vector<2x64xf32>
    %752 = vector.extract_strided_slice %513 {offsets = [12, 0], sizes = [2, 256], strides = [1, 1]} : vector<16x256xf32> to vector<2x256xf32>
    %753 = vector.extract_strided_slice %513 {offsets = [2, 0], sizes = [2, 256], strides = [1, 1]} : vector<16x256xf32> to vector<2x256xf32>
    %cst_253 = arith.constant dense<0.000000e+00> : vector<2x256xf32>
    %754 = tpu.matmul %750, %514, %cst_253 {dimension_numbers = #tpu.dot_dimension_numbers<[1], [0], [0], [1], [0, 0, 1, 1], [], []>} : vector<2x64xf32>, vector<64x256xf32>, vector<2x256xf32> -> vector<2x256xf32>
    %755 = vector.shape_cast %162 : vector<1x256xi1> to vector<1x256xi1>
    %756 = vector.broadcast %755 : vector<1x256xi1> to vector<2x256xi1>
    %757 = arith.select %756, %752, %753 : vector<2x256xi1>, vector<2x256xf32>
    %758 = arith.addf %754, %757 : vector<2x256xf32>
    %759 = vector.extract_strided_slice %758 {offsets = [0, 0], sizes = [2, 64], strides = [1, 1]} : vector<2x256xf32> to vector<2x64xf32>
    %cst_254 = arith.constant 5.000000e-01 : f32
    %760 = vector.broadcast %cst_254 : f32 to vector<2x64xf32>
    %761 = arith.mulf %760, %759 : vector<2x64xf32>
    %762 = math.tanh %761 : vector<2x64xf32>
    %cst_255 = arith.constant 5.000000e-01 : f32
    %763 = vector.broadcast %cst_255 : f32 to vector<2x64xf32>
    %764 = arith.mulf %763, %762 : vector<2x64xf32>
    %cst_256 = arith.constant 5.000000e-01 : f32
    %765 = vector.broadcast %cst_256 : f32 to vector<2x64xf32>
    %766 = arith.addf %764, %765 : vector<2x64xf32>
    %767 = vector.extract_strided_slice %758 {offsets = [0, 64], sizes = [2, 64], strides = [1, 1]} : vector<2x256xf32> to vector<2x64xf32>
    %cst_257 = arith.constant 5.000000e-01 : f32
    %768 = vector.broadcast %cst_257 : f32 to vector<2x64xf32>
    %769 = arith.mulf %768, %767 : vector<2x64xf32>
    %770 = math.tanh %769 : vector<2x64xf32>
    %cst_258 = arith.constant 5.000000e-01 : f32
    %771 = vector.broadcast %cst_258 : f32 to vector<2x64xf32>
    %772 = arith.mulf %771, %770 : vector<2x64xf32>
    %cst_259 = arith.constant 5.000000e-01 : f32
    %773 = vector.broadcast %cst_259 : f32 to vector<2x64xf32>
    %774 = arith.addf %772, %773 : vector<2x64xf32>
    %775 = vector.extract_strided_slice %758 {offsets = [0, 128], sizes = [2, 64], strides = [1, 1]} : vector<2x256xf32> to vector<2x64xf32>
    %776 = math.tanh %775 : vector<2x64xf32>
    %777 = vector.extract_strided_slice %758 {offsets = [0, 192], sizes = [2, 64], strides = [1, 1]} : vector<2x256xf32> to vector<2x64xf32>
    %cst_260 = arith.constant 5.000000e-01 : f32
    %778 = vector.broadcast %cst_260 : f32 to vector<2x64xf32>
    %779 = arith.mulf %778, %777 : vector<2x64xf32>
    %780 = math.tanh %779 : vector<2x64xf32>
    %cst_261 = arith.constant 5.000000e-01 : f32
    %781 = vector.broadcast %cst_261 : f32 to vector<2x64xf32>
    %782 = arith.mulf %781, %780 : vector<2x64xf32>
    %cst_262 = arith.constant 5.000000e-01 : f32
    %783 = vector.broadcast %cst_262 : f32 to vector<2x64xf32>
    %784 = arith.addf %782, %783 : vector<2x64xf32>
    %785 = arith.mulf %774, %748 : vector<2x64xf32>
    %786 = arith.mulf %766, %776 : vector<2x64xf32>
    %787 = arith.addf %785, %786 : vector<2x64xf32>
    %788 = math.tanh %787 : vector<2x64xf32>
    %789 = arith.mulf %784, %788 : vector<2x64xf32>
    %790 = arith.addf %751, %789 : vector<2x64xf32>
    %791 = vector.extract_strided_slice %513 {offsets = [14, 0], sizes = [2, 256], strides = [1, 1]} : vector<16x256xf32> to vector<2x256xf32>
    %792 = vector.extract_strided_slice %513 {offsets = [0, 0], sizes = [2, 256], strides = [1, 1]} : vector<16x256xf32> to vector<2x256xf32>
    %cst_263 = arith.constant dense<0.000000e+00> : vector<2x256xf32>
    %793 = tpu.matmul %789, %514, %cst_263 {dimension_numbers = #tpu.dot_dimension_numbers<[1], [0], [0], [1], [0, 0, 1, 1], [], []>} : vector<2x64xf32>, vector<64x256xf32>, vector<2x256xf32> -> vector<2x256xf32>
    %794 = vector.shape_cast %162 : vector<1x256xi1> to vector<1x256xi1>
    %795 = vector.broadcast %794 : vector<1x256xi1> to vector<2x256xi1>
    %796 = arith.select %795, %791, %792 : vector<2x256xi1>, vector<2x256xf32>
    %797 = arith.addf %793, %796 : vector<2x256xf32>
    %798 = vector.extract_strided_slice %797 {offsets = [0, 0], sizes = [2, 64], strides = [1, 1]} : vector<2x256xf32> to vector<2x64xf32>
    %cst_264 = arith.constant 5.000000e-01 : f32
    %799 = vector.broadcast %cst_264 : f32 to vector<2x64xf32>
    %800 = arith.mulf %799, %798 : vector<2x64xf32>
    %801 = math.tanh %800 : vector<2x64xf32>
    %cst_265 = arith.constant 5.000000e-01 : f32
    %802 = vector.broadcast %cst_265 : f32 to vector<2x64xf32>
    %803 = arith.mulf %802, %801 : vector<2x64xf32>
    %cst_266 = arith.constant 5.000000e-01 : f32
    %804 = vector.broadcast %cst_266 : f32 to vector<2x64xf32>
    %805 = arith.addf %803, %804 : vector<2x64xf32>
    %806 = vector.extract_strided_slice %797 {offsets = [0, 64], sizes = [2, 64], strides = [1, 1]} : vector<2x256xf32> to vector<2x64xf32>
    %cst_267 = arith.constant 5.000000e-01 : f32
    %807 = vector.broadcast %cst_267 : f32 to vector<2x64xf32>
    %808 = arith.mulf %807, %806 : vector<2x64xf32>
    %809 = math.tanh %808 : vector<2x64xf32>
    %cst_268 = arith.constant 5.000000e-01 : f32
    %810 = vector.broadcast %cst_268 : f32 to vector<2x64xf32>
    %811 = arith.mulf %810, %809 : vector<2x64xf32>
    %cst_269 = arith.constant 5.000000e-01 : f32
    %812 = vector.broadcast %cst_269 : f32 to vector<2x64xf32>
    %813 = arith.addf %811, %812 : vector<2x64xf32>
    %814 = vector.extract_strided_slice %797 {offsets = [0, 128], sizes = [2, 64], strides = [1, 1]} : vector<2x256xf32> to vector<2x64xf32>
    %815 = math.tanh %814 : vector<2x64xf32>
    %816 = vector.extract_strided_slice %797 {offsets = [0, 192], sizes = [2, 64], strides = [1, 1]} : vector<2x256xf32> to vector<2x64xf32>
    %cst_270 = arith.constant 5.000000e-01 : f32
    %817 = vector.broadcast %cst_270 : f32 to vector<2x64xf32>
    %818 = arith.mulf %817, %816 : vector<2x64xf32>
    %819 = math.tanh %818 : vector<2x64xf32>
    %cst_271 = arith.constant 5.000000e-01 : f32
    %820 = vector.broadcast %cst_271 : f32 to vector<2x64xf32>
    %821 = arith.mulf %820, %819 : vector<2x64xf32>
    %cst_272 = arith.constant 5.000000e-01 : f32
    %822 = vector.broadcast %cst_272 : f32 to vector<2x64xf32>
    %823 = arith.addf %821, %822 : vector<2x64xf32>
    %824 = arith.mulf %813, %787 : vector<2x64xf32>
    %825 = arith.mulf %805, %815 : vector<2x64xf32>
    %826 = arith.addf %824, %825 : vector<2x64xf32>
    %827 = math.tanh %826 : vector<2x64xf32>
    %828 = arith.mulf %823, %827 : vector<2x64xf32>
    %829 = arith.addf %790, %828 : vector<2x64xf32>
    %830 = vector.extract_strided_slice %829 {offsets = [0, 0], sizes = [2, 32], strides = [1, 1]} : vector<2x64xf32> to vector<2x32xf32>
    %831 = vector.extract_strided_slice %829 {offsets = [0, 32], sizes = [2, 32], strides = [1, 1]} : vector<2x64xf32> to vector<2x32xf32>
    %832 = arith.addf %830, %831 : vector<2x32xf32>
    %cst_273 = arith.constant 1.250000e-01 : f32
    %833 = vector.broadcast %cst_273 : f32 to vector<2x32xf32>
    %834 = arith.mulf %832, %833 : vector<2x32xf32>
    %c0_274 = arith.constant 0 : index
    %c0_275 = arith.constant 0 : index
    %835 = vector.load %arg24[%c0_274, %c0_275] : memref<32x8xf32, #tpu.memory_space<vmem>>, vector<32x8xf32>
    %cst_276 = arith.constant dense<0.000000e+00> : vector<2x8xf32>
    %836 = tpu.matmul %143, %835, %cst_276 {dimension_numbers = #tpu.dot_dimension_numbers<[1], [0], [0], [1], [0, 0, 1, 1], [], []>} : vector<2x32xf32>, vector<32x8xf32>, vector<2x8xf32> -> vector<2x8xf32>
    %c0_277 = arith.constant 0 : index
    %c0_278 = arith.constant 0 : index
    %837 = vector.load %arg25[%c0_277, %c0_278] : memref<32x8xf32, #tpu.memory_space<vmem>>, vector<32x8xf32>
    %cst_279 = arith.constant dense<0.000000e+00> : vector<2x8xf32>
    %838 = tpu.matmul %834, %837, %cst_279 {dimension_numbers = #tpu.dot_dimension_numbers<[1], [0], [0], [1], [0, 0, 1, 1], [], []>} : vector<2x32xf32>, vector<32x8xf32>, vector<2x8xf32> -> vector<2x8xf32>
    %839 = arith.addf %836, %838 : vector<2x8xf32>
    %cst_280 = arith.constant dense<0.000000e+00> : vector<8xf32>
    %840 = vector.multi_reduction <add>, %839, %cst_280 [0] : vector<2x8xf32> to vector<8xf32>
    %841 = vector.shape_cast %840 : vector<8xf32> to vector<1x8xf32>
    %cst_281 = arith.constant 2.000000e+00 : f32
    %842 = vector.broadcast %cst_281 : f32 to vector<1x8xf32>
    %843 = arith.divf %841, %842 : vector<1x8xf32>
    %844 = vector.broadcast %843 : vector<1x8xf32> to vector<2x8xf32>
    %845 = arith.subf %839, %844 : vector<2x8xf32>
    %846 = arith.mulf %845, %845 : vector<2x8xf32>
    %cst_282 = arith.constant dense<0.000000e+00> : vector<8xf32>
    %847 = vector.multi_reduction <add>, %846, %cst_282 [0] : vector<2x8xf32> to vector<8xf32>
    %848 = vector.shape_cast %847 : vector<8xf32> to vector<1x8xf32>
    %cst_283 = arith.constant 2.000000e+00 : f32
    %849 = vector.broadcast %cst_283 : f32 to vector<1x8xf32>
    %850 = arith.divf %848, %849 : vector<1x8xf32>
    %cst_284 = arith.constant 9.99999974E-6 : f32
    %851 = vector.broadcast %cst_284 : f32 to vector<1x8xf32>
    %852 = arith.addf %850, %851 : vector<1x8xf32>
    %853 = math.rsqrt %852 : vector<1x8xf32>
    %854 = vector.broadcast %853 : vector<1x8xf32> to vector<2x8xf32>
    %855 = arith.mulf %845, %854 : vector<2x8xf32>
    %c0_285 = arith.constant 0 : index
    %c0_286 = arith.constant 0 : index
    %856 = vector.load %arg26[%c0_285, %c0_286] : memref<1x8xf32, #tpu.memory_space<vmem>>, vector<1x8xf32>
    %857 = vector.broadcast %856 : vector<1x8xf32> to vector<2x8xf32>
    %858 = arith.mulf %855, %857 : vector<2x8xf32>
    %c0_287 = arith.constant 0 : index
    %c0_288 = arith.constant 0 : index
    %859 = vector.load %arg27[%c0_287, %c0_288] : memref<1x8xf32, #tpu.memory_space<vmem>>, vector<1x8xf32>
    %860 = vector.broadcast %859 : vector<1x8xf32> to vector<2x8xf32>
    %861 = arith.addf %858, %860 : vector<2x8xf32>
    %cst_289 = arith.constant dense<0xFF800000> : vector<2xf32>
    %862 = vector.multi_reduction <maximumf>, %861, %cst_289 [1] : vector<2x8xf32> to vector<2xf32>
    %863 = vector.shape_cast %862 : vector<2xf32> to vector<2x1xf32>
    %864 = vector.broadcast %863 : vector<2x1xf32> to vector<2x8xf32>
    %865 = arith.subf %861, %864 : vector<2x8xf32>
    %866 = math.exp %865 : vector<2x8xf32>
    %cst_290 = arith.constant dense<0.000000e+00> : vector<2xf32>
    %867 = vector.multi_reduction <add>, %866, %cst_290 [1] : vector<2x8xf32> to vector<2xf32>
    %868 = vector.shape_cast %867 : vector<2xf32> to vector<2x1xf32>
    %869 = vector.broadcast %868 : vector<2x1xf32> to vector<2x8xf32>
    %870 = arith.divf %866, %869 : vector<2x8xf32>
    %c0_291 = arith.constant 0 : index
    %c0_292 = arith.constant 0 : index
    %871 = vector.load %arg28[%c0_291, %c0_292] : memref<2x8xf32, #tpu.memory_space<vmem>>, vector<2x8xf32>
    tpu.vector_store %arg28[%c0_291, %c0_292], %870 {strides = array<i32>} : memref<2x8xf32, #tpu.memory_space<vmem>>, vector<2x8xf32>,
    return
  }
}

</mosaic_0001>

<llo_original>
// kernel: cat_encoder_forward.1
$region0: #{cat_encoder_forward.1}
  #allocation0 [shape = 'u32[]', space=smem, size = 0x4, offset = 0x4, fixed_abs, tag = 'smem constant byte address 0x4 - core index']
  #allocation1 [shape = 'u32[144,128]{1,0:T(1,128)}', space=vmem, size = 0x12000, scoped, tag = 'internal scratch']
  #allocation2 [shape = 'f32[16,64]{1,0:T(8,128)}', space=vmem, size = 0x2000, scoped, tag = 'scratch operand']
  %s0 = inlined_call_operand.vmem [shape: f32[32,4], index: 0, kind: input, shape index: {}]
  %s1 = inlined_call_operand.vmem [shape: f32[16,4], index: 1, kind: input, shape index: {}]
  %s2 = inlined_call_operand.vmem [shape: f32[32,32], index: 2, kind: input, shape index: {}]
  %s3 = inlined_call_operand.vmem [shape: f32[32,32], index: 3, kind: input, shape index: {}]
  %s4 = inlined_call_operand.vmem [shape: f32[32,1], index: 4, kind: input, shape index: {}]
  %s5 = inlined_call_operand.vmem [shape: f32[2,32], index: 5, kind: input, shape index: {}]
  %s6 = inlined_call_operand.vmem [shape: f32[4,96], index: 6, kind: input, shape index: {}]
  %s7 = inlined_call_operand.vmem [shape: f32[1,32], index: 7, kind: input, shape index: {}]
  %s8 = inlined_call_operand.vmem [shape: f32[1,32], index: 8, kind: input, shape index: {}]
  %s9 = inlined_call_operand.vmem [shape: f32[1,32], index: 9, kind: input, shape index: {}]
  %s10 = inlined_call_operand.vmem [shape: f32[32,96], index: 10, kind: input, shape index: {}]
  %s11 = inlined_call_operand.vmem [shape: f32[1,32], index: 11, kind: input, shape index: {}]
  %s12 = inlined_call_operand.vmem [shape: f32[1,32], index: 12, kind: input, shape index: {}]
  %s13 = inlined_call_operand.vmem [shape: f32[1,32], index: 13, kind: input, shape index: {}]
  %s14 = inlined_call_operand.vmem [shape: f32[32,96], index: 14, kind: input, shape index: {}]
  %s15 = inlined_call_operand.hbm [shape: f32[1,32], index: 15, kind: input, shape index: {}]
  %s16 = inlined_call_operand.hbm [shape: f32[1,32], index: 16, kind: input, shape index: {}]
  %s17 = inlined_call_operand.hbm [shape: f32[1,32], index: 17, kind: input, shape index: {}]
  %s18 = inlined_call_operand.hbm [shape: f32[4,256], index: 18, kind: input, shape index: {}]
  %s19 = inlined_call_operand.hbm [shape: f32[1,256], index: 19, kind: input, shape index: {}]
  %s20 = inlined_call_operand.vmem [shape: f32[64,256], index: 20, kind: input, shape index: {}]
  %s21 = inlined_call_operand.vmem [shape: f32[64,256], index: 21, kind: input, shape index: {}]
  %s22 = inlined_call_operand.hbm [shape: f32[1,256], index: 22, kind: input, shape index: {}]
  %s23 = inlined_call_operand.hbm [shape: f32[64,256], index: 23, kind: input, shape index: {}]
  %s24 = inlined_call_operand.vmem [shape: f32[32,8], index: 24, kind: input, shape index: {}]
  %s25 = inlined_call_operand.vmem [shape: f32[32,8], index: 25, kind: input, shape index: {}]
  %s26 = inlined_call_operand.hbm [shape: f32[1,8], index: 26, kind: input, shape index: {}]
  %s27 = inlined_call_operand.hbm [shape: f32[1,8], index: 27, kind: input, shape index: {}]
  %s28 = inlined_call_operand.hbm [shape: f32[2,8], index: 28, kind: output, shape index: {}]
  %s29 = sld [smem:[#allocation0]]
  $region158: #{cat_encoder_forward.1} parent=0
    _
  %s31 = ssub.s32 1, %s29
  %s32 = scalar_select 0, %s31, %s29
  $region1: #{cat_encoder_forward.1} parent=0
    #allocation3 [shape = 'u8[512]{0}', space=vmem, size = 0x400, scoped, tag = 'input window, operand 15, single buffered']
    #allocation4 [shape = 's32[1]{0}', space=sflag, size = 0x4, scoped, tag = 'scoped memory for cat_encoder_forward.1']
    #allocation5 [shape = 's32[1]{0}', space=sflag, size = 0x4, scoped, tag = 'scoped memory for cat_encoder_forward.1']
    #allocation6 [shape = 'u8[512]{0}', space=vmem, size = 0x400, scoped, tag = 'input window, operand 16, single buffered']
    #allocation7 [shape = 's32[1]{0}', space=sflag, size = 0x4, scoped, tag = 'scoped memory for cat_encoder_forward.1']
    #allocation8 [shape = 'u8[512]{0}', space=vmem, size = 0x400, scoped, tag = 'input window, operand 17, single buffered']
    #allocation9 [shape = 'u8[4096]{0}', space=vmem, size = 0x1000, scoped, tag = 'input window, operand 18, single buffered']
    #allocation10 [shape = 's32[1]{0}', space=sflag, size = 0x4, scoped, tag = 'scoped memory for cat_encoder_forward.1']
    #allocation11 [shape = 'u8[1024]{0}', space=vmem, size = 0x400, scoped, tag = 'input window, operand 19, single buffered']
    #allocation12 [shape = 'u8[1024]{0}', space=vmem, size = 0x400, scoped, tag = 'input window, operand 22, single buffered']
    #allocation13 [shape = 's32[1]{0}', space=sflag, size = 0x4, scoped, tag = 'scoped memory for cat_encoder_forward.1']
    #allocation14 [shape = 'u8[65536]{0}', space=vmem, size = 0x10000, scoped, tag = 'input window, operand 23, single buffered']
    #allocation15 [shape = 'u8[512]{0}', space=vmem, size = 0x400, scoped, tag = 'input window, operand 26, single buffered']
    #allocation16 [shape = 's32[1]{0}', space=sflag, size = 0x4, scoped, tag = 'scoped memory for cat_encoder_forward.1']
    #allocation17 [shape = 'u8[512]{0}', space=vmem, size = 0x400, scoped, tag = 'input window, operand 27, single buffered']
    #allocation18 [shape = 'u8[1024]{0}', space=vmem, size = 0x400, scoped, tag = 'output window, operand 0, single buffered']
    %33 = vsyncpa [#allocation4], 0
    %34 = vsyncpa [#allocation7], 0
    %35 = vsyncpa [#allocation10], 0
    %36 = vsyncpa [#allocation13], 0
    %37 = vsyncpa [#allocation16], 0
    %38 = vsyncpa [#allocation5], 0
    // Predicated region
    $region2: #{cat_encoder_forward.1} parent=1 // pred_check
      _
    $region3: #{cat_encoder_forward.1} parent=1 // pred_check_branch
      %40 = sbr.rel (0) target = $region5
    $region4: #{cat_encoder_forward.1} parent=1 // pred_region
      _
    $region5: #{cat_encoder_forward.1} parent=1 // pred_fallthru
      _
    // Predicated region
    $region6: #{cat_encoder_forward.1} parent=1 // pred_check
      _
    $region7: #{cat_encoder_forward.1} parent=1 // pred_check_branch
      %42 = sbr.rel (0) target = $region9
    $region8: #{cat_encoder_forward.1} parent=1 // pred_region
      _
    $region9: #{cat_encoder_forward.1} parent=1 // pred_fallthru
      _
    // Predicated region
    $region10: #{cat_encoder_forward.1} parent=1 // pred_check
      _
    $region11: #{cat_encoder_forward.1} parent=1 // pred_check_branch
      %44 = sbr.rel (0) target = $region13
    $region12: #{cat_encoder_forward.1} parent=1 // pred_region
      _
    $region13: #{cat_encoder_forward.1} parent=1 // pred_fallthru
      _
    // Predicated region
    $region14: #{cat_encoder_forward.1} parent=1 // pred_check
      _
    $region15: #{cat_encoder_forward.1} parent=1 // pred_check_branch
      %46 = sbr.rel (0) target = $region17
    $region16: #{cat_encoder_forward.1} parent=1 // pred_region
      _
    $region17: #{cat_encoder_forward.1} parent=1 // pred_fallthru
      _
    // Predicated region
    $region18: #{cat_encoder_forward.1} parent=1 // pred_check
      _
    $region19: #{cat_encoder_forward.1} parent=1 // pred_check_branch
      %48 = sbr.rel (0) target = $region21
    $region20: #{cat_encoder_forward.1} parent=1 // pred_region
      _
    $region21: #{cat_encoder_forward.1} parent=1 // pred_fallthru
      _
    // Predicated region
    $region22: #{cat_encoder_forward.1} parent=1 // pred_check
      _
    $region23: #{cat_encoder_forward.1} parent=1 // pred_check_branch
      %50 = sbr.rel (0) target = $region25
    $region24: #{cat_encoder_forward.1} parent=1 // pred_region
      _
    $region25: #{cat_encoder_forward.1} parent=1 // pred_fallthru
      _
    // Predicated region
    $region26: #{cat_encoder_forward.1} parent=1 // pred_check
      _
    $region27: #{cat_encoder_forward.1} parent=1 // pred_check_branch
      %52 = sbr.rel (0) target = $region29
    $region28: #{cat_encoder_forward.1} parent=1 // pred_region
      _
    $region29: #{cat_encoder_forward.1} parent=1 // pred_fallthru
      _
    // Predicated region
    $region30: #{cat_encoder_forward.1} parent=1 // pred_check
      _
    $region31: #{cat_encoder_forward.1} parent=1 // pred_check_branch
      %54 = sbr.rel (0) target = $region33
    $region32: #{cat_encoder_forward.1} parent=1 // pred_region
      _
    $region33: #{cat_encoder_forward.1} parent=1 // pred_fallthru
      _
    // Predicated region
    $region34: #{cat_encoder_forward.1} parent=1 // pred_check
      _
    $region35: #{cat_encoder_forward.1} parent=1 // pred_check_branch
      %56 = sbr.rel (0) target = $region37
    $region36: #{cat_encoder_forward.1} parent=1 // pred_region
      _
    $region37: #{cat_encoder_forward.1} parent=1 // pred_fallthru
      _
    // Predicated region
    $region38: #{cat_encoder_forward.1} parent=1 // pred_check
      _
    $region39: #{cat_encoder_forward.1} parent=1 // pred_check_branch
      %58 = sbr.rel (0) target = $region41
    $region40: #{cat_encoder_forward.1} parent=1 // pred_region
      _
    $region41: #{cat_encoder_forward.1} parent=1 // pred_fallthru
      _
    // Predicated region
    $region42: #{cat_encoder_forward.1} parent=1 // pred_check
      _
    $region43: #{cat_encoder_forward.1} parent=1 // pred_check_branch
      %60 = sbr.rel (0) target = $region45
    $region44: #{cat_encoder_forward.1} parent=1 // pred_region
      _
    $region45: #{cat_encoder_forward.1} parent=1 // pred_fallthru
      _
    // Predicated region
    $region46: #{cat_encoder_forward.1} parent=1 // pred_check
      _
    $region47: #{cat_encoder_forward.1} parent=1 // pred_check_branch
      %62 = sbr.rel (0) target = $region49
    $region48: #{cat_encoder_forward.1} parent=1 // pred_region
      _
    $region49: #{cat_encoder_forward.1} parent=1 // pred_fallthru
      _
    // Predicated region
    $region50: #{cat_encoder_forward.1} parent=1 // pred_check
      _
    $region51: #{cat_encoder_forward.1} parent=1 // pred_check_branch
      %64 = sbr.rel (0) target = $region53
    $region52: #{cat_encoder_forward.1} parent=1 // pred_region
      _
    $region53: #{cat_encoder_forward.1} parent=1 // pred_fallthru
      _
    // Predicated region
    $region54: #{cat_encoder_forward.1} parent=1 // pred_check
      _
    $region55: #{cat_encoder_forward.1} parent=1 // pred_check_branch
      %66 = sbr.rel (0) target = $region57
    $region56: #{cat_encoder_forward.1} parent=1 // pred_region
      _
    $region57: #{cat_encoder_forward.1} parent=1 // pred_fallthru
      _
    // Predicated region
    $region58: #{cat_encoder_forward.1} parent=1 // pred_check
      _
    $region59: #{cat_encoder_forward.1} parent=1 // pred_check_branch
      %68 = sbr.rel (0) target = $region61
    $region60: #{cat_encoder_forward.1} parent=1 // pred_region
      _
    $region61: #{cat_encoder_forward.1} parent=1 // pred_fallthru
      _
    // Predicated region
    $region62: #{cat_encoder_forward.1} parent=1 // pred_check
      _
    $region63: #{cat_encoder_forward.1} parent=1 // pred_check_branch
      %70 = sbr.rel (0) target = $region65
    $region64: #{cat_encoder_forward.1} parent=1 // pred_region
      %s72 = ssub.s32 16, 16
      %73 = vsyncadd [#allocation4], %s72
      %s75 = sshll.u32 [#allocation3], 4
      %s76 = int_to_ptr.vmem [resolvable:$true] %s75
      %78 = dma.hbm_to_vmem [thread:$0]  %s15, 16, %s76, [#allocation4]
    $region65: #{cat_encoder_forward.1} parent=1 // pred_fallthru
      _
    // Predicated region
    $region66: #{cat_encoder_forward.1} parent=1 // pred_check
      _
    $region67: #{cat_encoder_forward.1} parent=1 // pred_check_branch
      %80 = sbr.rel (0) target = $region69
    $region68: #{cat_encoder_forward.1} parent=1 // pred_region
      %s82 = ssub.s32 16, 16
      %83 = vsyncadd [#allocation7], %s82
      %s85 = sshll.u32 [#allocation6], 4
      %s86 = int_to_ptr.vmem [resolvable:$true] %s85
      %88 = dma.hbm_to_vmem [thread:$0]  %s16, 16, %s86, [#allocation7]
    $region69: #{cat_encoder_forward.1} parent=1 // pred_fallthru
      _
    // Predicated region
    $region70: #{cat_encoder_forward.1} parent=1 // pred_check
      _
    $region71: #{cat_encoder_forward.1} parent=1 // pred_check_branch
      %90 = sbr.rel (0) target = $region73
    $region72: #{cat_encoder_forward.1} parent=1 // pred_region
      %s92 = ssub.s32 16, 16
      %93 = vsyncadd [#allocation7], %s92
      %s95 = sshll.u32 [#allocation8], 4
      %s96 = int_to_ptr.vmem [resolvable:$true] %s95
      %98 = dma.hbm_to_vmem [thread:$0]  %s17, 16, %s96, [#allocation7]
    $region73: #{cat_encoder_forward.1} parent=1 // pred_fallthru
      _
    // Predicated region
    $region74: #{cat_encoder_forward.1} parent=1 // pred_check
      _
    $region75: #{cat_encoder_forward.1} parent=1 // pred_check_branch
      %100 = sbr.rel (0) target = $region77
    $region76: #{cat_encoder_forward.1} parent=1 // pred_region
      %s102 = ssub.s32 128, 128
      %103 = vsyncadd [#allocation10], %s102
      %s105 = sshll.u32 [#allocation9], 4
      %s106 = int_to_ptr.vmem [resolvable:$true] %s105
      %108 = dma.hbm_to_vmem [thread:$0]  %s18, 128, %s106, [#allocation10]
    $region77: #{cat_encoder_forward.1} parent=1 // pred_fallthru
      _
    // Predicated region
    $region78: #{cat_encoder_forward.1} parent=1 // pred_check
      _
    $region79: #{cat_encoder_forward.1} parent=1 // pred_check_branch
      %110 = sbr.rel (0) target = $region81
    $region80: #{cat_encoder_forward.1} parent=1 // pred_region
      %s112 = ssub.s32 32, 32
      %113 = vsyncadd [#allocation10], %s112
      %s115 = sshll.u32 [#allocation11], 4
      %s116 = int_to_ptr.vmem [resolvable:$true] %s115
      %118 = dma.hbm_to_vmem [thread:$0]  %s19, 32, %s116, [#allocation10]
    $region81: #{cat_encoder_forward.1} parent=1 // pred_fallthru
      _
    // Predicated region
    $region82: #{cat_encoder_forward.1} parent=1 // pred_check
      _
    $region83: #{cat_encoder_forward.1} parent=1 // pred_check_branch
      %120 = sbr.rel (0) target = $region85
    $region84: #{cat_encoder_forward.1} parent=1 // pred_region
      _
    $region85: #{cat_encoder_forward.1} parent=1 // pred_fallthru
      _
    // Predicated region
    $region86: #{cat_encoder_forward.1} parent=1 // pred_check
      _
    $region87: #{cat_encoder_forward.1} parent=1 // pred_check_branch
      %122 = sbr.rel (0) target = $region89
    $region88: #{cat_encoder_forward.1} parent=1 // pred_region
      _
    $region89: #{cat_encoder_forward.1} parent=1 // pred_fallthru
      _
    // Predicated region
    $region90: #{cat_encoder_forward.1} parent=1 // pred_check
      _
    $region91: #{cat_encoder_forward.1} parent=1 // pred_check_branch
      %124 = sbr.rel (0) target = $region93
    $region92: #{cat_encoder_forward.1} parent=1 // pred_region
      %s126 = ssub.s32 32, 32
      %127 = vsyncadd [#allocation13], %s126
      %s129 = sshll.u32 [#allocation12], 4
      %s130 = int_to_ptr.vmem [resolvable:$true] %s129
      %132 = dma.hbm_to_vmem [thread:$0]  %s22, 32, %s130, [#allocation13]
    $region93: #{cat_encoder_forward.1} parent=1 // pred_fallthru
      _
    // Predicated region
    $region94: #{cat_encoder_forward.1} parent=1 // pred_check
      _
    $region95: #{cat_encoder_forward.1} parent=1 // pred_check_branch
      %134 = sbr.rel (0) target = $region97
    $region96: #{cat_encoder_forward.1} parent=1 // pred_region
      %s136 = ssub.s32 2048, 2048
      %137 = vsyncadd [#allocation13], %s136
      %s138 = sshll.u32 [#allocation14], 4
      %s139 = int_to_ptr.vmem [resolvable:$true] %s138
      %144 = dma.hbm_to_vmem [thread:$0]  %s23, 2048, %s139, [#allocation13], 256, 256, 16
    $region97: #{cat_encoder_forward.1} parent=1 // pred_fallthru
      _
    // Predicated region
    $region98: #{cat_encoder_forward.1} parent=1 // pred_check
      _
    $region99: #{cat_encoder_forward.1} parent=1 // pred_check_branch
      %146 = sbr.rel (0) target = $region101
    $region100: #{cat_encoder_forward.1} parent=1 // pred_region
      _
    $region101: #{cat_encoder_forward.1} parent=1 // pred_fallthru
      _
    // Predicated region
    $region102: #{cat_encoder_forward.1} parent=1 // pred_check
      _
    $region103: #{cat_encoder_forward.1} parent=1 // pred_check_branch
      %148 = sbr.rel (0) target = $region105
    $region104: #{cat_encoder_forward.1} parent=1 // pred_region
      _
    $region105: #{cat_encoder_forward.1} parent=1 // pred_fallthru
      _
    // Predicated region
    $region106: #{cat_encoder_forward.1} parent=1 // pred_check
      _
    $region107: #{cat_encoder_forward.1} parent=1 // pred_check_branch
      %150 = sbr.rel (0) target = $region109
    $region108: #{cat_encoder_forward.1} parent=1 // pred_region
      %s152 = ssub.s32 16, 16
      %153 = vsyncadd [#allocation16], %s152
      %s155 = sshll.u32 [#allocation15], 4
      %s156 = int_to_ptr.vmem [resolvable:$true] %s155
      %158 = dma.hbm_to_vmem [thread:$0]  %s26, 16, %s156, [#allocation16]
    $region109: #{cat_encoder_forward.1} parent=1 // pred_fallthru
      _
    // Predicated region
    $region110: #{cat_encoder_forward.1} parent=1 // pred_check
      _
    $region111: #{cat_encoder_forward.1} parent=1 // pred_check_branch
      %160 = sbr.rel (0) target = $region113
    $region112: #{cat_encoder_forward.1} parent=1 // pred_region
      %s162 = ssub.s32 16, 16
      %163 = vsyncadd [#allocation16], %s162
      %s165 = sshll.u32 [#allocation17], 4
      %s166 = int_to_ptr.vmem [resolvable:$true] %s165
      %168 = dma.hbm_to_vmem [thread:$0]  %s27, 16, %s166, [#allocation16]
    $region113: #{cat_encoder_forward.1} parent=1 // pred_fallthru
      _
    // Predicated region
    $region114: #{cat_encoder_forward.1} parent=1 // pred_check
      _
    $region115: #{cat_encoder_forward.1} parent=1 // pred_check_branch
      %170 = sbr.rel (0) target = $region117
    $region116: #{cat_encoder_forward.1} parent=1 // pred_region
      %171 = dma.done [#allocation4], 16
    $region117: #{cat_encoder_forward.1} parent=1 // pred_fallthru
      _
    // Predicated region
    $region118: #{cat_encoder_forward.1} parent=1 // pred_check
      _
    $region119: #{cat_encoder_forward.1} parent=1 // pred_check_branch
      %173 = sbr.rel (0) target = $region121
    $region120: #{cat_encoder_forward.1} parent=1 // pred_region
      %174 = dma.done [#allocation7], 16
    $region121: #{cat_encoder_forward.1} parent=1 // pred_fallthru
      _
    // Predicated region
    $region122: #{cat_encoder_forward.1} parent=1 // pred_check
      _
    $region123: #{cat_encoder_forward.1} parent=1 // pred_check_branch
      %176 = sbr.rel (0) target = $region125
    $region124: #{cat_encoder_forward.1} parent=1 // pred_region
      %177 = dma.done [#allocation7], 16
    $region125: #{cat_encoder_forward.1} parent=1 // pred_fallthru
      _
    // Predicated region
    $region126: #{cat_encoder_forward.1} parent=1 // pred_check
      _
    $region127: #{cat_encoder_forward.1} parent=1 // pred_check_branch
      %179 = sbr.rel (0) target = $region129
    $region128: #{cat_encoder_forward.1} parent=1 // pred_region
      %180 = dma.done [#allocation10], 128
    $region129: #{cat_encoder_forward.1} parent=1 // pred_fallthru
      _
    // Predicated region
    $region130: #{cat_encoder_forward.1} parent=1 // pred_check
      _
    $region131: #{cat_encoder_forward.1} parent=1 // pred_check_branch
      %182 = sbr.rel (0) target = $region133
    $region132: #{cat_encoder_forward.1} parent=1 // pred_region
      %183 = dma.done [#allocation10], 32
    $region133: #{cat_encoder_forward.1} parent=1 // pred_fallthru
      _
    // Predicated region
    $region134: #{cat_encoder_forward.1} parent=1 // pred_check
      _
    $region135: #{cat_encoder_forward.1} parent=1 // pred_check_branch
      %185 = sbr.rel (0) target = $region137
    $region136: #{cat_encoder_forward.1} parent=1 // pred_region
      %186 = dma.done [#allocation13], 32
    $region137: #{cat_encoder_forward.1} parent=1 // pred_fallthru
      _
    // Predicated region
    $region138: #{cat_encoder_forward.1} parent=1 // pred_check
      _
    $region139: #{cat_encoder_forward.1} parent=1 // pred_check_branch
      %188 = sbr.rel (0) target = $region141
    $region140: #{cat_encoder_forward.1} parent=1 // pred_region
      %189 = dma.done [#allocation13], 2048
    $region141: #{cat_encoder_forward.1} parent=1 // pred_fallthru
      _
    // Predicated region
    $region142: #{cat_encoder_forward.1} parent=1 // pred_check
      _
    $region143: #{cat_encoder_forward.1} parent=1 // pred_check_branch
      %191 = sbr.rel (0) target = $region145
    $region144: #{cat_encoder_forward.1} parent=1 // pred_region
      %192 = dma.done [#allocation16], 16
    $region145: #{cat_encoder_forward.1} parent=1 // pred_fallthru
      _
    // Predicated region
    $region146: #{cat_encoder_forward.1} parent=1 // pred_check
      _
    $region147: #{cat_encoder_forward.1} parent=1 // pred_check_branch
      %194 = sbr.rel (0) target = $region149
    $region148: #{cat_encoder_forward.1} parent=1 // pred_region
      %195 = dma.done [#allocation16], 16
    $region149: #{cat_encoder_forward.1} parent=1 // pred_fallthru
      _
    %v196 = vld [vmem:[%s4] sm:$0xff]
    %v197 = vld [vmem:[%s4 + $0x8] sm:$0xff]
    %v198 = vld [vmem:[%s4 + $0x10] sm:$0xff]
    %v199 = vld [vmem:[%s4 + $0x18] sm:$0xff]
    %v200 = vld [vmem:[%s2] sm:$0xff]
    %v201 = vld [vmem:[%s2 + $0x8] sm:$0xff]
    %v202 = vld [vmem:[%s2 + $0x10] sm:$0xff]
    %v203 = vld [vmem:[%s2 + $0x18] sm:$0xff]
    %v204 = vld [vmem:[%s3] sm:$0xff]
    %v205 = vld [vmem:[%s3 + $0x8] sm:$0xff]
    %v206 = vld [vmem:[%s3 + $0x10] sm:$0xff]
    %v207 = vld [vmem:[%s3 + $0x18] sm:$0xff]
    %v208 = vld [vmem:[%s0] sm:$0xff]
    %v209 = vld [vmem:[%s0 + $0x8] sm:$0xff]
    %v210 = vld [vmem:[%s0 + $0x10] sm:$0xff]
    %v211 = vld [vmem:[%s0 + $0x18] sm:$0xff]
    %v212 = vld [vmem:[%s6] sm:$0xf]
    %vm213 = vcmask 31744
    %v215 = vsel %vm213, %v208, 0
    %v218 = vsel %vm213, %v209, 0
    %v221 = vsel %vm213, %v210, 0
    %v224 = vsel %vm213, %v211, 0
    %vm226 = vcmask 1043456
    %v228 = vsel %vm226, %v212, 0
    %230 = vmatprep.subr.mxu0 0.0
    %231 = vmatpush1.msra.mxu0 %v228
    %232 = vmatprep.subr.mxu0 0.0
    %233 = vmatpush1.msra.mxu0 0.0
    %234 = vmatprep.subr.mxu0 0.0
    %235 = vmatpush1.msra.mxu0 0.0
    %236 = vmatprep.subr.mxu0 0.0
    %237 = vmatpush1.msra.mxu0 0.0
    %238 = vmatprep.subr.mxu0 0.0
    %239 = vmatpush1.msra.mxu0 0.0
    %240 = vmatprep.subr.mxu0 0.0
    %241 = vmatpush1.msra.mxu0 0.0
    %242 = vmatprep.subr.mxu0 0.0
    %243 = vmatpush1.msra.mxu0 0.0
    %244 = vmatprep.subr.mxu0 0.0
    %245 = vmatpush1.msra.mxu0 0.0
    %246 = vmatprep.subr.mxu0 0.0
    %247 = vmatpush1.msra.mxu0 0.0
    %248 = vmatprep.subr.mxu0 0.0
    %249 = vmatpush1.msra.mxu0 0.0
    %250 = vmatprep.subr.mxu0 0.0
    %251 = vmatpush1.msra.mxu0 0.0
    %252 = vmatprep.subr.mxu0 0.0
    %253 = vmatpush1.msra.mxu0 0.0
    %254 = vmatprep.subr.mxu0 0.0
    %255 = vmatpush1.msra.mxu0 0.0
    %256 = vmatprep.subr.mxu0 0.0
    %257 = vmatpush1.msra.mxu0 0.0
    %258 = vmatprep.subr.mxu0 0.0
    %259 = vmatpush1.msra.mxu0 0.0
    %260 = vmatprep.subr.mxu0 0.0
    %261 = vmatpush1.msra.mxu0 0.0
    %262 = vmatprep.subr.mxu0 0.0
    %263 = vmatpush1.msra.mxu0 0.0
    %264 = vmatprep.subr.mxu0 0.0
    %265 = vmatpush1.msra.mxu0 0.0
    %266 = vmatprep.subr.mxu0 0.0
    %267 = vmatpush1.msra.mxu0 0.0
    %268 = vmatprep.subr.mxu0 0.0
    %269 = vmatpush1.msra.mxu0 0.0
    %270 = vmatprep.subr.mxu0 0.0
    %271 = vmatpush1.msra.mxu0 0.0
    %272 = vmatprep.subr.mxu0 0.0
    %273 = vmatpush1.msra.mxu0 0.0
    %274 = vmatprep.subr.mxu0 0.0
    %275 = vmatpush1.msra.mxu0 0.0
    %276 = vmatprep.subr.mxu0 0.0
    %277 = vmatpush1.msra.mxu0 0.0
    %278 = vmatprep.subr.mxu0 0.0
    %279 = vmatpush1.msra.mxu0 0.0
    %280 = vmatprep.subr.mxu0 0.0
    %281 = vmatpush1.msra.mxu0 0.0
    %282 = vmatprep.subr.mxu0 0.0
    %283 = vmatpush1.msra.mxu0 0.0
    %284 = vmatprep.subr.mxu0 0.0
    %285 = vmatpush1.msra.mxu0 0.0
    %286 = vmatprep.subr.mxu0 0.0
    %287 = vmatpush1.msra.mxu0 0.0
    %288 = vmatprep.subr.mxu0 0.0
    %289 = vmatpush1.msra.mxu0 0.0
    %290 = vmatprep.subr.mxu0 0.0
    %291 = vmatpush1.msra.mxu0 0.0
    %292 = vmatprep.subr.mxu0 0.0
    %293 = vmatpush1.msra.mxu0 0.0
    %294 = vmatprep.mubr.f32.mxu0 0.0
    %295 = vmatmul.mubr.f32.gmra.mrb[0].mxu0 %v215
    %v296 = vpop.f32.mrb[0].mxu0
    %v297 = vadd.f32 0.0, %v296
    %v298 = vpop.f32.mrb[0].mxu0
    %299 = vmatprep.mubr.f32.mxu0 0.0
    %300 = vmatmul.mubr.f32.gmra.mrb[0].mxu0 %v218
    %v301 = vpop.f32.mrb[0].mxu0
    %v302 = vadd.f32 0.0, %v301
    %v303 = vpop.f32.mrb[0].mxu0
    %304 = vmatprep.mubr.f32.mxu0 0.0
    %305 = vmatmul.mubr.f32.gmra.mrb[0].mxu0 %v221
    %v306 = vpop.f32.mrb[0].mxu0
    %v307 = vadd.f32 0.0, %v306
    %v308 = vpop.f32.mrb[0].mxu0
    %309 = vmatprep.mubr.f32.mxu0 0.0
    %310 = vmatmul.mubr.f32.gmra.mrb[0].mxu0 %v224
    %v311 = vpop.f32.mrb[0].mxu0
    %v312 = vadd.f32 0.0, %v311
    %v313 = vpop.f32.mrb[0].mxu0
    %314 = vdwg.mxu0
    %319 = vrot.lane.b32.xlu0 %v297, 96
    %v320 = vpop.permute.xlu0 %319
    %321 = vrot.lane.b32.xlu0 %v302, 96
    %v322 = vpop.permute.xlu0 %321
    %323 = vrot.lane.b32.xlu0 %v307, 96
    %v324 = vpop.permute.xlu0 %323
    %325 = vrot.lane.b32.xlu0 %v312, 96
    %v326 = vpop.permute.xlu0 %325
    %vm331 = vcmask 261120
    %v333 = vsel %vm331, %v200, 0
    %v336 = vsel %vm331, %v201, 0
    %v339 = vsel %vm331, %v202, 0
    %v342 = vsel %vm331, %v203, 0
    %344 = vmatprep.subr.mxu0 0.0
    %345 = vmatpush1.msra.mxu0 %v297
    %346 = vmatprep.subr.mxu0 0.0
    %347 = vmatpush1.msra.mxu0 %v302
    %348 = vmatprep.subr.mxu0 0.0
    %349 = vmatpush1.msra.mxu0 %v307
    %350 = vmatprep.subr.mxu0 0.0
    %351 = vmatpush1.msra.mxu0 %v312
    %352 = vmatprep.subr.mxu0 0.0
    %353 = vmatpush1.msra.mxu0 0.0
    %354 = vmatprep.subr.mxu0 0.0
    %355 = vmatpush1.msra.mxu0 0.0
    %356 = vmatprep.subr.mxu0 0.0
    %357 = vmatpush1.msra.mxu0 0.0
    %358 = vmatprep.subr.mxu0 0.0
    %359 = vmatpush1.msra.mxu0 0.0
    %360 = vmatprep.subr.mxu0 0.0
    %361 = vmatpush1.msra.mxu0 0.0
    %362 = vmatprep.subr.mxu0 0.0
    %363 = vmatpush1.msra.mxu0 0.0
    %364 = vmatprep.subr.mxu0 0.0
    %365 = vmatpush1.msra.mxu0 0.0
    %366 = vmatprep.subr.mxu0 0.0
    %367 = vmatpush1.msra.mxu0 0.0
    %368 = vmatprep.subr.mxu0 0.0
    %369 = vmatpush1.msra.mxu0 0.0
    %370 = vmatprep.subr.mxu0 0.0
    %371 = vmatpush1.msra.mxu0 0.0
    %372 = vmatprep.subr.mxu0 0.0
    %373 = vmatpush1.msra.mxu0 0.0
    %374 = vmatprep.subr.mxu0 0.0
    %375 = vmatpush1.msra.mxu0 0.0
    %376 = vmatprep.subr.mxu0 0.0
    %377 = vmatpush1.msra.mxu0 0.0
    %378 = vmatprep.subr.mxu0 0.0
    %379 = vmatpush1.msra.mxu0 0.0
    %380 = vmatprep.subr.mxu0 0.0
    %381 = vmatpush1.msra.mxu0 0.0
    %382 = vmatprep.subr.mxu0 0.0
    %383 = vmatpush1.msra.mxu0 0.0
    %384 = vmatprep.subr.mxu0 0.0
    %385 = vmatpush1.msra.mxu0 0.0
    %386 = vmatprep.subr.mxu0 0.0
    %387 = vmatpush1.msra.mxu0 0.0
    %388 = vmatprep.subr.mxu0 0.0
    %389 = vmatpush1.msra.mxu0 0.0
    %390 = vmatprep.subr.mxu0 0.0
    %391 = vmatpush1.msra.mxu0 0.0
    %392 = vmatprep.subr.mxu0 0.0
    %393 = vmatpush1.msra.mxu0 0.0
    %394 = vmatprep.subr.mxu0 0.0
    %395 = vmatpush1.msra.mxu0 0.0
    %396 = vmatprep.subr.mxu0 0.0
    %397 = vmatpush1.msra.mxu0 0.0
    %398 = vmatprep.subr.mxu0 0.0
    %399 = vmatpush1.msra.mxu0 0.0
    %400 = vmatprep.subr.mxu0 0.0
    %401 = vmatpush1.msra.mxu0 0.0
    %402 = vmatprep.subr.mxu0 0.0
    %403 = vmatpush1.msra.mxu0 0.0
    %404 = vmatprep.subr.mxu0 0.0
    %405 = vmatpush1.msra.mxu0 0.0
    %406 = vmatprep.subr.mxu0 0.0
    %407 = vmatpush1.msra.mxu0 0.0
    %408 = vmatprep.mubr.f32.mxu0 0.0
    %409 = vmatmul.mubr.f32.gmra.mrb[0].mxu0 %v333
    %v410 = vpop.f32.mrb[0].mxu0
    %v411 = vadd.f32 %v320, %v410
    %v412 = vpop.f32.mrb[0].mxu0
    %413 = vmatprep.mubr.f32.mxu0 0.0
    %414 = vmatmul.mubr.f32.gmra.mrb[0].mxu0 %v336
    %v415 = vpop.f32.mrb[0].mxu0
    %v416 = vadd.f32 %v322, %v415
    %v417 = vpop.f32.mrb[0].mxu0
    %418 = vmatprep.mubr.f32.mxu0 0.0
    %419 = vmatmul.mubr.f32.gmra.mrb[0].mxu0 %v339
    %v420 = vpop.f32.mrb[0].mxu0
    %v421 = vadd.f32 %v324, %v420
    %v422 = vpop.f32.mrb[0].mxu0
    %423 = vmatprep.mubr.f32.mxu0 0.0
    %424 = vmatmul.mubr.f32.gmra.mrb[0].mxu0 %v342
    %v425 = vpop.f32.mrb[0].mxu0
    %v426 = vadd.f32 %v326, %v425
    %v427 = vpop.f32.mrb[0].mxu0
    %428 = vdwg.mxu0
    %429 = vrot.lane.b32.xlu0 %v297, 64
    %v430 = vpop.permute.xlu0 %429
    %431 = vrot.lane.b32.xlu0 %v302, 64
    %v432 = vpop.permute.xlu0 %431
    %433 = vrot.lane.b32.xlu0 %v307, 64
    %v434 = vpop.permute.xlu0 %433
    %435 = vrot.lane.b32.xlu0 %v312, 64
    %v436 = vpop.permute.xlu0 %435
    %v442 = vsel %vm331, %v204, 0
    %v445 = vsel %vm331, %v205, 0
    %v448 = vsel %vm331, %v206, 0
    %v451 = vsel %vm331, %v207, 0
    %453 = vmatprep.subr.mxu0 0.0
    %454 = vmatpush1.msra.mxu0 %v430
    %455 = vmatprep.subr.mxu0 0.0
    %456 = vmatpush1.msra.mxu0 %v432
    %457 = vmatprep.subr.mxu0 0.0
    %458 = vmatpush1.msra.mxu0 %v434
    %459 = vmatprep.subr.mxu0 0.0
    %460 = vmatpush1.msra.mxu0 %v436
    %461 = vmatprep.subr.mxu0 0.0
    %462 = vmatpush1.msra.mxu0 0.0
    %463 = vmatprep.subr.mxu0 0.0
    %464 = vmatpush1.msra.mxu0 0.0
    %465 = vmatprep.subr.mxu0 0.0
    %466 = vmatpush1.msra.mxu0 0.0
    %467 = vmatprep.subr.mxu0 0.0
    %468 = vmatpush1.msra.mxu0 0.0
    %469 = vmatprep.subr.mxu0 0.0
    %470 = vmatpush1.msra.mxu0 0.0
    %471 = vmatprep.subr.mxu0 0.0
    %472 = vmatpush1.msra.mxu0 0.0
    %473 = vmatprep.subr.mxu0 0.0
    %474 = vmatpush1.msra.mxu0 0.0
    %475 = vmatprep.subr.mxu0 0.0
    %476 = vmatpush1.msra.mxu0 0.0
    %477 = vmatprep.subr.mxu0 0.0
    %478 = vmatpush1.msra.mxu0 0.0
    %479 = vmatprep.subr.mxu0 0.0
    %480 = vmatpush1.msra.mxu0 0.0
    %481 = vmatprep.subr.mxu0 0.0
    %482 = vmatpush1.msra.mxu0 0.0
    %483 = vmatprep.subr.mxu0 0.0
    %484 = vmatpush1.msra.mxu0 0.0
    %485 = vmatprep.subr.mxu0 0.0
    %486 = vmatpush1.msra.mxu0 0.0
    %487 = vmatprep.subr.mxu0 0.0
    %488 = vmatpush1.msra.mxu0 0.0
    %489 = vmatprep.subr.mxu0 0.0
    %490 = vmatpush1.msra.mxu0 0.0
    %491 = vmatprep.subr.mxu0 0.0
    %492 = vmatpush1.msra.mxu0 0.0
    %493 = vmatprep.subr.mxu0 0.0
    %494 = vmatpush1.msra.mxu0 0.0
    %495 = vmatprep.subr.mxu0 0.0
    %496 = vmatpush1.msra.mxu0 0.0
    %497 = vmatprep.subr.mxu0 0.0
    %498 = vmatpush1.msra.mxu0 0.0
    %499 = vmatprep.subr.mxu0 0.0
    %500 = vmatpush1.msra.mxu0 0.0
    %501 = vmatprep.subr.mxu0 0.0
    %502 = vmatpush1.msra.mxu0 0.0
    %503 = vmatprep.subr.mxu0 0.0
    %504 = vmatpush1.msra.mxu0 0.0
    %505 = vmatprep.subr.mxu0 0.0
    %506 = vmatpush1.msra.mxu0 0.0
    %507 = vmatprep.subr.mxu0 0.0
    %508 = vmatpush1.msra.mxu0 0.0
    %509 = vmatprep.subr.mxu0 0.0
    %510 = vmatpush1.msra.mxu0 0.0
    %511 = vmatprep.subr.mxu0 0.0
    %512 = vmatpush1.msra.mxu0 0.0
    %513 = vmatprep.subr.mxu0 0.0
    %514 = vmatpush1.msra.mxu0 0.0
    %515 = vmatprep.subr.mxu0 0.0
    %516 = vmatpush1.msra.mxu0 0.0
    %517 = vmatprep.mubr.f32.mxu0 0.0
    %518 = vmatmul.mubr.f32.gmra.mrb[0].mxu0 %v442
    %v519 = vpop.f32.mrb[0].mxu0
    %v520 = vadd.f32 0.0, %v519
    %v521 = vpop.f32.mrb[0].mxu0
    %522 = vmatprep.mubr.f32.mxu0 0.0
    %523 = vmatmul.mubr.f32.gmra.mrb[0].mxu0 %v445
    %v524 = vpop.f32.mrb[0].mxu0
    %v525 = vadd.f32 0.0, %v524
    %v526 = vpop.f32.mrb[0].mxu0
    %527 = vmatprep.mubr.f32.mxu0 0.0
    %528 = vmatmul.mubr.f32.gmra.mrb[0].mxu0 %v448
    %v529 = vpop.f32.mrb[0].mxu0
    %v530 = vadd.f32 0.0, %v529
    %v531 = vpop.f32.mrb[0].mxu0
    %532 = vmatprep.mubr.f32.mxu0 0.0
    %533 = vmatmul.mubr.f32.gmra.mrb[0].mxu0 %v451
    %v534 = vpop.f32.mrb[0].mxu0
    %v535 = vadd.f32 0.0, %v534
    %v536 = vpop.f32.mrb[0].mxu0
    %537 = vdwg.mxu0
    %v538 = vadd.f32 %v411, %v520
    %v539 = vadd.f32 %v416, %v525
    %v540 = vadd.f32 %v421, %v530
    %v541 = vadd.f32 %v426, %v535
    %v542 = vld [vmem:[%s7] sm:$0x1]
    %v544 = vlaneseq
    %v545 = vshrl.u32 %v544, 7
    %v546 = vsub.s32 0, %v545
    %v547 = vrot.slane %v542, %v546
    %v549 = vadd.f32 %v538, %v547
    %v550 = vadd.f32 %v539, %v547
    %v551 = vadd.f32 %v540, %v547
    %v552 = vadd.f32 %v541, %v547
    %554 = vset.pattern.permute.xlu0 0
    %555 = vperm.xlu0 %554, %v196
    %v556 = vpop.permute.xlu0 %555
    %559 = vset.pattern.permute.xlu0 0
    %560 = vperm.xlu0 %559, %v197
    %v561 = vpop.permute.xlu0 %560
    %564 = vset.pattern.permute.xlu0 0
    %565 = vperm.xlu0 %564, %v198
    %v566 = vpop.permute.xlu0 %565
    %569 = vset.pattern.permute.xlu0 0
    %570 = vperm.xlu0 %569, %v199
    %v571 = vpop.permute.xlu0 %570
    %v573 = vmul.f32 %v549, %v556
    %v574 = vmul.f32 %v550, %v561
    %v575 = vmul.f32 %v551, %v566
    %v576 = vmul.f32 %v552, %v571
    %v577 = vsel %vm331, %v573, 0.0
    %v578 = vsel %vm331, %v574, 0.0
    %v579 = vadd.f32 %v577, %v578
    %v580 = vsel %vm331, %v575, 0.0
    %v581 = vadd.f32 %v579, %v580
    %v582 = vsel %vm331, %v576, 0.0
    %v583 = vadd.f32 %v581, %v582
    %v584 = vrot.slane %v583, 4
    %v585 = vadd.f32 %v583, %v584
    %v586 = vrot.slane %v585, 2
    %v587 = vadd.f32 %v585, %v586
    %v588 = vrot.slane %v587, 1
    %v589 = vadd.f32 %v587, %v588
    %v590 = vmul.f32 %v589, 0.0625
    %v591 = vsub.f32 %v549, %v590
    %v592 = vsub.f32 %v550, %v590
    %v593 = vsub.f32 %v551, %v590
    %v594 = vsub.f32 %v552, %v590
    %v595 = vmul.f32 %v591, %v591
    %v596 = vmul.f32 %v592, %v592
    %v597 = vmul.f32 %v593, %v593
    %v598 = vmul.f32 %v594, %v594
    %v599 = vmul.f32 %v595, %v556
    %v600 = vmul.f32 %v596, %v561
    %v601 = vmul.f32 %v597, %v566
    %v602 = vmul.f32 %v598, %v571
    %v603 = vsel %vm331, %v599, 0.0
    %v604 = vsel %vm331, %v600, 0.0
    %v605 = vadd.f32 %v603, %v604
    %v606 = vsel %vm331, %v601, 0.0
    %v607 = vadd.f32 %v605, %v606
    %v608 = vsel %vm331, %v602, 0.0
    %v609 = vadd.f32 %v607, %v608
    %v610 = vrot.slane %v609, 4
    %v611 = vadd.f32 %v609, %v610
    %v612 = vrot.slane %v611, 2
    %v613 = vadd.f32 %v611, %v612
    %v614 = vrot.slane %v613, 1
    %v615 = vadd.f32 %v613, %v614
    %v616 = vmul.f32 %v615, 0.0625
    %v617 = vadd.f32 %v616, 1e-05
    %v618 = vrsqrt.pop %v617
    %v619 = vld [vmem:[%s8] sm:$0x1]
    %v620 = vmul.f32 %v618, %v619
    %v621 = vld [vmem:[%s9] sm:$0x1]
    %v622 = vmul.f32 %v590, %v620
    %v623 = vsub.f32 %v621, %v622
    %v624 = vlaneseq
    %v625 = vshrl.u32 %v624, 7
    %v626 = vsub.s32 0, %v625
    %v627 = vrot.slane %v620, %v626
    %v628 = vmul.f32 %v549, %v627
    %v629 = vmul.f32 %v550, %v627
    %v630 = vmul.f32 %v551, %v627
    %v631 = vmul.f32 %v552, %v627
    %v633 = vlaneseq
    %v634 = vshrl.u32 %v633, 7
    %v635 = vsub.s32 0, %v634
    %v636 = vrot.slane %v623, %v635
    %v638 = vadd.f32 %v628, %v636
    %v639 = vadd.f32 %v629, %v636
    %v640 = vadd.f32 %v630, %v636
    %v641 = vadd.f32 %v631, %v636
    %vm642 = vcmp.gt.f32.partialorder %v638, 0.0
    %vm643 = vcmp.gt.f32.partialorder %v639, 0.0
    %vm644 = vcmp.gt.f32.partialorder %v640, 0.0
    %vm645 = vcmp.gt.f32.partialorder %v641, 0.0
    %v646 = vmul.f32 %v638, 0.3
    %v647 = vmul.f32 %v639, 0.3
    %v648 = vmul.f32 %v640, 0.3
    %v649 = vmul.f32 %v641, 0.3
    %v650 = vsel %vm642, %v638, %v646
    %v651 = vsel %vm643, %v639, %v647
    %v652 = vsel %vm644, %v640, %v648
    %v653 = vsel %vm645, %v641, %v649
    %v654 = vmul.f32 %v650, %v556
    %v655 = vmul.f32 %v651, %v561
    %v656 = vmul.f32 %v652, %v566
    %v657 = vmul.f32 %v653, %v571
    %v658 = vld [vmem:[%s10] sm:$0xff]
    %v659 = vld [vmem:[%s10 + $0x8] sm:$0xff]
    %v660 = vld [vmem:[%s10 + $0x10] sm:$0xff]
    %v661 = vld [vmem:[%s10 + $0x18] sm:$0xff]
    %v663 = vsel %vm331, %v654, 0
    %v666 = vsel %vm331, %v655, 0
    %v669 = vsel %vm331, %v656, 0
    %v672 = vsel %vm331, %v657, 0
    %674 = vmatprep.subr.mxu0 0.0
    %675 = vmatpush1.msra.mxu0 %v658
    %676 = vmatprep.subr.mxu0 0.0
    %677 = vmatpush1.msra.mxu0 %v659
    %678 = vmatprep.subr.mxu0 0.0
    %679 = vmatpush1.msra.mxu0 %v660
    %680 = vmatprep.subr.mxu0 0.0
    %681 = vmatpush1.msra.mxu0 %v661
    %682 = vmatprep.subr.mxu0 0.0
    %683 = vmatpush1.msra.mxu0 0.0
    %684 = vmatprep.subr.mxu0 0.0
    %685 = vmatpush1.msra.mxu0 0.0
    %686 = vmatprep.subr.mxu0 0.0
    %687 = vmatpush1.msra.mxu0 0.0
    %688 = vmatprep.subr.mxu0 0.0
    %689 = vmatpush1.msra.mxu0 0.0
    %690 = vmatprep.subr.mxu0 0.0
    %691 = vmatpush1.msra.mxu0 0.0
    %692 = vmatprep.subr.mxu0 0.0
    %693 = vmatpush1.msra.mxu0 0.0
    %694 = vmatprep.subr.mxu0 0.0
    %695 = vmatpush1.msra.mxu0 0.0
    %696 = vmatprep.subr.mxu0 0.0
    %697 = vmatpush1.msra.mxu0 0.0
    %698 = vmatprep.subr.mxu0 0.0
    %699 = vmatpush1.msra.mxu0 0.0
    %700 = vmatprep.subr.mxu0 0.0
    %701 = vmatpush1.msra.mxu0 0.0
    %702 = vmatprep.subr.mxu0 0.0
    %703 = vmatpush1.msra.mxu0 0.0
    %704 = vmatprep.subr.mxu0 0.0
    %705 = vmatpush1.msra.mxu0 0.0
    %706 = vmatprep.subr.mxu0 0.0
    %707 = vmatpush1.msra.mxu0 0.0
    %708 = vmatprep.subr.mxu0 0.0
    %709 = vmatpush1.msra.mxu0 0.0
    %710 = vmatprep.subr.mxu0 0.0
    %711 = vmatpush1.msra.mxu0 0.0
    %712 = vmatprep.subr.mxu0 0.0
    %713 = vmatpush1.msra.mxu0 0.0
    %714 = vmatprep.subr.mxu0 0.0
    %715 = vmatpush1.msra.mxu0 0.0
    %716 = vmatprep.subr.mxu0 0.0
    %717 = vmatpush1.msra.mxu0 0.0
    %718 = vmatprep.subr.mxu0 0.0
    %719 = vmatpush1.msra.mxu0 0.0
    %720 = vmatprep.subr.mxu0 0.0
    %721 = vmatpush1.msra.mxu0 0.0
    %722 = vmatprep.subr.mxu0 0.0
    %723 = vmatpush1.msra.mxu0 0.0
    %724 = vmatprep.subr.mxu0 0.0
    %725 = vmatpush1.msra.mxu0 0.0
    %726 = vmatprep.subr.mxu0 0.0
    %727 = vmatpush1.msra.mxu0 0.0
    %728 = vmatprep.subr.mxu0 0.0
    %729 = vmatpush1.msra.mxu0 0.0
    %730 = vmatprep.subr.mxu0 0.0
    %731 = vmatpush1.msra.mxu0 0.0
    %732 = vmatprep.subr.mxu0 0.0
    %733 = vmatpush1.msra.mxu0 0.0
    %734 = vmatprep.subr.mxu0 0.0
    %735 = vmatpush1.msra.mxu0 0.0
    %736 = vmatprep.subr.mxu0 0.0
    %737 = vmatpush1.msra.mxu0 0.0
    %738 = vmatprep.mubr.f32.mxu0 0.0
    %739 = vmatmul.mubr.f32.gmra.mrb[0].mxu0 %v663
    %v740 = vpop.f32.mrb[0].mxu0
    %v741 = vadd.f32 0.0, %v740
    %v742 = vpop.f32.mrb[0].mxu0
    %743 = vmatprep.mubr.f32.mxu0 0.0
    %744 = vmatmul.mubr.f32.gmra.mrb[0].mxu0 %v666
    %v745 = vpop.f32.mrb[0].mxu0
    %v746 = vadd.f32 0.0, %v745
    %v747 = vpop.f32.mrb[0].mxu0
    %748 = vmatprep.mubr.f32.mxu0 0.0
    %749 = vmatmul.mubr.f32.gmra.mrb[0].mxu0 %v669
    %v750 = vpop.f32.mrb[0].mxu0
    %v751 = vadd.f32 0.0, %v750
    %v752 = vpop.f32.mrb[0].mxu0
    %753 = vmatprep.mubr.f32.mxu0 0.0
    %754 = vmatmul.mubr.f32.gmra.mrb[0].mxu0 %v672
    %v755 = vpop.f32.mrb[0].mxu0
    %v756 = vadd.f32 0.0, %v755
    %v757 = vpop.f32.mrb[0].mxu0
    %758 = vdwg.mxu0
    %763 = vrot.lane.b32.xlu0 %v741, 96
    %v764 = vpop.permute.xlu0 %763
    %765 = vrot.lane.b32.xlu0 %v746, 96
    %v766 = vpop.permute.xlu0 %765
    %767 = vrot.lane.b32.xlu0 %v751, 96
    %v768 = vpop.permute.xlu0 %767
    %769 = vrot.lane.b32.xlu0 %v756, 96
    %v770 = vpop.permute.xlu0 %769
    %775 = vmatprep.subr.mxu0 0.0
    %776 = vmatpush1.msra.mxu0 %v741
    %777 = vmatprep.subr.mxu0 0.0
    %778 = vmatpush1.msra.mxu0 %v746
    %779 = vmatprep.subr.mxu0 0.0
    %780 = vmatpush1.msra.mxu0 %v751
    %781 = vmatprep.subr.mxu0 0.0
    %782 = vmatpush1.msra.mxu0 %v756
    %783 = vmatprep.subr.mxu0 0.0
    %784 = vmatpush1.msra.mxu0 0.0
    %785 = vmatprep.subr.mxu0 0.0
    %786 = vmatpush1.msra.mxu0 0.0
    %787 = vmatprep.subr.mxu0 0.0
    %788 = vmatpush1.msra.mxu0 0.0
    %789 = vmatprep.subr.mxu0 0.0
    %790 = vmatpush1.msra.mxu0 0.0
    %791 = vmatprep.subr.mxu0 0.0
    %792 = vmatpush1.msra.mxu0 0.0
    %793 = vmatprep.subr.mxu0 0.0
    %794 = vmatpush1.msra.mxu0 0.0
    %795 = vmatprep.subr.mxu0 0.0
    %796 = vmatpush1.msra.mxu0 0.0
    %797 = vmatprep.subr.mxu0 0.0
    %798 = vmatpush1.msra.mxu0 0.0
    %799 = vmatprep.subr.mxu0 0.0
    %800 = vmatpush1.msra.mxu0 0.0
    %801 = vmatprep.subr.mxu0 0.0
    %802 = vmatpush1.msra.mxu0 0.0
    %803 = vmatprep.subr.mxu0 0.0
    %804 = vmatpush1.msra.mxu0 0.0
    %805 = vmatprep.subr.mxu0 0.0
    %806 = vmatpush1.msra.mxu0 0.0
    %807 = vmatprep.subr.mxu0 0.0
    %808 = vmatpush1.msra.mxu0 0.0
    %809 = vmatprep.subr.mxu0 0.0
    %810 = vmatpush1.msra.mxu0 0.0
    %811 = vmatprep.subr.mxu0 0.0
    %812 = vmatpush1.msra.mxu0 0.0
    %813 = vmatprep.subr.mxu0 0.0
    %814 = vmatpush1.msra.mxu0 0.0
    %815 = vmatprep.subr.mxu0 0.0
    %816 = vmatpush1.msra.mxu0 0.0
    %817 = vmatprep.subr.mxu0 0.0
    %818 = vmatpush1.msra.mxu0 0.0
    %819 = vmatprep.subr.mxu0 0.0
    %820 = vmatpush1.msra.mxu0 0.0
    %821 = vmatprep.subr.mxu0 0.0
    %822 = vmatpush1.msra.mxu0 0.0
    %823 = vmatprep.subr.mxu0 0.0
    %824 = vmatpush1.msra.mxu0 0.0
    %825 = vmatprep.subr.mxu0 0.0
    %826 = vmatpush1.msra.mxu0 0.0
    %827 = vmatprep.subr.mxu0 0.0
    %828 = vmatpush1.msra.mxu0 0.0
    %829 = vmatprep.subr.mxu0 0.0
    %830 = vmatpush1.msra.mxu0 0.0
    %831 = vmatprep.subr.mxu0 0.0
    %832 = vmatpush1.msra.mxu0 0.0
    %833 = vmatprep.subr.mxu0 0.0
    %834 = vmatpush1.msra.mxu0 0.0
    %835 = vmatprep.subr.mxu0 0.0
    %836 = vmatpush1.msra.mxu0 0.0
    %837 = vmatprep.subr.mxu0 0.0
    %838 = vmatpush1.msra.mxu0 0.0
    %839 = vmatprep.mubr.f32.mxu0 0.0
    %840 = vmatmul.mubr.f32.gmra.mrb[0].mxu0 %v333
    %v841 = vpop.f32.mrb[0].mxu0
    %v842 = vadd.f32 %v764, %v841
    %v843 = vpop.f32.mrb[0].mxu0
    %844 = vmatprep.mubr.f32.mxu0 0.0
    %845 = vmatmul.mubr.f32.gmra.mrb[0].mxu0 %v336
    %v846 = vpop.f32.mrb[0].mxu0
    %v847 = vadd.f32 %v766, %v846
    %v848 = vpop.f32.mrb[0].mxu0
    %849 = vmatprep.mubr.f32.mxu0 0.0
    %850 = vmatmul.mubr.f32.gmra.mrb[0].mxu0 %v339
    %v851 = vpop.f32.mrb[0].mxu0
    %v852 = vadd.f32 %v768, %v851
    %v853 = vpop.f32.mrb[0].mxu0
    %854 = vmatprep.mubr.f32.mxu0 0.0
    %855 = vmatmul.mubr.f32.gmra.mrb[0].mxu0 %v342
    %v856 = vpop.f32.mrb[0].mxu0
    %v857 = vadd.f32 %v770, %v856
    %v858 = vpop.f32.mrb[0].mxu0
    %859 = vdwg.mxu0
    %860 = vrot.lane.b32.xlu0 %v741, 64
    %v861 = vpop.permute.xlu0 %860
    %862 = vrot.lane.b32.xlu0 %v746, 64
    %v863 = vpop.permute.xlu0 %862
    %864 = vrot.lane.b32.xlu0 %v751, 64
    %v865 = vpop.permute.xlu0 %864
    %866 = vrot.lane.b32.xlu0 %v756, 64
    %v867 = vpop.permute.xlu0 %866
    %872 = vmatprep.subr.mxu0 0.0
    %873 = vmatpush1.msra.mxu0 %v861
    %874 = vmatprep.subr.mxu0 0.0
    %875 = vmatpush1.msra.mxu0 %v863
    %876 = vmatprep.subr.mxu0 0.0
    %877 = vmatpush1.msra.mxu0 %v865
    %878 = vmatprep.subr.mxu0 0.0
    %879 = vmatpush1.msra.mxu0 %v867
    %880 = vmatprep.subr.mxu0 0.0
    %881 = vmatpush1.msra.mxu0 0.0
    %882 = vmatprep.subr.mxu0 0.0
    %883 = vmatpush1.msra.mxu0 0.0
    %884 = vmatprep.subr.mxu0 0.0
    %885 = vmatpush1.msra.mxu0 0.0
    %886 = vmatprep.subr.mxu0 0.0
    %887 = vmatpush1.msra.mxu0 0.0
    %888 = vmatprep.subr.mxu0 0.0
    %889 = vmatpush1.msra.mxu0 0.0
    %890 = vmatprep.subr.mxu0 0.0
    %891 = vmatpush1.msra.mxu0 0.0
    %892 = vmatprep.subr.mxu0 0.0
    %893 = vmatpush1.msra.mxu0 0.0
    %894 = vmatprep.subr.mxu0 0.0
    %895 = vmatpush1.msra.mxu0 0.0
    %896 = vmatprep.subr.mxu0 0.0
    %897 = vmatpush1.msra.mxu0 0.0
    %898 = vmatprep.subr.mxu0 0.0
    %899 = vmatpush1.msra.mxu0 0.0
    %900 = vmatprep.subr.mxu0 0.0
    %901 = vmatpush1.msra.mxu0 0.0
    %902 = vmatprep.subr.mxu0 0.0
    %903 = vmatpush1.msra.mxu0 0.0
    %904 = vmatprep.subr.mxu0 0.0
    %905 = vmatpush1.msra.mxu0 0.0
    %906 = vmatprep.subr.mxu0 0.0
    %907 = vmatpush1.msra.mxu0 0.0
    %908 = vmatprep.subr.mxu0 0.0
    %909 = vmatpush1.msra.mxu0 0.0
    %910 = vmatprep.subr.mxu0 0.0
    %911 = vmatpush1.msra.mxu0 0.0
    %912 = vmatprep.subr.mxu0 0.0
    %913 = vmatpush1.msra.mxu0 0.0
    %914 = vmatprep.subr.mxu0 0.0
    %915 = vmatpush1.msra.mxu0 0.0
    %916 = vmatprep.subr.mxu0 0.0
    %917 = vmatpush1.msra.mxu0 0.0
    %918 = vmatprep.subr.mxu0 0.0
    %919 = vmatpush1.msra.mxu0 0.0
    %920 = vmatprep.subr.mxu0 0.0
    %921 = vmatpush1.msra.mxu0 0.0
    %922 = vmatprep.subr.mxu0 0.0
    %923 = vmatpush1.msra.mxu0 0.0
    %924 = vmatprep.subr.mxu0 0.0
    %925 = vmatpush1.msra.mxu0 0.0
    %926 = vmatprep.subr.mxu0 0.0
    %927 = vmatpush1.msra.mxu0 0.0
    %928 = vmatprep.subr.mxu0 0.0
    %929 = vmatpush1.msra.mxu0 0.0
    %930 = vmatprep.subr.mxu0 0.0
    %931 = vmatpush1.msra.mxu0 0.0
    %932 = vmatprep.subr.mxu0 0.0
    %933 = vmatpush1.msra.mxu0 0.0
    %934 = vmatprep.subr.mxu0 0.0
    %935 = vmatpush1.msra.mxu0 0.0
    %936 = vmatprep.mubr.f32.mxu0 0.0
    %937 = vmatmul.mubr.f32.gmra.mrb[0].mxu0 %v442
    %v938 = vpop.f32.mrb[0].mxu0
    %v939 = vadd.f32 0.0, %v938
    %v940 = vpop.f32.mrb[0].mxu0
    %941 = vmatprep.mubr.f32.mxu0 0.0
    %942 = vmatmul.mubr.f32.gmra.mrb[0].mxu0 %v445
    %v943 = vpop.f32.mrb[0].mxu0
    %v944 = vadd.f32 0.0, %v943
    %v945 = vpop.f32.mrb[0].mxu0
    %946 = vmatprep.mubr.f32.mxu0 0.0
    %947 = vmatmul.mubr.f32.gmra.mrb[0].mxu0 %v448
    %v948 = vpop.f32.mrb[0].mxu0
    %v949 = vadd.f32 0.0, %v948
    %v950 = vpop.f32.mrb[0].mxu0
    %951 = vmatprep.mubr.f32.mxu0 0.0
    %952 = vmatmul.mubr.f32.gmra.mrb[0].mxu0 %v451
    %v953 = vpop.f32.mrb[0].mxu0
    %v954 = vadd.f32 0.0, %v953
    %v955 = vpop.f32.mrb[0].mxu0
    %956 = vdwg.mxu0
    %v957 = vadd.f32 %v842, %v939
    %v958 = vadd.f32 %v847, %v944
    %v959 = vadd.f32 %v852, %v949
    %v960 = vadd.f32 %v857, %v954
    %v961 = vld [vmem:[%s11] sm:$0x1]
    %v963 = vlaneseq
    %v964 = vshrl.u32 %v963, 7
    %v965 = vsub.s32 0, %v964
    %v966 = vrot.slane %v961, %v965
    %v968 = vadd.f32 %v957, %v966
    %v969 = vadd.f32 %v958, %v966
    %v970 = vadd.f32 %v959, %v966
    %v971 = vadd.f32 %v960, %v966
    %v972 = vmul.f32 %v968, %v556
    %v973 = vmul.f32 %v969, %v561
    %v974 = vmul.f32 %v970, %v566
    %v975 = vmul.f32 %v971, %v571
    %v976 = vsel %vm331, %v972, 0.0
    %v977 = vsel %vm331, %v973, 0.0
    %v978 = vadd.f32 %v976, %v977
    %v979 = vsel %vm331, %v974, 0.0
    %v980 = vadd.f32 %v978, %v979
    %v981 = vsel %vm331, %v975, 0.0
    %v982 = vadd.f32 %v980, %v981
    %v983 = vrot.slane %v982, 4
    %v984 = vadd.f32 %v982, %v983
    %v985 = vrot.slane %v984, 2
    %v986 = vadd.f32 %v984, %v985
    %v987 = vrot.slane %v986, 1
    %v988 = vadd.f32 %v986, %v987
    %v989 = vmul.f32 %v988, 0.0625
    %v990 = vsub.f32 %v968, %v989
    %v991 = vsub.f32 %v969, %v989
    %v992 = vsub.f32 %v970, %v989
    %v993 = vsub.f32 %v971, %v989
    %v994 = vmul.f32 %v990, %v990
    %v995 = vmul.f32 %v991, %v991
    %v996 = vmul.f32 %v992, %v992
    %v997 = vmul.f32 %v993, %v993
    %v998 = vmul.f32 %v994, %v556
    %v999 = vmul.f32 %v995, %v561
    %v1000 = vmul.f32 %v996, %v566
    %v1001 = vmul.f32 %v997, %v571
    %v1002 = vsel %vm331, %v998, 0.0
    %v1003 = vsel %vm331, %v999, 0.0
    %v1004 = vadd.f32 %v1002, %v1003
    %v1005 = vsel %vm331, %v1000, 0.0
    %v1006 = vadd.f32 %v1004, %v1005
    %v1007 = vsel %vm331, %v1001, 0.0
    %v1008 = vadd.f32 %v1006, %v1007
    %v1009 = vrot.slane %v1008, 4
    %v1010 = vadd.f32 %v1008, %v1009
    %v1011 = vrot.slane %v1010, 2
    %v1012 = vadd.f32 %v1010, %v1011
    %v1013 = vrot.slane %v1012, 1
    %v1014 = vadd.f32 %v1012, %v1013
    %v1015 = vmul.f32 %v1014, 0.0625
    %v1016 = vadd.f32 %v1015, 1e-05
    %v1017 = vrsqrt.pop %v1016
    %v1018 = vld [vmem:[%s12] sm:$0x1]
    %v1019 = vmul.f32 %v1017, %v1018
    %v1020 = vld [vmem:[%s13] sm:$0x1]
    %v1021 = vmul.f32 %v989, %v1019
    %v1022 = vsub.f32 %v1020, %v1021
    %v1023 = vlaneseq
    %v1024 = vshrl.u32 %v1023, 7
    %v1025 = vsub.s32 0, %v1024
    %v1026 = vrot.slane %v1019, %v1025
    %v1027 = vmul.f32 %v968, %v1026
    %v1028 = vmul.f32 %v969, %v1026
    %v1029 = vmul.f32 %v970, %v1026
    %v1030 = vmul.f32 %v971, %v1026
    %v1032 = vlaneseq
    %v1033 = vshrl.u32 %v1032, 7
    %v1034 = vsub.s32 0, %v1033
    %v1035 = vrot.slane %v1022, %v1034
    %v1037 = vadd.f32 %v1027, %v1035
    %v1038 = vadd.f32 %v1028, %v1035
    %v1039 = vadd.f32 %v1029, %v1035
    %v1040 = vadd.f32 %v1030, %v1035
    %vm1041 = vcmp.gt.f32.partialorder %v1037, 0.0
    %vm1042 = vcmp.gt.f32.partialorder %v1038, 0.0
    %vm1043 = vcmp.gt.f32.partialorder %v1039, 0.0
    %vm1044 = vcmp.gt.f32.partialorder %v1040, 0.0
    %v1045 = vmul.f32 %v1037, 0.3
    %v1046 = vmul.f32 %v1038, 0.3
    %v1047 = vmul.f32 %v1039, 0.3
    %v1048 = vmul.f32 %v1040, 0.3
    %v1049 = vsel %vm1041, %v1037, %v1045
    %v1050 = vsel %vm1042, %v1038, %v1046
    %v1051 = vsel %vm1043, %v1039, %v1047
    %v1052 = vsel %vm1044, %v1040, %v1048
    %v1053 = vmul.f32 %v1049, %v556
    %v1054 = vmul.f32 %v1050, %v561
    %v1055 = vmul.f32 %v1051, %v566
    %v1056 = vmul.f32 %v1052, %v571
    %v1057 = vld [vmem:[%s14] sm:$0xff]
    %v1058 = vld [vmem:[%s14 + $0x8] sm:$0xff]
    %v1059 = vld [vmem:[%s14 + $0x10] sm:$0xff]
    %v1060 = vld [vmem:[%s14 + $0x18] sm:$0xff]
    %v1062 = vsel %vm331, %v1053, 0
    %v1065 = vsel %vm331, %v1054, 0
    %v1068 = vsel %vm331, %v1055, 0
    %v1071 = vsel %vm331, %v1056, 0
    %1073 = vmatprep.subr.mxu0 0.0
    %1074 = vmatpush1.msra.mxu0 %v1057
    %1075 = vmatprep.subr.mxu0 0.0
    %1076 = vmatpush1.msra.mxu0 %v1058
    %1077 = vmatprep.subr.mxu0 0.0
    %1078 = vmatpush1.msra.mxu0 %v1059
    %1079 = vmatprep.subr.mxu0 0.0
    %1080 = vmatpush1.msra.mxu0 %v1060
    %1081 = vmatprep.subr.mxu0 0.0
    %1082 = vmatpush1.msra.mxu0 0.0
    %1083 = vmatprep.subr.mxu0 0.0
    %1084 = vmatpush1.msra.mxu0 0.0
    %1085 = vmatprep.subr.mxu0 0.0
    %1086 = vmatpush1.msra.mxu0 0.0
    %1087 = vmatprep.subr.mxu0 0.0
    %1088 = vmatpush1.msra.mxu0 0.0
    %1089 = vmatprep.subr.mxu0 0.0
    %1090 = vmatpush1.msra.mxu0 0.0
    %1091 = vmatprep.subr.mxu0 0.0
    %1092 = vmatpush1.msra.mxu0 0.0
    %1093 = vmatprep.subr.mxu0 0.0
    %1094 = vmatpush1.msra.mxu0 0.0
    %1095 = vmatprep.subr.mxu0 0.0
    %1096 = vmatpush1.msra.mxu0 0.0
    %1097 = vmatprep.subr.mxu0 0.0
    %1098 = vmatpush1.msra.mxu0 0.0
    %1099 = vmatprep.subr.mxu0 0.0
    %1100 = vmatpush1.msra.mxu0 0.0
    %1101 = vmatprep.subr.mxu0 0.0
    %1102 = vmatpush1.msra.mxu0 0.0
    %1103 = vmatprep.subr.mxu0 0.0
    %1104 = vmatpush1.msra.mxu0 0.0
    %1105 = vmatprep.subr.mxu0 0.0
    %1106 = vmatpush1.msra.mxu0 0.0
    %1107 = vmatprep.subr.mxu0 0.0
    %1108 = vmatpush1.msra.mxu0 0.0
    %1109 = vmatprep.subr.mxu0 0.0
    %1110 = vmatpush1.msra.mxu0 0.0
    %1111 = vmatprep.subr.mxu0 0.0
    %1112 = vmatpush1.msra.mxu0 0.0
    %1113 = vmatprep.subr.mxu0 0.0
    %1114 = vmatpush1.msra.mxu0 0.0
    %1115 = vmatprep.subr.mxu0 0.0
    %1116 = vmatpush1.msra.mxu0 0.0
    %1117 = vmatprep.subr.mxu0 0.0
    %1118 = vmatpush1.msra.mxu0 0.0
    %1119 = vmatprep.subr.mxu0 0.0
    %1120 = vmatpush1.msra.mxu0 0.0
    %1121 = vmatprep.subr.mxu0 0.0
    %1122 = vmatpush1.msra.mxu0 0.0
    %1123 = vmatprep.subr.mxu0 0.0
    %1124 = vmatpush1.msra.mxu0 0.0
    %1125 = vmatprep.subr.mxu0 0.0
    %1126 = vmatpush1.msra.mxu0 0.0
    %1127 = vmatprep.subr.mxu0 0.0
    %1128 = vmatpush1.msra.mxu0 0.0
    %1129 = vmatprep.subr.mxu0 0.0
    %1130 = vmatpush1.msra.mxu0 0.0
    %1131 = vmatprep.subr.mxu0 0.0
    %1132 = vmatpush1.msra.mxu0 0.0
    %1133 = vmatprep.subr.mxu0 0.0
    %1134 = vmatpush1.msra.mxu0 0.0
    %1135 = vmatprep.subr.mxu0 0.0
    %1136 = vmatpush1.msra.mxu0 0.0
    %1137 = vmatprep.mubr.f32.mxu0 0.0
    %1138 = vmatmul.mubr.f32.gmra.mrb[0].mxu0 %v1062
    %v1139 = vpop.f32.mrb[0].mxu0
    %v1140 = vadd.f32 0.0, %v1139
    %v1141 = vpop.f32.mrb[0].mxu0
    %1142 = vmatprep.mubr.f32.mxu0 0.0
    %1143 = vmatmul.mubr.f32.gmra.mrb[0].mxu0 %v1065
    %v1144 = vpop.f32.mrb[0].mxu0
    %v1145 = vadd.f32 0.0, %v1144
    %v1146 = vpop.f32.mrb[0].mxu0
    %1147 = vmatprep.mubr.f32.mxu0 0.0
    %1148 = vmatmul.mubr.f32.gmra.mrb[0].mxu0 %v1068
    %v1149 = vpop.f32.mrb[0].mxu0
    %v1150 = vadd.f32 0.0, %v1149
    %v1151 = vpop.f32.mrb[0].mxu0
    %1152 = vmatprep.mubr.f32.mxu0 0.0
    %1153 = vmatmul.mubr.f32.gmra.mrb[0].mxu0 %v1071
    %v1154 = vpop.f32.mrb[0].mxu0
    %v1155 = vadd.f32 0.0, %v1154
    %v1156 = vpop.f32.mrb[0].mxu0
    %1157 = vdwg.mxu0
    %1162 = vrot.lane.b32.xlu0 %v1140, 96
    %v1163 = vpop.permute.xlu0 %1162
    %1164 = vrot.lane.b32.xlu0 %v1145, 96
    %v1165 = vpop.permute.xlu0 %1164
    %1166 = vrot.lane.b32.xlu0 %v1150, 96
    %v1167 = vpop.permute.xlu0 %1166
    %1168 = vrot.lane.b32.xlu0 %v1155, 96
    %v1169 = vpop.permute.xlu0 %1168
    %1174 = vmatprep.subr.mxu0 0.0
    %1175 = vmatpush1.msra.mxu0 %v1140
    %1176 = vmatprep.subr.mxu0 0.0
    %1177 = vmatpush1.msra.mxu0 %v1145
    %1178 = vmatprep.subr.mxu0 0.0
    %1179 = vmatpush1.msra.mxu0 %v1150
    %1180 = vmatprep.subr.mxu0 0.0
    %1181 = vmatpush1.msra.mxu0 %v1155
    %1182 = vmatprep.subr.mxu0 0.0
    %1183 = vmatpush1.msra.mxu0 0.0
    %1184 = vmatprep.subr.mxu0 0.0
    %1185 = vmatpush1.msra.mxu0 0.0
    %1186 = vmatprep.subr.mxu0 0.0
    %1187 = vmatpush1.msra.mxu0 0.0
    %1188 = vmatprep.subr.mxu0 0.0
    %1189 = vmatpush1.msra.mxu0 0.0
    %1190 = vmatprep.subr.mxu0 0.0
    %1191 = vmatpush1.msra.mxu0 0.0
    %1192 = vmatprep.subr.mxu0 0.0
    %1193 = vmatpush1.msra.mxu0 0.0
    %1194 = vmatprep.subr.mxu0 0.0
    %1195 = vmatpush1.msra.mxu0 0.0
    %1196 = vmatprep.subr.mxu0 0.0
    %1197 = vmatpush1.msra.mxu0 0.0
    %1198 = vmatprep.subr.mxu0 0.0
    %1199 = vmatpush1.msra.mxu0 0.0
    %1200 = vmatprep.subr.mxu0 0.0
    %1201 = vmatpush1.msra.mxu0 0.0
    %1202 = vmatprep.subr.mxu0 0.0
    %1203 = vmatpush1.msra.mxu0 0.0
    %1204 = vmatprep.subr.mxu0 0.0
    %1205 = vmatpush1.msra.mxu0 0.0
    %1206 = vmatprep.subr.mxu0 0.0
    %1207 = vmatpush1.msra.mxu0 0.0
    %1208 = vmatprep.subr.mxu0 0.0
    %1209 = vmatpush1.msra.mxu0 0.0
    %1210 = vmatprep.subr.mxu0 0.0
    %1211 = vmatpush1.msra.mxu0 0.0
    %1212 = vmatprep.subr.mxu0 0.0
    %1213 = vmatpush1.msra.mxu0 0.0
    %1214 = vmatprep.subr.mxu0 0.0
    %1215 = vmatpush1.msra.mxu0 0.0
    %1216 = vmatprep.subr.mxu0 0.0
    %1217 = vmatpush1.msra.mxu0 0.0
    %1218 = vmatprep.subr.mxu0 0.0
    %1219 = vmatpush1.msra.mxu0 0.0
    %1220 = vmatprep.subr.mxu0 0.0
    %1221 = vmatpush1.msra.mxu0 0.0
    %1222 = vmatprep.subr.mxu0 0.0
    %1223 = vmatpush1.msra.mxu0 0.0
    %1224 = vmatprep.subr.mxu0 0.0
    %1225 = vmatpush1.msra.mxu0 0.0
    %1226 = vmatprep.subr.mxu0 0.0
    %1227 = vmatpush1.msra.mxu0 0.0
    %1228 = vmatprep.subr.mxu0 0.0
    %1229 = vmatpush1.msra.mxu0 0.0
    %1230 = vmatprep.subr.mxu0 0.0
    %1231 = vmatpush1.msra.mxu0 0.0
    %1232 = vmatprep.subr.mxu0 0.0
    %1233 = vmatpush1.msra.mxu0 0.0
    %1234 = vmatprep.subr.mxu0 0.0
    %1235 = vmatpush1.msra.mxu0 0.0
    %1236 = vmatprep.subr.mxu0 0.0
    %1237 = vmatpush1.msra.mxu0 0.0
    %1238 = vmatprep.mubr.f32.mxu0 0.0
    %1239 = vmatmul.mubr.f32.gmra.mrb[0].mxu0 %v333
    %v1240 = vpop.f32.mrb[0].mxu0
    %v1241 = vadd.f32 %v1163, %v1240
    %v1242 = vpop.f32.mrb[0].mxu0
    %1243 = vmatprep.mubr.f32.mxu0 0.0
    %1244 = vmatmul.mubr.f32.gmra.mrb[0].mxu0 %v336
    %v1245 = vpop.f32.mrb[0].mxu0
    %v1246 = vadd.f32 %v1165, %v1245
    %v1247 = vpop.f32.mrb[0].mxu0
    %1248 = vmatprep.mubr.f32.mxu0 0.0
    %1249 = vmatmul.mubr.f32.gmra.mrb[0].mxu0 %v339
    %v1250 = vpop.f32.mrb[0].mxu0
    %v1251 = vadd.f32 %v1167, %v1250
    %v1252 = vpop.f32.mrb[0].mxu0
    %1253 = vmatprep.mubr.f32.mxu0 0.0
    %1254 = vmatmul.mubr.f32.gmra.mrb[0].mxu0 %v342
    %v1255 = vpop.f32.mrb[0].mxu0
    %v1256 = vadd.f32 %v1169, %v1255
    %v1257 = vpop.f32.mrb[0].mxu0
    %1258 = vdwg.mxu0
    %1259 = vrot.lane.b32.xlu0 %v1140, 64
    %v1260 = vpop.permute.xlu0 %1259
    %1261 = vrot.lane.b32.xlu0 %v1145, 64
    %v1262 = vpop.permute.xlu0 %1261
    %1263 = vrot.lane.b32.xlu0 %v1150, 64
    %v1264 = vpop.permute.xlu0 %1263
    %1265 = vrot.lane.b32.xlu0 %v1155, 64
    %v1266 = vpop.permute.xlu0 %1265
    %1271 = vmatprep.subr.mxu0 0.0
    %1272 = vmatpush1.msra.mxu0 %v1260
    %1273 = vmatprep.subr.mxu0 0.0
    %1274 = vmatpush1.msra.mxu0 %v1262
    %1275 = vmatprep.subr.mxu0 0.0
    %1276 = vmatpush1.msra.mxu0 %v1264
    %1277 = vmatprep.subr.mxu0 0.0
    %1278 = vmatpush1.msra.mxu0 %v1266
    %1279 = vmatprep.subr.mxu0 0.0
    %1280 = vmatpush1.msra.mxu0 0.0
    %1281 = vmatprep.subr.mxu0 0.0
    %1282 = vmatpush1.msra.mxu0 0.0
    %1283 = vmatprep.subr.mxu0 0.0
    %1284 = vmatpush1.msra.mxu0 0.0
    %1285 = vmatprep.subr.mxu0 0.0
    %1286 = vmatpush1.msra.mxu0 0.0
    %1287 = vmatprep.subr.mxu0 0.0
    %1288 = vmatpush1.msra.mxu0 0.0
    %1289 = vmatprep.subr.mxu0 0.0
    %1290 = vmatpush1.msra.mxu0 0.0
    %1291 = vmatprep.subr.mxu0 0.0
    %1292 = vmatpush1.msra.mxu0 0.0
    %1293 = vmatprep.subr.mxu0 0.0
    %1294 = vmatpush1.msra.mxu0 0.0
    %1295 = vmatprep.subr.mxu0 0.0
    %1296 = vmatpush1.msra.mxu0 0.0
    %1297 = vmatprep.subr.mxu0 0.0
    %1298 = vmatpush1.msra.mxu0 0.0
    %1299 = vmatprep.subr.mxu0 0.0
    %1300 = vmatpush1.msra.mxu0 0.0
    %1301 = vmatprep.subr.mxu0 0.0
    %1302 = vmatpush1.msra.mxu0 0.0
    %1303 = vmatprep.subr.mxu0 0.0
    %1304 = vmatpush1.msra.mxu0 0.0
    %1305 = vmatprep.subr.mxu0 0.0
    %1306 = vmatpush1.msra.mxu0 0.0
    %1307 = vmatprep.subr.mxu0 0.0
    %1308 = vmatpush1.msra.mxu0 0.0
    %1309 = vmatprep.subr.mxu0 0.0
    %1310 = vmatpush1.msra.mxu0 0.0
    %1311 = vmatprep.subr.mxu0 0.0
    %1312 = vmatpush1.msra.mxu0 0.0
    %1313 = vmatprep.subr.mxu0 0.0
    %1314 = vmatpush1.msra.mxu0 0.0
    %1315 = vmatprep.subr.mxu0 0.0
    %1316 = vmatpush1.msra.mxu0 0.0
    %1317 = vmatprep.subr.mxu0 0.0
    %1318 = vmatpush1.msra.mxu0 0.0
    %1319 = vmatprep.subr.mxu0 0.0
    %1320 = vmatpush1.msra.mxu0 0.0
    %1321 = vmatprep.subr.mxu0 0.0
    %1322 = vmatpush1.msra.mxu0 0.0
    %1323 = vmatprep.subr.mxu0 0.0
    %1324 = vmatpush1.msra.mxu0 0.0
    %1325 = vmatprep.subr.mxu0 0.0
    %1326 = vmatpush1.msra.mxu0 0.0
    %1327 = vmatprep.subr.mxu0 0.0
    %1328 = vmatpush1.msra.mxu0 0.0
    %1329 = vmatprep.subr.mxu0 0.0
    %1330 = vmatpush1.msra.mxu0 0.0
    %1331 = vmatprep.subr.mxu0 0.0
    %1332 = vmatpush1.msra.mxu0 0.0
    %1333 = vmatprep.subr.mxu0 0.0
    %1334 = vmatpush1.msra.mxu0 0.0
    %1335 = vmatprep.mubr.f32.mxu0 0.0
    %1336 = vmatmul.mubr.f32.gmra.mrb[0].mxu0 %v442
    %v1337 = vpop.f32.mrb[0].mxu0
    %v1338 = vadd.f32 0.0, %v1337
    %v1339 = vpop.f32.mrb[0].mxu0
    %1340 = vmatprep.mubr.f32.mxu0 0.0
    %1341 = vmatmul.mubr.f32.gmra.mrb[0].mxu0 %v445
    %v1342 = vpop.f32.mrb[0].mxu0
    %v1343 = vadd.f32 0.0, %v1342
    %v1344 = vpop.f32.mrb[0].mxu0
    %1345 = vmatprep.mubr.f32.mxu0 0.0
    %1346 = vmatmul.mubr.f32.gmra.mrb[0].mxu0 %v448
    %v1347 = vpop.f32.mrb[0].mxu0
    %v1348 = vadd.f32 0.0, %v1347
    %v1349 = vpop.f32.mrb[0].mxu0
    %1350 = vmatprep.mubr.f32.mxu0 0.0
    %1351 = vmatmul.mubr.f32.gmra.mrb[0].mxu0 %v451
    %v1352 = vpop.f32.mrb[0].mxu0
    %v1353 = vadd.f32 0.0, %v1352
    %v1354 = vpop.f32.mrb[0].mxu0
    %1355 = vdwg.mxu0
    %v1356 = vadd.f32 %v1241, %v1338
    %v1357 = vadd.f32 %v1246, %v1343
    %v1358 = vadd.f32 %v1251, %v1348
    %v1359 = vadd.f32 %v1256, %v1353
    %v1360 = vld [vmem:[#allocation3] sm:$0x1]
    %v1362 = vlaneseq
    %v1363 = vshrl.u32 %v1362, 7
    %v1364 = vsub.s32 0, %v1363
    %v1365 = vrot.slane %v1360, %v1364
    %v1367 = vadd.f32 %v1356, %v1365
    %v1368 = vadd.f32 %v1357, %v1365
    %v1369 = vadd.f32 %v1358, %v1365
    %v1370 = vadd.f32 %v1359, %v1365
    %v1371 = vmul.f32 %v1367, %v556
    %v1372 = vmul.f32 %v1368, %v561
    %v1373 = vmul.f32 %v1369, %v566
    %v1374 = vmul.f32 %v1370, %v571
    %v1375 = vsel %vm331, %v1371, 0.0
    %v1376 = vsel %vm331, %v1372, 0.0
    %v1377 = vadd.f32 %v1375, %v1376
    %v1378 = vsel %vm331, %v1373, 0.0
    %v1379 = vadd.f32 %v1377, %v1378
    %v1380 = vsel %vm331, %v1374, 0.0
    %v1381 = vadd.f32 %v1379, %v1380
    %v1382 = vrot.slane %v1381, 4
    %v1383 = vadd.f32 %v1381, %v1382
    %v1384 = vrot.slane %v1383, 2
    %v1385 = vadd.f32 %v1383, %v1384
    %v1386 = vrot.slane %v1385, 1
    %v1387 = vadd.f32 %v1385, %v1386
    %v1388 = vmul.f32 %v1387, 0.0625
    %v1389 = vsub.f32 %v1367, %v1388
    %v1390 = vsub.f32 %v1368, %v1388
    %v1391 = vsub.f32 %v1369, %v1388
    %v1392 = vsub.f32 %v1370, %v1388
    %v1393 = vmul.f32 %v1389, %v1389
    %v1394 = vmul.f32 %v1390, %v1390
    %v1395 = vmul.f32 %v1391, %v1391
    %v1396 = vmul.f32 %v1392, %v1392
    %v1397 = vmul.f32 %v1393, %v556
    %v1398 = vmul.f32 %v1394, %v561
    %v1399 = vmul.f32 %v1395, %v566
    %v1400 = vmul.f32 %v1396, %v571
    %v1401 = vsel %vm331, %v1397, 0.0
    %v1402 = vsel %vm331, %v1398, 0.0
    %v1403 = vadd.f32 %v1401, %v1402
    %v1404 = vsel %vm331, %v1399, 0.0
    %v1405 = vadd.f32 %v1403, %v1404
    %v1406 = vsel %vm331, %v1400, 0.0
    %v1407 = vadd.f32 %v1405, %v1406
    %v1408 = vrot.slane %v1407, 4
    %v1409 = vadd.f32 %v1407, %v1408
    %v1410 = vrot.slane %v1409, 2
    %v1411 = vadd.f32 %v1409, %v1410
    %v1412 = vrot.slane %v1411, 1
    %v1413 = vadd.f32 %v1411, %v1412
    %v1414 = vmul.f32 %v1413, 0.0625
    %v1415 = vadd.f32 %v1414, 1e-05
    %v1416 = vrsqrt.pop %v1415
    %v1417 = vld [vmem:[#allocation6] sm:$0x1]
    %v1418 = vmul.f32 %v1416, %v1417
    %v1419 = vld [vmem:[#allocation8] sm:$0x1]
    %v1420 = vmul.f32 %v1388, %v1418
    %v1421 = vsub.f32 %v1419, %v1420
    %v1422 = vlaneseq
    %v1423 = vshrl.u32 %v1422, 7
    %v1424 = vsub.s32 0, %v1423
    %v1425 = vrot.slane %v1418, %v1424
    %v1426 = vmul.f32 %v1367, %v1425
    %v1427 = vmul.f32 %v1368, %v1425
    %v1428 = vmul.f32 %v1369, %v1425
    %v1429 = vmul.f32 %v1370, %v1425
    %v1431 = vlaneseq
    %v1432 = vshrl.u32 %v1431, 7
    %v1433 = vsub.s32 0, %v1432
    %v1434 = vrot.slane %v1421, %v1433
    %v1436 = vadd.f32 %v1426, %v1434
    %v1437 = vadd.f32 %v1427, %v1434
    %v1438 = vadd.f32 %v1428, %v1434
    %v1439 = vadd.f32 %v1429, %v1434
    %vm1440 = vcmp.gt.f32.partialorder %v1436, 0.0
    %vm1441 = vcmp.gt.f32.partialorder %v1437, 0.0
    %vm1442 = vcmp.gt.f32.partialorder %v1438, 0.0
    %vm1443 = vcmp.gt.f32.partialorder %v1439, 0.0
    %v1444 = vmul.f32 %v1436, 0.3
    %v1445 = vmul.f32 %v1437, 0.3
    %v1446 = vmul.f32 %v1438, 0.3
    %v1447 = vmul.f32 %v1439, 0.3
    %v1448 = vsel %vm1440, %v1436, %v1444
    %v1449 = vsel %vm1441, %v1437, %v1445
    %v1450 = vsel %vm1442, %v1438, %v1446
    %v1451 = vsel %vm1443, %v1439, %v1447
    %v1452 = vmul.f32 %v1448, %v556
    %v1453 = vmul.f32 %v1449, %v561
    %v1454 = vmul.f32 %v1450, %v566
    %v1455 = vmul.f32 %v1451, %v571
    %v1456 = vld [vmem:[%s5] sm:$0x3]
    %v1458 = vsel %vm331, %v1456, 0
    %1460 = vmatprep.subr.mxu0 0.0
    %1461 = vmatpush1.msra.mxu0 %v1452
    %1462 = vmatprep.subr.mxu0 0.0
    %1463 = vmatpush1.msra.mxu0 %v1453
    %1464 = vmatprep.subr.mxu0 0.0
    %1465 = vmatpush1.msra.mxu0 %v1454
    %1466 = vmatprep.subr.mxu0 0.0
    %1467 = vmatpush1.msra.mxu0 %v1455
    %1468 = vmatprep.subr.mxu0 0.0
    %1469 = vmatpush1.msra.mxu0 0.0
    %1470 = vmatprep.subr.mxu0 0.0
    %1471 = vmatpush1.msra.mxu0 0.0
    %1472 = vmatprep.subr.mxu0 0.0
    %1473 = vmatpush1.msra.mxu0 0.0
    %1474 = vmatprep.subr.mxu0 0.0
    %1475 = vmatpush1.msra.mxu0 0.0
    %1476 = vmatprep.subr.mxu0 0.0
    %1477 = vmatpush1.msra.mxu0 0.0
    %1478 = vmatprep.subr.mxu0 0.0
    %1479 = vmatpush1.msra.mxu0 0.0
    %1480 = vmatprep.subr.mxu0 0.0
    %1481 = vmatpush1.msra.mxu0 0.0
    %1482 = vmatprep.subr.mxu0 0.0
    %1483 = vmatpush1.msra.mxu0 0.0
    %1484 = vmatprep.subr.mxu0 0.0
    %1485 = vmatpush1.msra.mxu0 0.0
    %1486 = vmatprep.subr.mxu0 0.0
    %1487 = vmatpush1.msra.mxu0 0.0
    %1488 = vmatprep.subr.mxu0 0.0
    %1489 = vmatpush1.msra.mxu0 0.0
    %1490 = vmatprep.subr.mxu0 0.0
    %1491 = vmatpush1.msra.mxu0 0.0
    %1492 = vmatprep.subr.mxu0 0.0
    %1493 = vmatpush1.msra.mxu0 0.0
    %1494 = vmatprep.subr.mxu0 0.0
    %1495 = vmatpush1.msra.mxu0 0.0
    %1496 = vmatprep.subr.mxu0 0.0
    %1497 = vmatpush1.msra.mxu0 0.0
    %1498 = vmatprep.subr.mxu0 0.0
    %1499 = vmatpush1.msra.mxu0 0.0
    %1500 = vmatprep.subr.mxu0 0.0
    %1501 = vmatpush1.msra.mxu0 0.0
    %1502 = vmatprep.subr.mxu0 0.0
    %1503 = vmatpush1.msra.mxu0 0.0
    %1504 = vmatprep.subr.mxu0 0.0
    %1505 = vmatpush1.msra.mxu0 0.0
    %1506 = vmatprep.subr.mxu0 0.0
    %1507 = vmatpush1.msra.mxu0 0.0
    %1508 = vmatprep.subr.mxu0 0.0
    %1509 = vmatpush1.msra.mxu0 0.0
    %1510 = vmatprep.subr.mxu0 0.0
    %1511 = vmatpush1.msra.mxu0 0.0
    %1512 = vmatprep.subr.mxu0 0.0
    %1513 = vmatpush1.msra.mxu0 0.0
    %1514 = vmatprep.subr.mxu0 0.0
    %1515 = vmatpush1.msra.mxu0 0.0
    %1516 = vmatprep.subr.mxu0 0.0
    %1517 = vmatpush1.msra.mxu0 0.0
    %1518 = vmatprep.subr.mxu0 0.0
    %1519 = vmatpush1.msra.mxu0 0.0
    %1520 = vmatprep.subr.mxu0 0.0
    %1521 = vmatpush1.msra.mxu0 0.0
    %1522 = vmatprep.subr.mxu0 0.0
    %1523 = vmatpush1.msra.mxu0 0.0
    %1524 = vmatprep.mubr.f32.mxu0 0.0
    %1525 = vmatmul.mubr.f32.gmra.mrb[0].mxu0 %v1458
    %v1526 = vpop.f32.mrb[0].mxu0
    %v1527 = vadd.f32 0.0, %v1526
    %v1528 = vpop.f32.mrb[0].mxu0
    %1529 = vdwg.mxu0
    %v1530 = vlaneseq
    %v1531 = vand.u32 %v1530, 127
    %v1532 = vadd.s32 %v1531, 128
    %vm1533 = vcmp.lt.s32.totalorder %v1531, 0
    %v1534 = vsub.s32 0, %v1531
    %v1535 = vsel %vm1533, %v1534, %v1531
    %v1536 = vshrl.u32 %v1535, 6
    %v1537 = vand.u32 %v1535, 63
    %v1538 = vsub.s32 0, %v1537
    %v1539 = vsel %vm1533, %v1538, %v1537
    %vm1540 = vcmp.lt.s32.totalorder %v1532, 0
    %v1541 = vsub.s32 0, %v1532
    %v1542 = vsel %vm1540, %v1541, %v1532
    %v1543 = vshrl.u32 %v1542, 6
    %v1544 = vand.u32 %v1542, 63
    %v1545 = vsub.s32 0, %v1544
    %v1546 = vsel %vm1540, %v1545, %v1544
    %vm1547 = vcmp.ne.s32.totalorder %v1539, 0
    %vm1548 = vcmp.ne.s32.totalorder %v1546, 0
    %vm1549 = vcmp.lt.s32.totalorder %v1539, 0
    %vm1550 = vcmp.lt.s32.totalorder %v1546, 0
    %vm1551 = vmand %vm1549, %vm1547
    %vm1552 = vmand %vm1550, %vm1548
    %v1553 = vadd.s32 %v1539, 64
    %v1554 = vadd.s32 %v1546, 64
    %v1555 = vsel %vm1551, %v1553, %v1539
    %v1556 = vsel %vm1552, %v1554, %v1546
    %vm1557 = vcmp.lt.s32.totalorder %v1555, 32
    %vm1558 = vcmp.lt.s32.totalorder %v1556, 32
    %v1559 = vld [vmem:[%s1] sm:$0xff]
    %v1560 = vld [vmem:[%s1 + $0x8] sm:$0xff]
    %v1561 = vld [vmem:[#allocation9] sm:$0xff]
    %v1562 = vld [vmem:[#allocation11] sm:$0x3]
    %v1564 = vlaneseq
    %v1565 = vshrl.u32 %v1564, 7
    %v1566 = vsub.s32 0, %v1565
    %v1567 = vrot.slane %v1562, %v1566
    %v1568 = vlaneseq
    %v1569 = vshrl.u32 %v1568, 7
    %v1570 = vsub.s32 1, %v1569
    %v1571 = vrot.slane %v1562, %v1570
    %v1575 = vcombine.high %v1561, %v1561
    %v1577 = vsel %vm213, %v1559, 0
    %v1580 = vsel %vm213, %v1560, 0
    %v1582 = vsel %vm226, %v1561, 0
    %v1584 = vsel %vm226, %v1575, 0
    %1586 = vmatprep.subr.mxu0 %v1584
    %1587 = vmatpush1.msra.mxu0 %v1582
    %1588 = vmatprep.subr.mxu0 0.0
    %1589 = vmatpush1.msra.mxu0 0.0
    %1590 = vmatprep.subr.mxu0 0.0
    %1591 = vmatpush1.msra.mxu0 0.0
    %1592 = vmatprep.subr.mxu0 0.0
    %1593 = vmatpush1.msra.mxu0 0.0
    %1594 = vmatprep.subr.mxu0 0.0
    %1595 = vmatpush1.msra.mxu0 0.0
    %1596 = vmatprep.subr.mxu0 0.0
    %1597 = vmatpush1.msra.mxu0 0.0
    %1598 = vmatprep.subr.mxu0 0.0
    %1599 = vmatpush1.msra.mxu0 0.0
    %1600 = vmatprep.subr.mxu0 0.0
    %1601 = vmatpush1.msra.mxu0 0.0
    %1602 = vmatprep.subr.mxu0 0.0
    %1603 = vmatpush1.msra.mxu0 0.0
    %1604 = vmatprep.subr.mxu0 0.0
    %1605 = vmatpush1.msra.mxu0 0.0
    %1606 = vmatprep.subr.mxu0 0.0
    %1607 = vmatpush1.msra.mxu0 0.0
    %1608 = vmatprep.subr.mxu0 0.0
    %1609 = vmatpush1.msra.mxu0 0.0
    %1610 = vmatprep.subr.mxu0 0.0
    %1611 = vmatpush1.msra.mxu0 0.0
    %1612 = vmatprep.subr.mxu0 0.0
    %1613 = vmatpush1.msra.mxu0 0.0
    %1614 = vmatprep.subr.mxu0 0.0
    %1615 = vmatpush1.msra.mxu0 0.0
    %1616 = vmatprep.subr.mxu0 0.0
    %1617 = vmatpush1.msra.mxu0 0.0
    %1618 = vmatprep.subr.mxu0 0.0
    %1619 = vmatpush1.msra.mxu0 0.0
    %1620 = vmatprep.subr.mxu0 0.0
    %1621 = vmatpush1.msra.mxu0 0.0
    %1622 = vmatprep.subr.mxu0 0.0
    %1623 = vmatpush1.msra.mxu0 0.0
    %1624 = vmatprep.subr.mxu0 0.0
    %1625 = vmatpush1.msra.mxu0 0.0
    %1626 = vmatprep.subr.mxu0 0.0
    %1627 = vmatpush1.msra.mxu0 0.0
    %1628 = vmatprep.subr.mxu0 0.0
    %1629 = vmatpush1.msra.mxu0 0.0
    %1630 = vmatprep.subr.mxu0 0.0
    %1631 = vmatpush1.msra.mxu0 0.0
    %1632 = vmatprep.subr.mxu0 0.0
    %1633 = vmatpush1.msra.mxu0 0.0
    %1634 = vmatprep.subr.mxu0 0.0
    %1635 = vmatpush1.msra.mxu0 0.0
    %1636 = vmatprep.subr.mxu0 0.0
    %1637 = vmatpush1.msra.mxu0 0.0
    %1638 = vmatprep.subr.mxu0 0.0
    %1639 = vmatpush1.msra.mxu0 0.0
    %1640 = vmatprep.subr.mxu0 0.0
    %1641 = vmatpush1.msra.mxu0 0.0
    %1642 = vmatprep.subr.mxu0 0.0
    %1643 = vmatpush1.msra.mxu0 0.0
    %1644 = vmatprep.subr.mxu0 0.0
    %1645 = vmatpush1.msra.mxu0 0.0
    %1646 = vmatprep.subr.mxu0 0.0
    %1647 = vmatpush1.msra.mxu0 0.0
    %1648 = vmatprep.subr.mxu0 0.0
    %1649 = vmatpush1.msra.mxu0 0.0
    %1650 = vmatprep.mubr.f32.mxu0 0.0
    %1651 = vmatmul.mubr.f32.gmra.mrb[0].mxu0 %v1577
    %v1652 = vpop.f32.mrb[0].mxu0
    %v1653 = vadd.f32 %v1567, %v1652
    %v1654 = vpop.f32.mrb[0].mxu0
    %v1655 = vadd.f32 %v1571, %v1654
    %1656 = vmatprep.mubr.f32.mxu0 0.0
    %1657 = vmatmul.mubr.f32.gmra.mrb[0].mxu0 %v1580
    %v1658 = vpop.f32.mrb[0].mxu0
    %v1659 = vadd.f32 %v1567, %v1658
    %v1660 = vpop.f32.mrb[0].mxu0
    %v1661 = vadd.f32 %v1571, %v1660
    %1662 = vdwg.mxu0
    %v1663 = vld [vmem:[%s20] sm:$0xff]
    %v1664 = vld [vmem:[%s20 + $0x8] sm:$0xff]
    %v1665 = vld [vmem:[%s20 + $0x10] sm:$0xff]
    %v1666 = vld [vmem:[%s20 + $0x18] sm:$0xff]
    %v1667 = vld [vmem:[%s20 + $0x20] sm:$0xff]
    %v1668 = vld [vmem:[%s20 + $0x28] sm:$0xff]
    %v1669 = vld [vmem:[%s20 + $0x30] sm:$0xff]
    %v1670 = vld [vmem:[%s20 + $0x38] sm:$0xff]
    %v1671 = vld [vmem:[%s20 + $0x40] sm:$0xff]
    %v1672 = vld [vmem:[%s20 + $0x48] sm:$0xff]
    %v1673 = vld [vmem:[%s20 + $0x50] sm:$0xff]
    %v1674 = vld [vmem:[%s20 + $0x58] sm:$0xff]
    %v1675 = vld [vmem:[%s20 + $0x60] sm:$0xff]
    %v1676 = vld [vmem:[%s20 + $0x68] sm:$0xff]
    %v1677 = vld [vmem:[%s20 + $0x70] sm:$0xff]
    %v1678 = vld [vmem:[%s20 + $0x78] sm:$0xff]
    %v1679 = vsel %vm1557, 1, 0
    %v1680 = vsel %vm1558, 1, 0
    %vm1681 = vcmp.eq.s32.totalorder %v1679, 1
    %vm1682 = vcmp.eq.s32.totalorder %v1680, 1
    %v1685 = vrot.slane %v1659, 6
    %v1686 = vrot.slane %v1661, 6
    %v1689 = vsel %vm1681, %v1653, %v1685
    %v1690 = vsel %vm1682, %v1655, %v1686
    %vm1691 = vcmask 523264
    %v1693 = vsel %vm1691, 0.0, 0
    %1695 = vmatprep.subr.mxu0 %v1664
    %1696 = vmatpush1.msra.mxu0 %v1663
    %1697 = vmatprep.subr.mxu0 %v1666
    %1698 = vmatpush1.msra.mxu0 %v1665
    %1699 = vmatprep.subr.mxu0 %v1668
    %1700 = vmatpush1.msra.mxu0 %v1667
    %1701 = vmatprep.subr.mxu0 %v1670
    %1702 = vmatpush1.msra.mxu0 %v1669
    %1703 = vmatprep.subr.mxu0 %v1672
    %1704 = vmatpush1.msra.mxu0 %v1671
    %1705 = vmatprep.subr.mxu0 %v1674
    %1706 = vmatpush1.msra.mxu0 %v1673
    %1707 = vmatprep.subr.mxu0 %v1676
    %1708 = vmatpush1.msra.mxu0 %v1675
    %1709 = vmatprep.subr.mxu0 %v1678
    %1710 = vmatpush1.msra.mxu0 %v1677
    %1711 = vmatprep.subr.mxu0 0.0
    %1712 = vmatpush1.msra.mxu0 0.0
    %1713 = vmatprep.subr.mxu0 0.0
    %1714 = vmatpush1.msra.mxu0 0.0
    %1715 = vmatprep.subr.mxu0 0.0
    %1716 = vmatpush1.msra.mxu0 0.0
    %1717 = vmatprep.subr.mxu0 0.0
    %1718 = vmatpush1.msra.mxu0 0.0
    %1719 = vmatprep.subr.mxu0 0.0
    %1720 = vmatpush1.msra.mxu0 0.0
    %1721 = vmatprep.subr.mxu0 0.0
    %1722 = vmatpush1.msra.mxu0 0.0
    %1723 = vmatprep.subr.mxu0 0.0
    %1724 = vmatpush1.msra.mxu0 0.0
    %1725 = vmatprep.subr.mxu0 0.0
    %1726 = vmatpush1.msra.mxu0 0.0
    %1727 = vmatprep.subr.mxu0 0.0
    %1728 = vmatpush1.msra.mxu0 0.0
    %1729 = vmatprep.subr.mxu0 0.0
    %1730 = vmatpush1.msra.mxu0 0.0
    %1731 = vmatprep.subr.mxu0 0.0
    %1732 = vmatpush1.msra.mxu0 0.0
    %1733 = vmatprep.subr.mxu0 0.0
    %1734 = vmatpush1.msra.mxu0 0.0
    %1735 = vmatprep.subr.mxu0 0.0
    %1736 = vmatpush1.msra.mxu0 0.0
    %1737 = vmatprep.subr.mxu0 0.0
    %1738 = vmatpush1.msra.mxu0 0.0
    %1739 = vmatprep.subr.mxu0 0.0
    %1740 = vmatpush1.msra.mxu0 0.0
    %1741 = vmatprep.subr.mxu0 0.0
    %1742 = vmatpush1.msra.mxu0 0.0
    %1743 = vmatprep.subr.mxu0 0.0
    %1744 = vmatpush1.msra.mxu0 0.0
    %1745 = vmatprep.subr.mxu0 0.0
    %1746 = vmatpush1.msra.mxu0 0.0
    %1747 = vmatprep.subr.mxu0 0.0
    %1748 = vmatpush1.msra.mxu0 0.0
    %1749 = vmatprep.subr.mxu0 0.0
    %1750 = vmatpush1.msra.mxu0 0.0
    %1751 = vmatprep.subr.mxu0 0.0
    %1752 = vmatpush1.msra.mxu0 0.0
    %1753 = vmatprep.subr.mxu0 0.0
    %1754 = vmatpush1.msra.mxu0 0.0
    %1755 = vmatprep.subr.mxu0 0.0
    %1756 = vmatpush1.msra.mxu0 0.0
    %1757 = vmatprep.subr.mxu0 0.0
    %1758 = vmatpush1.msra.mxu0 0.0
    %1759 = vmatprep.mubr.f32.mxu0 0.0
    %1760 = vmatmul.mubr.f32.gmra.mrb[0].mxu0 %v1693
    %v1761 = vpop.f32.mrb[0].mxu0
    %v1762 = vadd.f32 %v1689, %v1761
    %v1763 = vpop.f32.mrb[0].mxu0
    %v1764 = vadd.f32 %v1690, %v1763
    %1765 = vdwg.mxu0
    %v1766 = vmul.f32 %v1762, 0.5
    %v1767 = vtanh.pop %v1766
    %v1768 = vmul.f32 %v1767, 0.5
    %v1769 = vadd.f32 %v1768, 0.5
    %v1770 = vtanh.pop %v1764
    %v1771 = vmul.f32 %v1764, 0.5
    %v1772 = vtanh.pop %v1771
    %v1773 = vmul.f32 %v1772, 0.5
    %v1774 = vadd.f32 %v1773, 0.5
    %v1775 = vmul.f32 %v1769, 0.0
    %v1776 = vmul.f32 %v1769, %v1770
    %1778 = vrot.lane.b32.xlu0 %v1776, 64
    %v1779 = vpop.permute.xlu0 %1778
    %v1781 = vadd.f32 %v1775, %v1779
    %v1782 = vtanh.pop %v1781
    %v1783 = vmul.f32 %v1774, %v1782
    %1785 = vrot.lane.b32.xlu0 %v1783, 64
    %v1786 = vpop.permute.xlu0 %1785
    %vm1788 = vcmask 254976
    %1789 = vst.msk [vmem:[#allocation2] sm:$0x3] %vm1788, %v1786
    %vm1790 = vcmask 517376
    %1791 = vst.msk [vmem:[#allocation2 + $0xe] sm:$0x3] %vm1790, %v1786
    %v1792 = vrot.slane %v1659, 2
    %v1793 = vrot.slane %v1661, 2
    %v1796 = vsel %vm1681, %v1653, %v1792
    %v1797 = vsel %vm1682, %v1655, %v1793
    %v1800 = vrot.slane %v1796, 2
    %v1801 = vrot.slane %v1797, 2
    %v1804 = vsel %vm1691, %v1786, 0
    %1806 = vmatprep.subr.mxu0 %v1664
    %1807 = vmatpush1.msra.mxu0 %v1663
    %1808 = vmatprep.subr.mxu0 %v1666
    %1809 = vmatpush1.msra.mxu0 %v1665
    %1810 = vmatprep.subr.mxu0 %v1668
    %1811 = vmatpush1.msra.mxu0 %v1667
    %1812 = vmatprep.subr.mxu0 %v1670
    %1813 = vmatpush1.msra.mxu0 %v1669
    %1814 = vmatprep.subr.mxu0 %v1672
    %1815 = vmatpush1.msra.mxu0 %v1671
    %1816 = vmatprep.subr.mxu0 %v1674
    %1817 = vmatpush1.msra.mxu0 %v1673
    %1818 = vmatprep.subr.mxu0 %v1676
    %1819 = vmatpush1.msra.mxu0 %v1675
    %1820 = vmatprep.subr.mxu0 %v1678
    %1821 = vmatpush1.msra.mxu0 %v1677
    %1822 = vmatprep.subr.mxu0 0.0
    %1823 = vmatpush1.msra.mxu0 0.0
    %1824 = vmatprep.subr.mxu0 0.0
    %1825 = vmatpush1.msra.mxu0 0.0
    %1826 = vmatprep.subr.mxu0 0.0
    %1827 = vmatpush1.msra.mxu0 0.0
    %1828 = vmatprep.subr.mxu0 0.0
    %1829 = vmatpush1.msra.mxu0 0.0
    %1830 = vmatprep.subr.mxu0 0.0
    %1831 = vmatpush1.msra.mxu0 0.0
    %1832 = vmatprep.subr.mxu0 0.0
    %1833 = vmatpush1.msra.mxu0 0.0
    %1834 = vmatprep.subr.mxu0 0.0
    %1835 = vmatpush1.msra.mxu0 0.0
    %1836 = vmatprep.subr.mxu0 0.0
    %1837 = vmatpush1.msra.mxu0 0.0
    %1838 = vmatprep.subr.mxu0 0.0
    %1839 = vmatpush1.msra.mxu0 0.0
    %1840 = vmatprep.subr.mxu0 0.0
    %1841 = vmatpush1.msra.mxu0 0.0
    %1842 = vmatprep.subr.mxu0 0.0
    %1843 = vmatpush1.msra.mxu0 0.0
    %1844 = vmatprep.subr.mxu0 0.0
    %1845 = vmatpush1.msra.mxu0 0.0
    %1846 = vmatprep.subr.mxu0 0.0
    %1847 = vmatpush1.msra.mxu0 0.0
    %1848 = vmatprep.subr.mxu0 0.0
    %1849 = vmatpush1.msra.mxu0 0.0
    %1850 = vmatprep.subr.mxu0 0.0
    %1851 = vmatpush1.msra.mxu0 0.0
    %1852 = vmatprep.subr.mxu0 0.0
    %1853 = vmatpush1.msra.mxu0 0.0
    %1854 = vmatprep.subr.mxu0 0.0
    %1855 = vmatpush1.msra.mxu0 0.0
    %1856 = vmatprep.subr.mxu0 0.0
    %1857 = vmatpush1.msra.mxu0 0.0
    %1858 = vmatprep.subr.mxu0 0.0
    %1859 = vmatpush1.msra.mxu0 0.0
    %1860 = vmatprep.subr.mxu0 0.0
    %1861 = vmatpush1.msra.mxu0 0.0
    %1862 = vmatprep.subr.mxu0 0.0
    %1863 = vmatpush1.msra.mxu0 0.0
    %1864 = vmatprep.subr.mxu0 0.0
    %1865 = vmatpush1.msra.mxu0 0.0
    %1866 = vmatprep.subr.mxu0 0.0
    %1867 = vmatpush1.msra.mxu0 0.0
    %1868 = vmatprep.subr.mxu0 0.0
    %1869 = vmatpush1.msra.mxu0 0.0
    %1870 = vmatprep.mubr.f32.mxu0 0.0
    %1871 = vmatmul.mubr.f32.gmra.mrb[0].mxu0 %v1804
    %v1872 = vpop.f32.mrb[0].mxu0
    %v1873 = vadd.f32 %v1800, %v1872
    %v1874 = vpop.f32.mrb[0].mxu0
    %v1875 = vadd.f32 %v1801, %v1874
    %1876 = vdwg.mxu0
    %v1877 = vmul.f32 %v1873, 0.5
    %v1878 = vtanh.pop %v1877
    %v1879 = vmul.f32 %v1878, 0.5
    %v1880 = vadd.f32 %v1879, 0.5
    %v1881 = vtanh.pop %v1875
    %v1882 = vmul.f32 %v1875, 0.5
    %v1883 = vtanh.pop %v1882
    %v1884 = vmul.f32 %v1883, 0.5
    %v1885 = vadd.f32 %v1884, 0.5
    %v1886 = vmul.f32 %v1880, %v1781
    %v1887 = vmul.f32 %v1880, %v1881
    %1889 = vrot.lane.b32.xlu0 %v1887, 64
    %v1890 = vpop.permute.xlu0 %1889
    %v1892 = vadd.f32 %v1886, %v1890
    %v1893 = vtanh.pop %v1892
    %v1894 = vmul.f32 %v1885, %v1893
    %1896 = vrot.lane.b32.xlu0 %v1894, 64
    %v1897 = vpop.permute.xlu0 %1896
    %1899 = vst.msk [vmem:[#allocation2 + $0x2] sm:$0x3] %vm1788, %v1897
    %1900 = vst.msk [vmem:[#allocation2 + $0xc] sm:$0x3] %vm1790, %v1897
    %v1903 = vrot.slane %v1689, 4
    %v1904 = vrot.slane %v1690, 4
    %v1907 = vsel %vm1691, %v1897, 0
    %1909 = vmatprep.subr.mxu0 %v1664
    %1910 = vmatpush1.msra.mxu0 %v1663
    %1911 = vmatprep.subr.mxu0 %v1666
    %1912 = vmatpush1.msra.mxu0 %v1665
    %1913 = vmatprep.subr.mxu0 %v1668
    %1914 = vmatpush1.msra.mxu0 %v1667
    %1915 = vmatprep.subr.mxu0 %v1670
    %1916 = vmatpush1.msra.mxu0 %v1669
    %1917 = vmatprep.subr.mxu0 %v1672
    %1918 = vmatpush1.msra.mxu0 %v1671
    %1919 = vmatprep.subr.mxu0 %v1674
    %1920 = vmatpush1.msra.mxu0 %v1673
    %1921 = vmatprep.subr.mxu0 %v1676
    %1922 = vmatpush1.msra.mxu0 %v1675
    %1923 = vmatprep.subr.mxu0 %v1678
    %1924 = vmatpush1.msra.mxu0 %v1677
    %1925 = vmatprep.subr.mxu0 0.0
    %1926 = vmatpush1.msra.mxu0 0.0
    %1927 = vmatprep.subr.mxu0 0.0
    %1928 = vmatpush1.msra.mxu0 0.0
    %1929 = vmatprep.subr.mxu0 0.0
    %1930 = vmatpush1.msra.mxu0 0.0
    %1931 = vmatprep.subr.mxu0 0.0
    %1932 = vmatpush1.msra.mxu0 0.0
    %1933 = vmatprep.subr.mxu0 0.0
    %1934 = vmatpush1.msra.mxu0 0.0
    %1935 = vmatprep.subr.mxu0 0.0
    %1936 = vmatpush1.msra.mxu0 0.0
    %1937 = vmatprep.subr.mxu0 0.0
    %1938 = vmatpush1.msra.mxu0 0.0
    %1939 = vmatprep.subr.mxu0 0.0
    %1940 = vmatpush1.msra.mxu0 0.0
    %1941 = vmatprep.subr.mxu0 0.0
    %1942 = vmatpush1.msra.mxu0 0.0
    %1943 = vmatprep.subr.mxu0 0.0
    %1944 = vmatpush1.msra.mxu0 0.0
    %1945 = vmatprep.subr.mxu0 0.0
    %1946 = vmatpush1.msra.mxu0 0.0
    %1947 = vmatprep.subr.mxu0 0.0
    %1948 = vmatpush1.msra.mxu0 0.0
    %1949 = vmatprep.subr.mxu0 0.0
    %1950 = vmatpush1.msra.mxu0 0.0
    %1951 = vmatprep.subr.mxu0 0.0
    %1952 = vmatpush1.msra.mxu0 0.0
    %1953 = vmatprep.subr.mxu0 0.0
    %1954 = vmatpush1.msra.mxu0 0.0
    %1955 = vmatprep.subr.mxu0 0.0
    %1956 = vmatpush1.msra.mxu0 0.0
    %1957 = vmatprep.subr.mxu0 0.0
    %1958 = vmatpush1.msra.mxu0 0.0
    %1959 = vmatprep.subr.mxu0 0.0
    %1960 = vmatpush1.msra.mxu0 0.0
    %1961 = vmatprep.subr.mxu0 0.0
    %1962 = vmatpush1.msra.mxu0 0.0
    %1963 = vmatprep.subr.mxu0 0.0
    %1964 = vmatpush1.msra.mxu0 0.0
    %1965 = vmatprep.subr.mxu0 0.0
    %1966 = vmatpush1.msra.mxu0 0.0
    %1967 = vmatprep.subr.mxu0 0.0
    %1968 = vmatpush1.msra.mxu0 0.0
    %1969 = vmatprep.subr.mxu0 0.0
    %1970 = vmatpush1.msra.mxu0 0.0
    %1971 = vmatprep.subr.mxu0 0.0
    %1972 = vmatpush1.msra.mxu0 0.0
    %1973 = vmatprep.mubr.f32.mxu0 0.0
    %1974 = vmatmul.mubr.f32.gmra.mrb[0].mxu0 %v1907
    %v1975 = vpop.f32.mrb[0].mxu0
    %v1976 = vadd.f32 %v1903, %v1975
    %v1977 = vpop.f32.mrb[0].mxu0
    %v1978 = vadd.f32 %v1904, %v1977
    %1979 = vdwg.mxu0
    %v1980 = vmul.f32 %v1976, 0.5
    %v1981 = vtanh.pop %v1980
    %v1982 = vmul.f32 %v1981, 0.5
    %v1983 = vadd.f32 %v1982, 0.5
    %v1984 = vtanh.pop %v1978
    %v1985 = vmul.f32 %v1978, 0.5
    %v1986 = vtanh.pop %v1985
    %v1987 = vmul.f32 %v1986, 0.5
    %v1988 = vadd.f32 %v1987, 0.5
    %v1989 = vmul.f32 %v1983, %v1892
    %v1990 = vmul.f32 %v1983, %v1984
    %1992 = vrot.lane.b32.xlu0 %v1990, 64
    %v1993 = vpop.permute.xlu0 %1992
    %v1995 = vadd.f32 %v1989, %v1993
    %v1996 = vtanh.pop %v1995
    %v1997 = vmul.f32 %v1988, %v1996
    %1999 = vrot.lane.b32.xlu0 %v1997, 64
    %v2000 = vpop.permute.xlu0 %1999
    %2002 = vst.msk [vmem:[#allocation2 + $0x4] sm:$0x3] %vm1788, %v2000
    %2003 = vst.msk [vmem:[#allocation2 + $0xa] sm:$0x3] %vm1790, %v2000
    %v2004 = vrot.slane %v1796, 6
    %v2005 = vrot.slane %v1797, 6
    %v2008 = vsel %vm1691, %v2000, 0
    %2010 = vmatprep.subr.mxu0 %v1664
    %2011 = vmatpush1.msra.mxu0 %v1663
    %2012 = vmatprep.subr.mxu0 %v1666
    %2013 = vmatpush1.msra.mxu0 %v1665
    %2014 = vmatprep.subr.mxu0 %v1668
    %2015 = vmatpush1.msra.mxu0 %v1667
    %2016 = vmatprep.subr.mxu0 %v1670
    %2017 = vmatpush1.msra.mxu0 %v1669
    %2018 = vmatprep.subr.mxu0 %v1672
    %2019 = vmatpush1.msra.mxu0 %v1671
    %2020 = vmatprep.subr.mxu0 %v1674
    %2021 = vmatpush1.msra.mxu0 %v1673
    %2022 = vmatprep.subr.mxu0 %v1676
    %2023 = vmatpush1.msra.mxu0 %v1675
    %2024 = vmatprep.subr.mxu0 %v1678
    %2025 = vmatpush1.msra.mxu0 %v1677
    %2026 = vmatprep.subr.mxu0 0.0
    %2027 = vmatpush1.msra.mxu0 0.0
    %2028 = vmatprep.subr.mxu0 0.0
    %2029 = vmatpush1.msra.mxu0 0.0
    %2030 = vmatprep.subr.mxu0 0.0
    %2031 = vmatpush1.msra.mxu0 0.0
    %2032 = vmatprep.subr.mxu0 0.0
    %2033 = vmatpush1.msra.mxu0 0.0
    %2034 = vmatprep.subr.mxu0 0.0
    %2035 = vmatpush1.msra.mxu0 0.0
    %2036 = vmatprep.subr.mxu0 0.0
    %2037 = vmatpush1.msra.mxu0 0.0
    %2038 = vmatprep.subr.mxu0 0.0
    %2039 = vmatpush1.msra.mxu0 0.0
    %2040 = vmatprep.subr.mxu0 0.0
    %2041 = vmatpush1.msra.mxu0 0.0
    %2042 = vmatprep.subr.mxu0 0.0
    %2043 = vmatpush1.msra.mxu0 0.0
    %2044 = vmatprep.subr.mxu0 0.0
    %2045 = vmatpush1.msra.mxu0 0.0
    %2046 = vmatprep.subr.mxu0 0.0
    %2047 = vmatpush1.msra.mxu0 0.0
    %2048 = vmatprep.subr.mxu0 0.0
    %2049 = vmatpush1.msra.mxu0 0.0
    %2050 = vmatprep.subr.mxu0 0.0
    %2051 = vmatpush1.msra.mxu0 0.0
    %2052 = vmatprep.subr.mxu0 0.0
    %2053 = vmatpush1.msra.mxu0 0.0
    %2054 = vmatprep.subr.mxu0 0.0
    %2055 = vmatpush1.msra.mxu0 0.0
    %2056 = vmatprep.subr.mxu0 0.0
    %2057 = vmatpush1.msra.mxu0 0.0
    %2058 = vmatprep.subr.mxu0 0.0
    %2059 = vmatpush1.msra.mxu0 0.0
    %2060 = vmatprep.subr.mxu0 0.0
    %2061 = vmatpush1.msra.mxu0 0.0
    %2062 = vmatprep.subr.mxu0 0.0
    %2063 = vmatpush1.msra.mxu0 0.0
    %2064 = vmatprep.subr.mxu0 0.0
    %2065 = vmatpush1.msra.mxu0 0.0
    %2066 = vmatprep.subr.mxu0 0.0
    %2067 = vmatpush1.msra.mxu0 0.0
    %2068 = vmatprep.subr.mxu0 0.0
    %2069 = vmatpush1.msra.mxu0 0.0
    %2070 = vmatprep.subr.mxu0 0.0
    %2071 = vmatpush1.msra.mxu0 0.0
    %2072 = vmatprep.subr.mxu0 0.0
    %2073 = vmatpush1.msra.mxu0 0.0
    %2074 = vmatprep.mubr.f32.mxu0 0.0
    %2075 = vmatmul.mubr.f32.gmra.mrb[0].mxu0 %v2008
    %v2076 = vpop.f32.mrb[0].mxu0
    %v2077 = vadd.f32 %v2004, %v2076
    %v2078 = vpop.f32.mrb[0].mxu0
    %v2079 = vadd.f32 %v2005, %v2078
    %2080 = vdwg.mxu0
    %v2081 = vmul.f32 %v2077, 0.5
    %v2082 = vtanh.pop %v2081
    %v2083 = vmul.f32 %v2082, 0.5
    %v2084 = vadd.f32 %v2083, 0.5
    %v2085 = vtanh.pop %v2079
    %v2086 = vmul.f32 %v2079, 0.5
    %v2087 = vtanh.pop %v2086
    %v2088 = vmul.f32 %v2087, 0.5
    %v2089 = vadd.f32 %v2088, 0.5
    %v2090 = vmul.f32 %v2084, %v1995
    %v2091 = vmul.f32 %v2084, %v2085
    %2093 = vrot.lane.b32.xlu0 %v2091, 64
    %v2094 = vpop.permute.xlu0 %2093
    %v2096 = vadd.f32 %v2090, %v2094
    %v2097 = vtanh.pop %v2096
    %v2098 = vmul.f32 %v2089, %v2097
    %2100 = vrot.lane.b32.xlu0 %v2098, 64
    %v2101 = vpop.permute.xlu0 %2100
    %2103 = vst.msk [vmem:[#allocation2 + $0x6] sm:$0x3] %vm1788, %v2101
    %2104 = vst.msk [vmem:[#allocation2 + $0x8] sm:$0x3] %vm1790, %v2101
    %v2107 = vrot.slane %v1653, 6
    %v2108 = vrot.slane %v1655, 6
    %v2111 = vsel %vm1681, %v1659, %v2107
    %v2112 = vsel %vm1682, %v1661, %v2108
    %v2113 = vsel %vm1691, %v2101, 0
    %2115 = vmatprep.subr.mxu0 %v1664
    %2116 = vmatpush1.msra.mxu0 %v1663
    %2117 = vmatprep.subr.mxu0 %v1666
    %2118 = vmatpush1.msra.mxu0 %v1665
    %2119 = vmatprep.subr.mxu0 %v1668
    %2120 = vmatpush1.msra.mxu0 %v1667
    %2121 = vmatprep.subr.mxu0 %v1670
    %2122 = vmatpush1.msra.mxu0 %v1669
    %2123 = vmatprep.subr.mxu0 %v1672
    %2124 = vmatpush1.msra.mxu0 %v1671
    %2125 = vmatprep.subr.mxu0 %v1674
    %2126 = vmatpush1.msra.mxu0 %v1673
    %2127 = vmatprep.subr.mxu0 %v1676
    %2128 = vmatpush1.msra.mxu0 %v1675
    %2129 = vmatprep.subr.mxu0 %v1678
    %2130 = vmatpush1.msra.mxu0 %v1677
    %2131 = vmatprep.subr.mxu0 0.0
    %2132 = vmatpush1.msra.mxu0 0.0
    %2133 = vmatprep.subr.mxu0 0.0
    %2134 = vmatpush1.msra.mxu0 0.0
    %2135 = vmatprep.subr.mxu0 0.0
    %2136 = vmatpush1.msra.mxu0 0.0
    %2137 = vmatprep.subr.mxu0 0.0
    %2138 = vmatpush1.msra.mxu0 0.0
    %2139 = vmatprep.subr.mxu0 0.0
    %2140 = vmatpush1.msra.mxu0 0.0
    %2141 = vmatprep.subr.mxu0 0.0
    %2142 = vmatpush1.msra.mxu0 0.0
    %2143 = vmatprep.subr.mxu0 0.0
    %2144 = vmatpush1.msra.mxu0 0.0
    %2145 = vmatprep.subr.mxu0 0.0
    %2146 = vmatpush1.msra.mxu0 0.0
    %2147 = vmatprep.subr.mxu0 0.0
    %2148 = vmatpush1.msra.mxu0 0.0
    %2149 = vmatprep.subr.mxu0 0.0
    %2150 = vmatpush1.msra.mxu0 0.0
    %2151 = vmatprep.subr.mxu0 0.0
    %2152 = vmatpush1.msra.mxu0 0.0
    %2153 = vmatprep.subr.mxu0 0.0
    %2154 = vmatpush1.msra.mxu0 0.0
    %2155 = vmatprep.subr.mxu0 0.0
    %2156 = vmatpush1.msra.mxu0 0.0
    %2157 = vmatprep.subr.mxu0 0.0
    %2158 = vmatpush1.msra.mxu0 0.0
    %2159 = vmatprep.subr.mxu0 0.0
    %2160 = vmatpush1.msra.mxu0 0.0
    %2161 = vmatprep.subr.mxu0 0.0
    %2162 = vmatpush1.msra.mxu0 0.0
    %2163 = vmatprep.subr.mxu0 0.0
    %2164 = vmatpush1.msra.mxu0 0.0
    %2165 = vmatprep.subr.mxu0 0.0
    %2166 = vmatpush1.msra.mxu0 0.0
    %2167 = vmatprep.subr.mxu0 0.0
    %2168 = vmatpush1.msra.mxu0 0.0
    %2169 = vmatprep.subr.mxu0 0.0
    %2170 = vmatpush1.msra.mxu0 0.0
    %2171 = vmatprep.subr.mxu0 0.0
    %2172 = vmatpush1.msra.mxu0 0.0
    %2173 = vmatprep.subr.mxu0 0.0
    %2174 = vmatpush1.msra.mxu0 0.0
    %2175 = vmatprep.subr.mxu0 0.0
    %2176 = vmatpush1.msra.mxu0 0.0
    %2177 = vmatprep.subr.mxu0 0.0
    %2178 = vmatpush1.msra.mxu0 0.0
    %2179 = vmatprep.mubr.f32.mxu0 0.0
    %2180 = vmatmul.mubr.f32.gmra.mrb[0].mxu0 %v2113
    %v2181 = vpop.f32.mrb[0].mxu0
    %v2182 = vadd.f32 %v2111, %v2181
    %v2183 = vpop.f32.mrb[0].mxu0
    %v2184 = vadd.f32 %v2112, %v2183
    %2185 = vdwg.mxu0
    %v2186 = vmul.f32 %v2182, 0.5
    %v2187 = vtanh.pop %v2186
    %v2188 = vmul.f32 %v2187, 0.5
    %v2189 = vadd.f32 %v2188, 0.5
    %v2190 = vtanh.pop %v2184
    %v2191 = vmul.f32 %v2184, 0.5
    %v2192 = vtanh.pop %v2191
    %v2193 = vmul.f32 %v2192, 0.5
    %v2194 = vadd.f32 %v2193, 0.5
    %v2195 = vmul.f32 %v2189, %v2096
    %v2196 = vmul.f32 %v2189, %v2190
    %2198 = vrot.lane.b32.xlu0 %v2196, 64
    %v2199 = vpop.permute.xlu0 %2198
    %v2201 = vadd.f32 %v2195, %v2199
    %v2202 = vtanh.pop %v2201
    %v2203 = vmul.f32 %v2194, %v2202
    %2205 = vrot.lane.b32.xlu0 %v2203, 64
    %v2206 = vpop.permute.xlu0 %2205
    %2208 = vst.msk [vmem:[#allocation2 + $0x8] sm:$0x3] %vm1788, %v2206
    %2209 = vst.msk [vmem:[#allocation2 + $0x6] sm:$0x3] %vm1790, %v2206
    %v2210 = vrot.slane %v1653, 2
    %v2211 = vrot.slane %v1655, 2
    %v2214 = vsel %vm1681, %v1659, %v2210
    %v2215 = vsel %vm1682, %v1661, %v2211
    %v2218 = vrot.slane %v2214, 2
    %v2219 = vrot.slane %v2215, 2
    %v2222 = vsel %vm1691, %v2206, 0
    %2224 = vmatprep.subr.mxu0 %v1664
    %2225 = vmatpush1.msra.mxu0 %v1663
    %2226 = vmatprep.subr.mxu0 %v1666
    %2227 = vmatpush1.msra.mxu0 %v1665
    %2228 = vmatprep.subr.mxu0 %v1668
    %2229 = vmatpush1.msra.mxu0 %v1667
    %2230 = vmatprep.subr.mxu0 %v1670
    %2231 = vmatpush1.msra.mxu0 %v1669
    %2232 = vmatprep.subr.mxu0 %v1672
    %2233 = vmatpush1.msra.mxu0 %v1671
    %2234 = vmatprep.subr.mxu0 %v1674
    %2235 = vmatpush1.msra.mxu0 %v1673
    %2236 = vmatprep.subr.mxu0 %v1676
    %2237 = vmatpush1.msra.mxu0 %v1675
    %2238 = vmatprep.subr.mxu0 %v1678
    %2239 = vmatpush1.msra.mxu0 %v1677
    %2240 = vmatprep.subr.mxu0 0.0
    %2241 = vmatpush1.msra.mxu0 0.0
    %2242 = vmatprep.subr.mxu0 0.0
    %2243 = vmatpush1.msra.mxu0 0.0
    %2244 = vmatprep.subr.mxu0 0.0
    %2245 = vmatpush1.msra.mxu0 0.0
    %2246 = vmatprep.subr.mxu0 0.0
    %2247 = vmatpush1.msra.mxu0 0.0
    %2248 = vmatprep.subr.mxu0 0.0
    %2249 = vmatpush1.msra.mxu0 0.0
    %2250 = vmatprep.subr.mxu0 0.0
    %2251 = vmatpush1.msra.mxu0 0.0
    %2252 = vmatprep.subr.mxu0 0.0
    %2253 = vmatpush1.msra.mxu0 0.0
    %2254 = vmatprep.subr.mxu0 0.0
    %2255 = vmatpush1.msra.mxu0 0.0
    %2256 = vmatprep.subr.mxu0 0.0
    %2257 = vmatpush1.msra.mxu0 0.0
    %2258 = vmatprep.subr.mxu0 0.0
    %2259 = vmatpush1.msra.mxu0 0.0
    %2260 = vmatprep.subr.mxu0 0.0
    %2261 = vmatpush1.msra.mxu0 0.0
    %2262 = vmatprep.subr.mxu0 0.0
    %2263 = vmatpush1.msra.mxu0 0.0
    %2264 = vmatprep.subr.mxu0 0.0
    %2265 = vmatpush1.msra.mxu0 0.0
    %2266 = vmatprep.subr.mxu0 0.0
    %2267 = vmatpush1.msra.mxu0 0.0
    %2268 = vmatprep.subr.mxu0 0.0
    %2269 = vmatpush1.msra.mxu0 0.0
    %2270 = vmatprep.subr.mxu0 0.0
    %2271 = vmatpush1.msra.mxu0 0.0
    %2272 = vmatprep.subr.mxu0 0.0
    %2273 = vmatpush1.msra.mxu0 0.0
    %2274 = vmatprep.subr.mxu0 0.0
    %2275 = vmatpush1.msra.mxu0 0.0
    %2276 = vmatprep.subr.mxu0 0.0
    %2277 = vmatpush1.msra.mxu0 0.0
    %2278 = vmatprep.subr.mxu0 0.0
    %2279 = vmatpush1.msra.mxu0 0.0
    %2280 = vmatprep.subr.mxu0 0.0
    %2281 = vmatpush1.msra.mxu0 0.0
    %2282 = vmatprep.subr.mxu0 0.0
    %2283 = vmatpush1.msra.mxu0 0.0
    %2284 = vmatprep.subr.mxu0 0.0
    %2285 = vmatpush1.msra.mxu0 0.0
    %2286 = vmatprep.subr.mxu0 0.0
    %2287 = vmatpush1.msra.mxu0 0.0
    %2288 = vmatprep.mubr.f32.mxu0 0.0
    %2289 = vmatmul.mubr.f32.gmra.mrb[0].mxu0 %v2222
    %v2290 = vpop.f32.mrb[0].mxu0
    %v2291 = vadd.f32 %v2218, %v2290
    %v2292 = vpop.f32.mrb[0].mxu0
    %v2293 = vadd.f32 %v2219, %v2292
    %2294 = vdwg.mxu0
    %v2295 = vmul.f32 %v2291, 0.5
    %v2296 = vtanh.pop %v2295
    %v2297 = vmul.f32 %v2296, 0.5
    %v2298 = vadd.f32 %v2297, 0.5
    %v2299 = vtanh.pop %v2293
    %v2300 = vmul.f32 %v2293, 0.5
    %v2301 = vtanh.pop %v2300
    %v2302 = vmul.f32 %v2301, 0.5
    %v2303 = vadd.f32 %v2302, 0.5
    %v2304 = vmul.f32 %v2298, %v2201
    %v2305 = vmul.f32 %v2298, %v2299
    %2307 = vrot.lane.b32.xlu0 %v2305, 64
    %v2308 = vpop.permute.xlu0 %2307
    %v2310 = vadd.f32 %v2304, %v2308
    %v2311 = vtanh.pop %v2310
    %v2312 = vmul.f32 %v2303, %v2311
    %2314 = vrot.lane.b32.xlu0 %v2312, 64
    %v2315 = vpop.permute.xlu0 %2314
    %2317 = vst.msk [vmem:[#allocation2 + $0xa] sm:$0x3] %vm1788, %v2315
    %2318 = vst.msk [vmem:[#allocation2 + $0x4] sm:$0x3] %vm1790, %v2315
    %v2321 = vrot.slane %v2111, 4
    %v2322 = vrot.slane %v2112, 4
    %v2325 = vsel %vm1691, %v2315, 0
    %2327 = vmatprep.subr.mxu0 %v1664
    %2328 = vmatpush1.msra.mxu0 %v1663
    %2329 = vmatprep.subr.mxu0 %v1666
    %2330 = vmatpush1.msra.mxu0 %v1665
    %2331 = vmatprep.subr.mxu0 %v1668
    %2332 = vmatpush1.msra.mxu0 %v1667
    %2333 = vmatprep.subr.mxu0 %v1670
    %2334 = vmatpush1.msra.mxu0 %v1669
    %2335 = vmatprep.subr.mxu0 %v1672
    %2336 = vmatpush1.msra.mxu0 %v1671
    %2337 = vmatprep.subr.mxu0 %v1674
    %2338 = vmatpush1.msra.mxu0 %v1673
    %2339 = vmatprep.subr.mxu0 %v1676
    %2340 = vmatpush1.msra.mxu0 %v1675
    %2341 = vmatprep.subr.mxu0 %v1678
    %2342 = vmatpush1.msra.mxu0 %v1677
    %2343 = vmatprep.subr.mxu0 0.0
    %2344 = vmatpush1.msra.mxu0 0.0
    %2345 = vmatprep.subr.mxu0 0.0
    %2346 = vmatpush1.msra.mxu0 0.0
    %2347 = vmatprep.subr.mxu0 0.0
    %2348 = vmatpush1.msra.mxu0 0.0
    %2349 = vmatprep.subr.mxu0 0.0
    %2350 = vmatpush1.msra.mxu0 0.0
    %2351 = vmatprep.subr.mxu0 0.0
    %2352 = vmatpush1.msra.mxu0 0.0
    %2353 = vmatprep.subr.mxu0 0.0
    %2354 = vmatpush1.msra.mxu0 0.0
    %2355 = vmatprep.subr.mxu0 0.0
    %2356 = vmatpush1.msra.mxu0 0.0
    %2357 = vmatprep.subr.mxu0 0.0
    %2358 = vmatpush1.msra.mxu0 0.0
    %2359 = vmatprep.subr.mxu0 0.0
    %2360 = vmatpush1.msra.mxu0 0.0
    %2361 = vmatprep.subr.mxu0 0.0
    %2362 = vmatpush1.msra.mxu0 0.0
    %2363 = vmatprep.subr.mxu0 0.0
    %2364 = vmatpush1.msra.mxu0 0.0
    %2365 = vmatprep.subr.mxu0 0.0
    %2366 = vmatpush1.msra.mxu0 0.0
    %2367 = vmatprep.subr.mxu0 0.0
    %2368 = vmatpush1.msra.mxu0 0.0
    %2369 = vmatprep.subr.mxu0 0.0
    %2370 = vmatpush1.msra.mxu0 0.0
    %2371 = vmatprep.subr.mxu0 0.0
    %2372 = vmatpush1.msra.mxu0 0.0
    %2373 = vmatprep.subr.mxu0 0.0
    %2374 = vmatpush1.msra.mxu0 0.0
    %2375 = vmatprep.subr.mxu0 0.0
    %2376 = vmatpush1.msra.mxu0 0.0
    %2377 = vmatprep.subr.mxu0 0.0
    %2378 = vmatpush1.msra.mxu0 0.0
    %2379 = vmatprep.subr.mxu0 0.0
    %2380 = vmatpush1.msra.mxu0 0.0
    %2381 = vmatprep.subr.mxu0 0.0
    %2382 = vmatpush1.msra.mxu0 0.0
    %2383 = vmatprep.subr.mxu0 0.0
    %2384 = vmatpush1.msra.mxu0 0.0
    %2385 = vmatprep.subr.mxu0 0.0
    %2386 = vmatpush1.msra.mxu0 0.0
    %2387 = vmatprep.subr.mxu0 0.0
    %2388 = vmatpush1.msra.mxu0 0.0
    %2389 = vmatprep.subr.mxu0 0.0
    %2390 = vmatpush1.msra.mxu0 0.0
    %2391 = vmatprep.mubr.f32.mxu0 0.0
    %2392 = vmatmul.mubr.f32.gmra.mrb[0].mxu0 %v2325
    %v2393 = vpop.f32.mrb[0].mxu0
    %v2394 = vadd.f32 %v2321, %v2393
    %v2395 = vpop.f32.mrb[0].mxu0
    %v2396 = vadd.f32 %v2322, %v2395
    %2397 = vdwg.mxu0
    %v2398 = vmul.f32 %v2394, 0.5
    %v2399 = vtanh.pop %v2398
    %v2400 = vmul.f32 %v2399, 0.5
    %v2401 = vadd.f32 %v2400, 0.5
    %v2402 = vtanh.pop %v2396
    %v2403 = vmul.f32 %v2396, 0.5
    %v2404 = vtanh.pop %v2403
    %v2405 = vmul.f32 %v2404, 0.5
    %v2406 = vadd.f32 %v2405, 0.5
    %v2407 = vmul.f32 %v2401, %v2310
    %v2408 = vmul.f32 %v2401, %v2402
    %2410 = vrot.lane.b32.xlu0 %v2408, 64
    %v2411 = vpop.permute.xlu0 %2410
    %v2413 = vadd.f32 %v2407, %v2411
    %v2414 = vtanh.pop %v2413
    %v2415 = vmul.f32 %v2406, %v2414
    %2417 = vrot.lane.b32.xlu0 %v2415, 64
    %v2418 = vpop.permute.xlu0 %2417
    %2420 = vst.msk [vmem:[#allocation2 + $0xc] sm:$0x3] %vm1788, %v2418
    %2421 = vst.msk [vmem:[#allocation2 + $0x2] sm:$0x3] %vm1790, %v2418
    %v2422 = vrot.slane %v2214, 6
    %v2423 = vrot.slane %v2215, 6
    %v2426 = vsel %vm1691, %v2418, 0
    %2428 = vmatprep.subr.mxu0 %v1664
    %2429 = vmatpush1.msra.mxu0 %v1663
    %2430 = vmatprep.subr.mxu0 %v1666
    %2431 = vmatpush1.msra.mxu0 %v1665
    %2432 = vmatprep.subr.mxu0 %v1668
    %2433 = vmatpush1.msra.mxu0 %v1667
    %2434 = vmatprep.subr.mxu0 %v1670
    %2435 = vmatpush1.msra.mxu0 %v1669
    %2436 = vmatprep.subr.mxu0 %v1672
    %2437 = vmatpush1.msra.mxu0 %v1671
    %2438 = vmatprep.subr.mxu0 %v1674
    %2439 = vmatpush1.msra.mxu0 %v1673
    %2440 = vmatprep.subr.mxu0 %v1676
    %2441 = vmatpush1.msra.mxu0 %v1675
    %2442 = vmatprep.subr.mxu0 %v1678
    %2443 = vmatpush1.msra.mxu0 %v1677
    %2444 = vmatprep.subr.mxu0 0.0
    %2445 = vmatpush1.msra.mxu0 0.0
    %2446 = vmatprep.subr.mxu0 0.0
    %2447 = vmatpush1.msra.mxu0 0.0
    %2448 = vmatprep.subr.mxu0 0.0
    %2449 = vmatpush1.msra.mxu0 0.0
    %2450 = vmatprep.subr.mxu0 0.0
    %2451 = vmatpush1.msra.mxu0 0.0
    %2452 = vmatprep.subr.mxu0 0.0
    %2453 = vmatpush1.msra.mxu0 0.0
    %2454 = vmatprep.subr.mxu0 0.0
    %2455 = vmatpush1.msra.mxu0 0.0
    %2456 = vmatprep.subr.mxu0 0.0
    %2457 = vmatpush1.msra.mxu0 0.0
    %2458 = vmatprep.subr.mxu0 0.0
    %2459 = vmatpush1.msra.mxu0 0.0
    %2460 = vmatprep.subr.mxu0 0.0
    %2461 = vmatpush1.msra.mxu0 0.0
    %2462 = vmatprep.subr.mxu0 0.0
    %2463 = vmatpush1.msra.mxu0 0.0
    %2464 = vmatprep.subr.mxu0 0.0
    %2465 = vmatpush1.msra.mxu0 0.0
    %2466 = vmatprep.subr.mxu0 0.0
    %2467 = vmatpush1.msra.mxu0 0.0
    %2468 = vmatprep.subr.mxu0 0.0
    %2469 = vmatpush1.msra.mxu0 0.0
    %2470 = vmatprep.subr.mxu0 0.0
    %2471 = vmatpush1.msra.mxu0 0.0
    %2472 = vmatprep.subr.mxu0 0.0
    %2473 = vmatpush1.msra.mxu0 0.0
    %2474 = vmatprep.subr.mxu0 0.0
    %2475 = vmatpush1.msra.mxu0 0.0
    %2476 = vmatprep.subr.mxu0 0.0
    %2477 = vmatpush1.msra.mxu0 0.0
    %2478 = vmatprep.subr.mxu0 0.0
    %2479 = vmatpush1.msra.mxu0 0.0
    %2480 = vmatprep.subr.mxu0 0.0
    %2481 = vmatpush1.msra.mxu0 0.0
    %2482 = vmatprep.subr.mxu0 0.0
    %2483 = vmatpush1.msra.mxu0 0.0
    %2484 = vmatprep.subr.mxu0 0.0
    %2485 = vmatpush1.msra.mxu0 0.0
    %2486 = vmatprep.subr.mxu0 0.0
    %2487 = vmatpush1.msra.mxu0 0.0
    %2488 = vmatprep.subr.mxu0 0.0
    %2489 = vmatpush1.msra.mxu0 0.0
    %2490 = vmatprep.subr.mxu0 0.0
    %2491 = vmatpush1.msra.mxu0 0.0
    %2492 = vmatprep.mubr.f32.mxu0 0.0
    %2493 = vmatmul.mubr.f32.gmra.mrb[0].mxu0 %v2426
    %v2494 = vpop.f32.mrb[0].mxu0
    %v2495 = vadd.f32 %v2422, %v2494
    %v2496 = vpop.f32.mrb[0].mxu0
    %v2497 = vadd.f32 %v2423, %v2496
    %2498 = vdwg.mxu0
    %v2499 = vmul.f32 %v2495, 0.5
    %v2500 = vtanh.pop %v2499
    %v2501 = vmul.f32 %v2500, 0.5
    %v2502 = vadd.f32 %v2501, 0.5
    %v2503 = vtanh.pop %v2497
    %v2504 = vmul.f32 %v2497, 0.5
    %v2505 = vtanh.pop %v2504
    %v2506 = vmul.f32 %v2505, 0.5
    %v2507 = vadd.f32 %v2506, 0.5
    %v2508 = vmul.f32 %v2502, %v2413
    %v2509 = vmul.f32 %v2502, %v2503
    %2511 = vrot.lane.b32.xlu0 %v2509, 64
    %v2512 = vpop.permute.xlu0 %2511
    %v2514 = vadd.f32 %v2508, %v2512
    %v2515 = vtanh.pop %v2514
    %v2516 = vmul.f32 %v2507, %v2515
    %2518 = vrot.lane.b32.xlu0 %v2516, 64
    %v2519 = vpop.permute.xlu0 %2518
    %2521 = vst.msk [vmem:[#allocation2 + $0xe] sm:$0x3] %vm1788, %v2519
    %2522 = vst.msk [vmem:[#allocation2] sm:$0x3] %vm1790, %v2519
    %v2523 = vld [vmem:[#allocation2] sm:$0xff]
    %v2524 = vld [vmem:[#allocation2 + $0x8] sm:$0xff]
    %v2525 = vld [vmem:[%s21] sm:$0xff]
    %v2526 = vld [vmem:[%s21 + $0x8] sm:$0xff]
    %v2527 = vld [vmem:[%s21 + $0x10] sm:$0xff]
    %v2528 = vld [vmem:[%s21 + $0x18] sm:$0xff]
    %v2529 = vld [vmem:[%s21 + $0x20] sm:$0xff]
    %v2530 = vld [vmem:[%s21 + $0x28] sm:$0xff]
    %v2531 = vld [vmem:[%s21 + $0x30] sm:$0xff]
    %v2532 = vld [vmem:[%s21 + $0x38] sm:$0xff]
    %v2533 = vld [vmem:[%s21 + $0x40] sm:$0xff]
    %v2534 = vld [vmem:[%s21 + $0x48] sm:$0xff]
    %v2535 = vld [vmem:[%s21 + $0x50] sm:$0xff]
    %v2536 = vld [vmem:[%s21 + $0x58] sm:$0xff]
    %v2537 = vld [vmem:[%s21 + $0x60] sm:$0xff]
    %v2538 = vld [vmem:[%s21 + $0x68] sm:$0xff]
    %v2539 = vld [vmem:[%s21 + $0x70] sm:$0xff]
    %v2540 = vld [vmem:[%s21 + $0x78] sm:$0xff]
    %v2541 = vld [vmem:[#allocation12] sm:$0x3]
    %v2543 = vlaneseq
    %v2544 = vshrl.u32 %v2543, 7
    %v2545 = vsub.s32 0, %v2544
    %v2546 = vrot.slane %v2541, %v2545
    %v2547 = vlaneseq
    %v2548 = vshrl.u32 %v2547, 7
    %v2549 = vsub.s32 1, %v2548
    %v2550 = vrot.slane %v2541, %v2549
    %v2554 = vsel %vm1691, %v2523, 0
    %v2557 = vsel %vm1691, %v2524, 0
    %2559 = vmatprep.subr.mxu0 %v2526
    %2560 = vmatpush1.msra.mxu0 %v2525
    %2561 = vmatprep.subr.mxu0 %v2528
    %2562 = vmatpush1.msra.mxu0 %v2527
    %2563 = vmatprep.subr.mxu0 %v2530
    %2564 = vmatpush1.msra.mxu0 %v2529
    %2565 = vmatprep.subr.mxu0 %v2532
    %2566 = vmatpush1.msra.mxu0 %v2531
    %2567 = vmatprep.subr.mxu0 %v2534
    %2568 = vmatpush1.msra.mxu0 %v2533
    %2569 = vmatprep.subr.mxu0 %v2536
    %2570 = vmatpush1.msra.mxu0 %v2535
    %2571 = vmatprep.subr.mxu0 %v2538
    %2572 = vmatpush1.msra.mxu0 %v2537
    %2573 = vmatprep.subr.mxu0 %v2540
    %2574 = vmatpush1.msra.mxu0 %v2539
    %2575 = vmatprep.subr.mxu0 0.0
    %2576 = vmatpush1.msra.mxu0 0.0
    %2577 = vmatprep.subr.mxu0 0.0
    %2578 = vmatpush1.msra.mxu0 0.0
    %2579 = vmatprep.subr.mxu0 0.0
    %2580 = vmatpush1.msra.mxu0 0.0
    %2581 = vmatprep.subr.mxu0 0.0
    %2582 = vmatpush1.msra.mxu0 0.0
    %2583 = vmatprep.subr.mxu0 0.0
    %2584 = vmatpush1.msra.mxu0 0.0
    %2585 = vmatprep.subr.mxu0 0.0
    %2586 = vmatpush1.msra.mxu0 0.0
    %2587 = vmatprep.subr.mxu0 0.0
    %2588 = vmatpush1.msra.mxu0 0.0
    %2589 = vmatprep.subr.mxu0 0.0
    %2590 = vmatpush1.msra.mxu0 0.0
    %2591 = vmatprep.subr.mxu0 0.0
    %2592 = vmatpush1.msra.mxu0 0.0
    %2593 = vmatprep.subr.mxu0 0.0
    %2594 = vmatpush1.msra.mxu0 0.0
    %2595 = vmatprep.subr.mxu0 0.0
    %2596 = vmatpush1.msra.mxu0 0.0
    %2597 = vmatprep.subr.mxu0 0.0
    %2598 = vmatpush1.msra.mxu0 0.0
    %2599 = vmatprep.subr.mxu0 0.0
    %2600 = vmatpush1.msra.mxu0 0.0
    %2601 = vmatprep.subr.mxu0 0.0
    %2602 = vmatpush1.msra.mxu0 0.0
    %2603 = vmatprep.subr.mxu0 0.0
    %2604 = vmatpush1.msra.mxu0 0.0
    %2605 = vmatprep.subr.mxu0 0.0
    %2606 = vmatpush1.msra.mxu0 0.0
    %2607 = vmatprep.subr.mxu0 0.0
    %2608 = vmatpush1.msra.mxu0 0.0
    %2609 = vmatprep.subr.mxu0 0.0
    %2610 = vmatpush1.msra.mxu0 0.0
    %2611 = vmatprep.subr.mxu0 0.0
    %2612 = vmatpush1.msra.mxu0 0.0
    %2613 = vmatprep.subr.mxu0 0.0
    %2614 = vmatpush1.msra.mxu0 0.0
    %2615 = vmatprep.subr.mxu0 0.0
    %2616 = vmatpush1.msra.mxu0 0.0
    %2617 = vmatprep.subr.mxu0 0.0
    %2618 = vmatpush1.msra.mxu0 0.0
    %2619 = vmatprep.subr.mxu0 0.0
    %2620 = vmatpush1.msra.mxu0 0.0
    %2621 = vmatprep.subr.mxu0 0.0
    %2622 = vmatpush1.msra.mxu0 0.0
    %2623 = vmatprep.mubr.f32.mxu0 0.0
    %2624 = vmatmul.mubr.f32.gmra.mrb[0].mxu0 %v2554
    %v2625 = vpop.f32.mrb[0].mxu0
    %v2626 = vadd.f32 %v2546, %v2625
    %v2627 = vpop.f32.mrb[0].mxu0
    %v2628 = vadd.f32 %v2550, %v2627
    %2629 = vmatprep.mubr.f32.mxu0 0.0
    %2630 = vmatmul.mubr.f32.gmra.mrb[0].mxu0 %v2557
    %v2631 = vpop.f32.mrb[0].mxu0
    %v2632 = vadd.f32 %v2546, %v2631
    %v2633 = vpop.f32.mrb[0].mxu0
    %v2634 = vadd.f32 %v2550, %v2633
    %2635 = vdwg.mxu0
    %v2636 = vld [vmem:[#allocation14] sm:$0xff]
    %v2637 = vld [vmem:[#allocation14 + $0x8] sm:$0xff]
    %v2638 = vld [vmem:[#allocation14 + $0x10] sm:$0xff]
    %v2639 = vld [vmem:[#allocation14 + $0x18] sm:$0xff]
    %v2640 = vld [vmem:[#allocation14 + $0x20] sm:$0xff]
    %v2641 = vld [vmem:[#allocation14 + $0x28] sm:$0xff]
    %v2642 = vld [vmem:[#allocation14 + $0x30] sm:$0xff]
    %v2643 = vld [vmem:[#allocation14 + $0x38] sm:$0xff]
    %v2644 = vld [vmem:[#allocation14 + $0x40] sm:$0xff]
    %v2645 = vld [vmem:[#allocation14 + $0x48] sm:$0xff]
    %v2646 = vld [vmem:[#allocation14 + $0x50] sm:$0xff]
    %v2647 = vld [vmem:[#allocation14 + $0x58] sm:$0xff]
    %v2648 = vld [vmem:[#allocation14 + $0x60] sm:$0xff]
    %v2649 = vld [vmem:[#allocation14 + $0x68] sm:$0xff]
    %v2650 = vld [vmem:[#allocation14 + $0x70] sm:$0xff]
    %v2651 = vld [vmem:[#allocation14 + $0x78] sm:$0xff]
    %v2654 = vrot.slane %v2632, 6
    %v2655 = vrot.slane %v2634, 6
    %v2658 = vsel %vm1681, %v2626, %v2654
    %v2659 = vsel %vm1682, %v2628, %v2655
    %2660 = vmatprep.subr.mxu0 %v2637
    %2661 = vmatpush1.msra.mxu0 %v2636
    %2662 = vmatprep.subr.mxu0 %v2639
    %2663 = vmatpush1.msra.mxu0 %v2638
    %2664 = vmatprep.subr.mxu0 %v2641
    %2665 = vmatpush1.msra.mxu0 %v2640
    %2666 = vmatprep.subr.mxu0 %v2643
    %2667 = vmatpush1.msra.mxu0 %v2642
    %2668 = vmatprep.subr.mxu0 %v2645
    %2669 = vmatpush1.msra.mxu0 %v2644
    %2670 = vmatprep.subr.mxu0 %v2647
    %2671 = vmatpush1.msra.mxu0 %v2646
    %2672 = vmatprep.subr.mxu0 %v2649
    %2673 = vmatpush1.msra.mxu0 %v2648
    %2674 = vmatprep.subr.mxu0 %v2651
    %2675 = vmatpush1.msra.mxu0 %v2650
    %2676 = vmatprep.subr.mxu0 0.0
    %2677 = vmatpush1.msra.mxu0 0.0
    %2678 = vmatprep.subr.mxu0 0.0
    %2679 = vmatpush1.msra.mxu0 0.0
    %2680 = vmatprep.subr.mxu0 0.0
    %2681 = vmatpush1.msra.mxu0 0.0
    %2682 = vmatprep.subr.mxu0 0.0
    %2683 = vmatpush1.msra.mxu0 0.0
    %2684 = vmatprep.subr.mxu0 0.0
    %2685 = vmatpush1.msra.mxu0 0.0
    %2686 = vmatprep.subr.mxu0 0.0
    %2687 = vmatpush1.msra.mxu0 0.0
    %2688 = vmatprep.subr.mxu0 0.0
    %2689 = vmatpush1.msra.mxu0 0.0
    %2690 = vmatprep.subr.mxu0 0.0
    %2691 = vmatpush1.msra.mxu0 0.0
    %2692 = vmatprep.subr.mxu0 0.0
    %2693 = vmatpush1.msra.mxu0 0.0
    %2694 = vmatprep.subr.mxu0 0.0
    %2695 = vmatpush1.msra.mxu0 0.0
    %2696 = vmatprep.subr.mxu0 0.0
    %2697 = vmatpush1.msra.mxu0 0.0
    %2698 = vmatprep.subr.mxu0 0.0
    %2699 = vmatpush1.msra.mxu0 0.0
    %2700 = vmatprep.subr.mxu0 0.0
    %2701 = vmatpush1.msra.mxu0 0.0
    %2702 = vmatprep.subr.mxu0 0.0
    %2703 = vmatpush1.msra.mxu0 0.0
    %2704 = vmatprep.subr.mxu0 0.0
    %2705 = vmatpush1.msra.mxu0 0.0
    %2706 = vmatprep.subr.mxu0 0.0
    %2707 = vmatpush1.msra.mxu0 0.0
    %2708 = vmatprep.subr.mxu0 0.0
    %2709 = vmatpush1.msra.mxu0 0.0
    %2710 = vmatprep.subr.mxu0 0.0
    %2711 = vmatpush1.msra.mxu0 0.0
    %2712 = vmatprep.subr.mxu0 0.0
    %2713 = vmatpush1.msra.mxu0 0.0
    %2714 = vmatprep.subr.mxu0 0.0
    %2715 = vmatpush1.msra.mxu0 0.0
    %2716 = vmatprep.subr.mxu0 0.0
    %2717 = vmatpush1.msra.mxu0 0.0
    %2718 = vmatprep.subr.mxu0 0.0
    %2719 = vmatpush1.msra.mxu0 0.0
    %2720 = vmatprep.subr.mxu0 0.0
    %2721 = vmatpush1.msra.mxu0 0.0
    %2722 = vmatprep.subr.mxu0 0.0
    %2723 = vmatpush1.msra.mxu0 0.0
    %2724 = vmatprep.mubr.f32.mxu0 0.0
    %2725 = vmatmul.mubr.f32.gmra.mrb[0].mxu0 %v1693
    %v2726 = vpop.f32.mrb[0].mxu0
    %v2727 = vadd.f32 %v2658, %v2726
    %v2728 = vpop.f32.mrb[0].mxu0
    %v2729 = vadd.f32 %v2659, %v2728
    %2730 = vdwg.mxu0
    %v2731 = vmul.f32 %v2727, 0.5
    %v2732 = vtanh.pop %v2731
    %v2733 = vmul.f32 %v2732, 0.5
    %v2734 = vadd.f32 %v2733, 0.5
    %v2735 = vtanh.pop %v2729
    %v2736 = vmul.f32 %v2729, 0.5
    %v2737 = vtanh.pop %v2736
    %v2738 = vmul.f32 %v2737, 0.5
    %v2739 = vadd.f32 %v2738, 0.5
    %v2740 = vmul.f32 %v2734, 0.0
    %v2741 = vmul.f32 %v2734, %v2735
    %2743 = vrot.lane.b32.xlu0 %v2741, 64
    %v2744 = vpop.permute.xlu0 %2743
    %v2746 = vadd.f32 %v2740, %v2744
    %v2747 = vtanh.pop %v2746
    %v2748 = vmul.f32 %v2739, %v2747
    %v2749 = vadd.f32 %v2748, 0.0
    %v2750 = vrot.slane %v2632, 2
    %v2751 = vrot.slane %v2634, 2
    %v2754 = vsel %vm1681, %v2626, %v2750
    %v2755 = vsel %vm1682, %v2628, %v2751
    %2757 = vrot.lane.b32.xlu0 %v2748, 64
    %v2758 = vpop.permute.xlu0 %2757
    %v2761 = vrot.slane %v2754, 2
    %v2762 = vrot.slane %v2755, 2
    %v2765 = vsel %vm1691, %v2758, 0
    %2767 = vmatprep.subr.mxu0 %v2637
    %2768 = vmatpush1.msra.mxu0 %v2636
    %2769 = vmatprep.subr.mxu0 %v2639
    %2770 = vmatpush1.msra.mxu0 %v2638
    %2771 = vmatprep.subr.mxu0 %v2641
    %2772 = vmatpush1.msra.mxu0 %v2640
    %2773 = vmatprep.subr.mxu0 %v2643
    %2774 = vmatpush1.msra.mxu0 %v2642
    %2775 = vmatprep.subr.mxu0 %v2645
    %2776 = vmatpush1.msra.mxu0 %v2644
    %2777 = vmatprep.subr.mxu0 %v2647
    %2778 = vmatpush1.msra.mxu0 %v2646
    %2779 = vmatprep.subr.mxu0 %v2649
    %2780 = vmatpush1.msra.mxu0 %v2648
    %2781 = vmatprep.subr.mxu0 %v2651
    %2782 = vmatpush1.msra.mxu0 %v2650
    %2783 = vmatprep.subr.mxu0 0.0
    %2784 = vmatpush1.msra.mxu0 0.0
    %2785 = vmatprep.subr.mxu0 0.0
    %2786 = vmatpush1.msra.mxu0 0.0
    %2787 = vmatprep.subr.mxu0 0.0
    %2788 = vmatpush1.msra.mxu0 0.0
    %2789 = vmatprep.subr.mxu0 0.0
    %2790 = vmatpush1.msra.mxu0 0.0
    %2791 = vmatprep.subr.mxu0 0.0
    %2792 = vmatpush1.msra.mxu0 0.0
    %2793 = vmatprep.subr.mxu0 0.0
    %2794 = vmatpush1.msra.mxu0 0.0
    %2795 = vmatprep.subr.mxu0 0.0
    %2796 = vmatpush1.msra.mxu0 0.0
    %2797 = vmatprep.subr.mxu0 0.0
    %2798 = vmatpush1.msra.mxu0 0.0
    %2799 = vmatprep.subr.mxu0 0.0
    %2800 = vmatpush1.msra.mxu0 0.0
    %2801 = vmatprep.subr.mxu0 0.0
    %2802 = vmatpush1.msra.mxu0 0.0
    %2803 = vmatprep.subr.mxu0 0.0
    %2804 = vmatpush1.msra.mxu0 0.0
    %2805 = vmatprep.subr.mxu0 0.0
    %2806 = vmatpush1.msra.mxu0 0.0
    %2807 = vmatprep.subr.mxu0 0.0
    %2808 = vmatpush1.msra.mxu0 0.0
    %2809 = vmatprep.subr.mxu0 0.0
    %2810 = vmatpush1.msra.mxu0 0.0
    %2811 = vmatprep.subr.mxu0 0.0
    %2812 = vmatpush1.msra.mxu0 0.0
    %2813 = vmatprep.subr.mxu0 0.0
    %2814 = vmatpush1.msra.mxu0 0.0
    %2815 = vmatprep.subr.mxu0 0.0
    %2816 = vmatpush1.msra.mxu0 0.0
    %2817 = vmatprep.subr.mxu0 0.0
    %2818 = vmatpush1.msra.mxu0 0.0
    %2819 = vmatprep.subr.mxu0 0.0
    %2820 = vmatpush1.msra.mxu0 0.0
    %2821 = vmatprep.subr.mxu0 0.0
    %2822 = vmatpush1.msra.mxu0 0.0
    %2823 = vmatprep.subr.mxu0 0.0
    %2824 = vmatpush1.msra.mxu0 0.0
    %2825 = vmatprep.subr.mxu0 0.0
    %2826 = vmatpush1.msra.mxu0 0.0
    %2827 = vmatprep.subr.mxu0 0.0
    %2828 = vmatpush1.msra.mxu0 0.0
    %2829 = vmatprep.subr.mxu0 0.0
    %2830 = vmatpush1.msra.mxu0 0.0
    %2831 = vmatprep.mubr.f32.mxu0 0.0
    %2832 = vmatmul.mubr.f32.gmra.mrb[0].mxu0 %v2765
    %v2833 = vpop.f32.mrb[0].mxu0
    %v2834 = vadd.f32 %v2761, %v2833
    %v2835 = vpop.f32.mrb[0].mxu0
    %v2836 = vadd.f32 %v2762, %v2835
    %2837 = vdwg.mxu0
    %v2838 = vmul.f32 %v2834, 0.5
    %v2839 = vtanh.pop %v2838
    %v2840 = vmul.f32 %v2839, 0.5
    %v2841 = vadd.f32 %v2840, 0.5
    %v2842 = vtanh.pop %v2836
    %v2843 = vmul.f32 %v2836, 0.5
    %v2844 = vtanh.pop %v2843
    %v2845 = vmul.f32 %v2844, 0.5
    %v2846 = vadd.f32 %v2845, 0.5
    %v2847 = vmul.f32 %v2841, %v2746
    %v2848 = vmul.f32 %v2841, %v2842
    %2850 = vrot.lane.b32.xlu0 %v2848, 64
    %v2851 = vpop.permute.xlu0 %2850
    %v2853 = vadd.f32 %v2847, %v2851
    %v2854 = vtanh.pop %v2853
    %v2855 = vmul.f32 %v2846, %v2854
    %v2856 = vadd.f32 %v2749, %v2855
    %2858 = vrot.lane.b32.xlu0 %v2855, 64
    %v2859 = vpop.permute.xlu0 %2858
    %v2862 = vrot.slane %v2658, 4
    %v2863 = vrot.slane %v2659, 4
    %v2866 = vsel %vm1691, %v2859, 0
    %2868 = vmatprep.subr.mxu0 %v2637
    %2869 = vmatpush1.msra.mxu0 %v2636
    %2870 = vmatprep.subr.mxu0 %v2639
    %2871 = vmatpush1.msra.mxu0 %v2638
    %2872 = vmatprep.subr.mxu0 %v2641
    %2873 = vmatpush1.msra.mxu0 %v2640
    %2874 = vmatprep.subr.mxu0 %v2643
    %2875 = vmatpush1.msra.mxu0 %v2642
    %2876 = vmatprep.subr.mxu0 %v2645
    %2877 = vmatpush1.msra.mxu0 %v2644
    %2878 = vmatprep.subr.mxu0 %v2647
    %2879 = vmatpush1.msra.mxu0 %v2646
    %2880 = vmatprep.subr.mxu0 %v2649
    %2881 = vmatpush1.msra.mxu0 %v2648
    %2882 = vmatprep.subr.mxu0 %v2651
    %2883 = vmatpush1.msra.mxu0 %v2650
    %2884 = vmatprep.subr.mxu0 0.0
    %2885 = vmatpush1.msra.mxu0 0.0
    %2886 = vmatprep.subr.mxu0 0.0
    %2887 = vmatpush1.msra.mxu0 0.0
    %2888 = vmatprep.subr.mxu0 0.0
    %2889 = vmatpush1.msra.mxu0 0.0
    %2890 = vmatprep.subr.mxu0 0.0
    %2891 = vmatpush1.msra.mxu0 0.0
    %2892 = vmatprep.subr.mxu0 0.0
    %2893 = vmatpush1.msra.mxu0 0.0
    %2894 = vmatprep.subr.mxu0 0.0
    %2895 = vmatpush1.msra.mxu0 0.0
    %2896 = vmatprep.subr.mxu0 0.0
    %2897 = vmatpush1.msra.mxu0 0.0
    %2898 = vmatprep.subr.mxu0 0.0
    %2899 = vmatpush1.msra.mxu0 0.0
    %2900 = vmatprep.subr.mxu0 0.0
    %2901 = vmatpush1.msra.mxu0 0.0
    %2902 = vmatprep.subr.mxu0 0.0
    %2903 = vmatpush1.msra.mxu0 0.0
    %2904 = vmatprep.subr.mxu0 0.0
    %2905 = vmatpush1.msra.mxu0 0.0
    %2906 = vmatprep.subr.mxu0 0.0
    %2907 = vmatpush1.msra.mxu0 0.0
    %2908 = vmatprep.subr.mxu0 0.0
    %2909 = vmatpush1.msra.mxu0 0.0
    %2910 = vmatprep.subr.mxu0 0.0
    %2911 = vmatpush1.msra.mxu0 0.0
    %2912 = vmatprep.subr.mxu0 0.0
    %2913 = vmatpush1.msra.mxu0 0.0
    %2914 = vmatprep.subr.mxu0 0.0
    %2915 = vmatpush1.msra.mxu0 0.0
    %2916 = vmatprep.subr.mxu0 0.0
    %2917 = vmatpush1.msra.mxu0 0.0
    %2918 = vmatprep.subr.mxu0 0.0
    %2919 = vmatpush1.msra.mxu0 0.0
    %2920 = vmatprep.subr.mxu0 0.0
    %2921 = vmatpush1.msra.mxu0 0.0
    %2922 = vmatprep.subr.mxu0 0.0
    %2923 = vmatpush1.msra.mxu0 0.0
    %2924 = vmatprep.subr.mxu0 0.0
    %2925 = vmatpush1.msra.mxu0 0.0
    %2926 = vmatprep.subr.mxu0 0.0
    %2927 = vmatpush1.msra.mxu0 0.0
    %2928 = vmatprep.subr.mxu0 0.0
    %2929 = vmatpush1.msra.mxu0 0.0
    %2930 = vmatprep.subr.mxu0 0.0
    %2931 = vmatpush1.msra.mxu0 0.0
    %2932 = vmatprep.mubr.f32.mxu0 0.0
    %2933 = vmatmul.mubr.f32.gmra.mrb[0].mxu0 %v2866
    %v2934 = vpop.f32.mrb[0].mxu0
    %v2935 = vadd.f32 %v2862, %v2934
    %v2936 = vpop.f32.mrb[0].mxu0
    %v2937 = vadd.f32 %v2863, %v2936
    %2938 = vdwg.mxu0
    %v2939 = vmul.f32 %v2935, 0.5
    %v2940 = vtanh.pop %v2939
    %v2941 = vmul.f32 %v2940, 0.5
    %v2942 = vadd.f32 %v2941, 0.5
    %v2943 = vtanh.pop %v2937
    %v2944 = vmul.f32 %v2937, 0.5
    %v2945 = vtanh.pop %v2944
    %v2946 = vmul.f32 %v2945, 0.5
    %v2947 = vadd.f32 %v2946, 0.5
    %v2948 = vmul.f32 %v2942, %v2853
    %v2949 = vmul.f32 %v2942, %v2943
    %2951 = vrot.lane.b32.xlu0 %v2949, 64
    %v2952 = vpop.permute.xlu0 %2951
    %v2954 = vadd.f32 %v2948, %v2952
    %v2955 = vtanh.pop %v2954
    %v2956 = vmul.f32 %v2947, %v2955
    %v2957 = vadd.f32 %v2856, %v2956
    %2959 = vrot.lane.b32.xlu0 %v2956, 64
    %v2960 = vpop.permute.xlu0 %2959
    %v2961 = vrot.slane %v2754, 6
    %v2962 = vrot.slane %v2755, 6
    %v2965 = vsel %vm1691, %v2960, 0
    %2967 = vmatprep.subr.mxu0 %v2637
    %2968 = vmatpush1.msra.mxu0 %v2636
    %2969 = vmatprep.subr.mxu0 %v2639
    %2970 = vmatpush1.msra.mxu0 %v2638
    %2971 = vmatprep.subr.mxu0 %v2641
    %2972 = vmatpush1.msra.mxu0 %v2640
    %2973 = vmatprep.subr.mxu0 %v2643
    %2974 = vmatpush1.msra.mxu0 %v2642
    %2975 = vmatprep.subr.mxu0 %v2645
    %2976 = vmatpush1.msra.mxu0 %v2644
    %2977 = vmatprep.subr.mxu0 %v2647
    %2978 = vmatpush1.msra.mxu0 %v2646
    %2979 = vmatprep.subr.mxu0 %v2649
    %2980 = vmatpush1.msra.mxu0 %v2648
    %2981 = vmatprep.subr.mxu0 %v2651
    %2982 = vmatpush1.msra.mxu0 %v2650
    %2983 = vmatprep.subr.mxu0 0.0
    %2984 = vmatpush1.msra.mxu0 0.0
    %2985 = vmatprep.subr.mxu0 0.0
    %2986 = vmatpush1.msra.mxu0 0.0
    %2987 = vmatprep.subr.mxu0 0.0
    %2988 = vmatpush1.msra.mxu0 0.0
    %2989 = vmatprep.subr.mxu0 0.0
    %2990 = vmatpush1.msra.mxu0 0.0
    %2991 = vmatprep.subr.mxu0 0.0
    %2992 = vmatpush1.msra.mxu0 0.0
    %2993 = vmatprep.subr.mxu0 0.0
    %2994 = vmatpush1.msra.mxu0 0.0
    %2995 = vmatprep.subr.mxu0 0.0
    %2996 = vmatpush1.msra.mxu0 0.0
    %2997 = vmatprep.subr.mxu0 0.0
    %2998 = vmatpush1.msra.mxu0 0.0
    %2999 = vmatprep.subr.mxu0 0.0
    %3000 = vmatpush1.msra.mxu0 0.0
    %3001 = vmatprep.subr.mxu0 0.0
    %3002 = vmatpush1.msra.mxu0 0.0
    %3003 = vmatprep.subr.mxu0 0.0
    %3004 = vmatpush1.msra.mxu0 0.0
    %3005 = vmatprep.subr.mxu0 0.0
    %3006 = vmatpush1.msra.mxu0 0.0
    %3007 = vmatprep.subr.mxu0 0.0
    %3008 = vmatpush1.msra.mxu0 0.0
    %3009 = vmatprep.subr.mxu0 0.0
    %3010 = vmatpush1.msra.mxu0 0.0
    %3011 = vmatprep.subr.mxu0 0.0
    %3012 = vmatpush1.msra.mxu0 0.0
    %3013 = vmatprep.subr.mxu0 0.0
    %3014 = vmatpush1.msra.mxu0 0.0
    %3015 = vmatprep.subr.mxu0 0.0
    %3016 = vmatpush1.msra.mxu0 0.0
    %3017 = vmatprep.subr.mxu0 0.0
    %3018 = vmatpush1.msra.mxu0 0.0
    %3019 = vmatprep.subr.mxu0 0.0
    %3020 = vmatpush1.msra.mxu0 0.0
    %3021 = vmatprep.subr.mxu0 0.0
    %3022 = vmatpush1.msra.mxu0 0.0
    %3023 = vmatprep.subr.mxu0 0.0
    %3024 = vmatpush1.msra.mxu0 0.0
    %3025 = vmatprep.subr.mxu0 0.0
    %3026 = vmatpush1.msra.mxu0 0.0
    %3027 = vmatprep.subr.mxu0 0.0
    %3028 = vmatpush1.msra.mxu0 0.0
    %3029 = vmatprep.subr.mxu0 0.0
    %3030 = vmatpush1.msra.mxu0 0.0
    %3031 = vmatprep.mubr.f32.mxu0 0.0
    %3032 = vmatmul.mubr.f32.gmra.mrb[0].mxu0 %v2965
    %v3033 = vpop.f32.mrb[0].mxu0
    %v3034 = vadd.f32 %v2961, %v3033
    %v3035 = vpop.f32.mrb[0].mxu0
    %v3036 = vadd.f32 %v2962, %v3035
    %3037 = vdwg.mxu0
    %v3038 = vmul.f32 %v3034, 0.5
    %v3039 = vtanh.pop %v3038
    %v3040 = vmul.f32 %v3039, 0.5
    %v3041 = vadd.f32 %v3040, 0.5
    %v3042 = vtanh.pop %v3036
    %v3043 = vmul.f32 %v3036, 0.5
    %v3044 = vtanh.pop %v3043
    %v3045 = vmul.f32 %v3044, 0.5
    %v3046 = vadd.f32 %v3045, 0.5
    %v3047 = vmul.f32 %v3041, %v2954
    %v3048 = vmul.f32 %v3041, %v3042
    %3050 = vrot.lane.b32.xlu0 %v3048, 64
    %v3051 = vpop.permute.xlu0 %3050
    %v3053 = vadd.f32 %v3047, %v3051
    %v3054 = vtanh.pop %v3053
    %v3055 = vmul.f32 %v3046, %v3054
    %v3056 = vadd.f32 %v2957, %v3055
    %v3059 = vrot.slane %v2626, 6
    %v3060 = vrot.slane %v2628, 6
    %v3063 = vsel %vm1681, %v2632, %v3059
    %v3064 = vsel %vm1682, %v2634, %v3060
    %3066 = vrot.lane.b32.xlu0 %v3055, 64
    %v3067 = vpop.permute.xlu0 %3066
    %v3068 = vsel %vm1691, %v3067, 0
    %3070 = vmatprep.subr.mxu0 %v2637
    %3071 = vmatpush1.msra.mxu0 %v2636
    %3072 = vmatprep.subr.mxu0 %v2639
    %3073 = vmatpush1.msra.mxu0 %v2638
    %3074 = vmatprep.subr.mxu0 %v2641
    %3075 = vmatpush1.msra.mxu0 %v2640
    %3076 = vmatprep.subr.mxu0 %v2643
    %3077 = vmatpush1.msra.mxu0 %v2642
    %3078 = vmatprep.subr.mxu0 %v2645
    %3079 = vmatpush1.msra.mxu0 %v2644
    %3080 = vmatprep.subr.mxu0 %v2647
    %3081 = vmatpush1.msra.mxu0 %v2646
    %3082 = vmatprep.subr.mxu0 %v2649
    %3083 = vmatpush1.msra.mxu0 %v2648
    %3084 = vmatprep.subr.mxu0 %v2651
    %3085 = vmatpush1.msra.mxu0 %v2650
    %3086 = vmatprep.subr.mxu0 0.0
    %3087 = vmatpush1.msra.mxu0 0.0
    %3088 = vmatprep.subr.mxu0 0.0
    %3089 = vmatpush1.msra.mxu0 0.0
    %3090 = vmatprep.subr.mxu0 0.0
    %3091 = vmatpush1.msra.mxu0 0.0
    %3092 = vmatprep.subr.mxu0 0.0
    %3093 = vmatpush1.msra.mxu0 0.0
    %3094 = vmatprep.subr.mxu0 0.0
    %3095 = vmatpush1.msra.mxu0 0.0
    %3096 = vmatprep.subr.mxu0 0.0
    %3097 = vmatpush1.msra.mxu0 0.0
    %3098 = vmatprep.subr.mxu0 0.0
    %3099 = vmatpush1.msra.mxu0 0.0
    %3100 = vmatprep.subr.mxu0 0.0
    %3101 = vmatpush1.msra.mxu0 0.0
    %3102 = vmatprep.subr.mxu0 0.0
    %3103 = vmatpush1.msra.mxu0 0.0
    %3104 = vmatprep.subr.mxu0 0.0
    %3105 = vmatpush1.msra.mxu0 0.0
    %3106 = vmatprep.subr.mxu0 0.0
    %3107 = vmatpush1.msra.mxu0 0.0
    %3108 = vmatprep.subr.mxu0 0.0
    %3109 = vmatpush1.msra.mxu0 0.0
    %3110 = vmatprep.subr.mxu0 0.0
    %3111 = vmatpush1.msra.mxu0 0.0
    %3112 = vmatprep.subr.mxu0 0.0
    %3113 = vmatpush1.msra.mxu0 0.0
    %3114 = vmatprep.subr.mxu0 0.0
    %3115 = vmatpush1.msra.mxu0 0.0
    %3116 = vmatprep.subr.mxu0 0.0
    %3117 = vmatpush1.msra.mxu0 0.0
    %3118 = vmatprep.subr.mxu0 0.0
    %3119 = vmatpush1.msra.mxu0 0.0
    %3120 = vmatprep.subr.mxu0 0.0
    %3121 = vmatpush1.msra.mxu0 0.0
    %3122 = vmatprep.subr.mxu0 0.0
    %3123 = vmatpush1.msra.mxu0 0.0
    %3124 = vmatprep.subr.mxu0 0.0
    %3125 = vmatpush1.msra.mxu0 0.0
    %3126 = vmatprep.subr.mxu0 0.0
    %3127 = vmatpush1.msra.mxu0 0.0
    %3128 = vmatprep.subr.mxu0 0.0
    %3129 = vmatpush1.msra.mxu0 0.0
    %3130 = vmatprep.subr.mxu0 0.0
    %3131 = vmatpush1.msra.mxu0 0.0
    %3132 = vmatprep.subr.mxu0 0.0
    %3133 = vmatpush1.msra.mxu0 0.0
    %3134 = vmatprep.mubr.f32.mxu0 0.0
    %3135 = vmatmul.mubr.f32.gmra.mrb[0].mxu0 %v3068
    %v3136 = vpop.f32.mrb[0].mxu0
    %v3137 = vadd.f32 %v3063, %v3136
    %v3138 = vpop.f32.mrb[0].mxu0
    %v3139 = vadd.f32 %v3064, %v3138
    %3140 = vdwg.mxu0
    %v3141 = vmul.f32 %v3137, 0.5
    %v3142 = vtanh.pop %v3141
    %v3143 = vmul.f32 %v3142, 0.5
    %v3144 = vadd.f32 %v3143, 0.5
    %v3145 = vtanh.pop %v3139
    %v3146 = vmul.f32 %v3139, 0.5
    %v3147 = vtanh.pop %v3146
    %v3148 = vmul.f32 %v3147, 0.5
    %v3149 = vadd.f32 %v3148, 0.5
    %v3150 = vmul.f32 %v3144, %v3053
    %v3151 = vmul.f32 %v3144, %v3145
    %3153 = vrot.lane.b32.xlu0 %v3151, 64
    %v3154 = vpop.permute.xlu0 %3153
    %v3156 = vadd.f32 %v3150, %v3154
    %v3157 = vtanh.pop %v3156
    %v3158 = vmul.f32 %v3149, %v3157
    %v3159 = vadd.f32 %v3056, %v3158
    %v3160 = vrot.slane %v2626, 2
    %v3161 = vrot.slane %v2628, 2
    %v3164 = vsel %vm1681, %v2632, %v3160
    %v3165 = vsel %vm1682, %v2634, %v3161
    %3167 = vrot.lane.b32.xlu0 %v3158, 64
    %v3168 = vpop.permute.xlu0 %3167
    %v3171 = vrot.slane %v3164, 2
    %v3172 = vrot.slane %v3165, 2
    %v3175 = vsel %vm1691, %v3168, 0
    %3177 = vmatprep.subr.mxu0 %v2637
    %3178 = vmatpush1.msra.mxu0 %v2636
    %3179 = vmatprep.subr.mxu0 %v2639
    %3180 = vmatpush1.msra.mxu0 %v2638
    %3181 = vmatprep.subr.mxu0 %v2641
    %3182 = vmatpush1.msra.mxu0 %v2640
    %3183 = vmatprep.subr.mxu0 %v2643
    %3184 = vmatpush1.msra.mxu0 %v2642
    %3185 = vmatprep.subr.mxu0 %v2645
    %3186 = vmatpush1.msra.mxu0 %v2644
    %3187 = vmatprep.subr.mxu0 %v2647
    %3188 = vmatpush1.msra.mxu0 %v2646
    %3189 = vmatprep.subr.mxu0 %v2649
    %3190 = vmatpush1.msra.mxu0 %v2648
    %3191 = vmatprep.subr.mxu0 %v2651
    %3192 = vmatpush1.msra.mxu0 %v2650
    %3193 = vmatprep.subr.mxu0 0.0
    %3194 = vmatpush1.msra.mxu0 0.0
    %3195 = vmatprep.subr.mxu0 0.0
    %3196 = vmatpush1.msra.mxu0 0.0
    %3197 = vmatprep.subr.mxu0 0.0
    %3198 = vmatpush1.msra.mxu0 0.0
    %3199 = vmatprep.subr.mxu0 0.0
    %3200 = vmatpush1.msra.mxu0 0.0
    %3201 = vmatprep.subr.mxu0 0.0
    %3202 = vmatpush1.msra.mxu0 0.0
    %3203 = vmatprep.subr.mxu0 0.0
    %3204 = vmatpush1.msra.mxu0 0.0
    %3205 = vmatprep.subr.mxu0 0.0
    %3206 = vmatpush1.msra.mxu0 0.0
    %3207 = vmatprep.subr.mxu0 0.0
    %3208 = vmatpush1.msra.mxu0 0.0
    %3209 = vmatprep.subr.mxu0 0.0
    %3210 = vmatpush1.msra.mxu0 0.0
    %3211 = vmatprep.subr.mxu0 0.0
    %3212 = vmatpush1.msra.mxu0 0.0
    %3213 = vmatprep.subr.mxu0 0.0
    %3214 = vmatpush1.msra.mxu0 0.0
    %3215 = vmatprep.subr.mxu0 0.0
    %3216 = vmatpush1.msra.mxu0 0.0
    %3217 = vmatprep.subr.mxu0 0.0
    %3218 = vmatpush1.msra.mxu0 0.0
    %3219 = vmatprep.subr.mxu0 0.0
    %3220 = vmatpush1.msra.mxu0 0.0
    %3221 = vmatprep.subr.mxu0 0.0
    %3222 = vmatpush1.msra.mxu0 0.0
    %3223 = vmatprep.subr.mxu0 0.0
    %3224 = vmatpush1.msra.mxu0 0.0
    %3225 = vmatprep.subr.mxu0 0.0
    %3226 = vmatpush1.msra.mxu0 0.0
    %3227 = vmatprep.subr.mxu0 0.0
    %3228 = vmatpush1.msra.mxu0 0.0
    %3229 = vmatprep.subr.mxu0 0.0
    %3230 = vmatpush1.msra.mxu0 0.0
    %3231 = vmatprep.subr.mxu0 0.0
    %3232 = vmatpush1.msra.mxu0 0.0
    %3233 = vmatprep.subr.mxu0 0.0
    %3234 = vmatpush1.msra.mxu0 0.0
    %3235 = vmatprep.subr.mxu0 0.0
    %3236 = vmatpush1.msra.mxu0 0.0
    %3237 = vmatprep.subr.mxu0 0.0
    %3238 = vmatpush1.msra.mxu0 0.0
    %3239 = vmatprep.subr.mxu0 0.0
    %3240 = vmatpush1.msra.mxu0 0.0
    %3241 = vmatprep.mubr.f32.mxu0 0.0
    %3242 = vmatmul.mubr.f32.gmra.mrb[0].mxu0 %v3175
    %v3243 = vpop.f32.mrb[0].mxu0
    %v3244 = vadd.f32 %v3171, %v3243
    %v3245 = vpop.f32.mrb[0].mxu0
    %v3246 = vadd.f32 %v3172, %v3245
    %3247 = vdwg.mxu0
    %v3248 = vmul.f32 %v3244, 0.5
    %v3249 = vtanh.pop %v3248
    %v3250 = vmul.f32 %v3249, 0.5
    %v3251 = vadd.f32 %v3250, 0.5
    %v3252 = vtanh.pop %v3246
    %v3253 = vmul.f32 %v3246, 0.5
    %v3254 = vtanh.pop %v3253
    %v3255 = vmul.f32 %v3254, 0.5
    %v3256 = vadd.f32 %v3255, 0.5
    %v3257 = vmul.f32 %v3251, %v3156
    %v3258 = vmul.f32 %v3251, %v3252
    %3260 = vrot.lane.b32.xlu0 %v3258, 64
    %v3261 = vpop.permute.xlu0 %3260
    %v3263 = vadd.f32 %v3257, %v3261
    %v3264 = vtanh.pop %v3263
    %v3265 = vmul.f32 %v3256, %v3264
    %v3266 = vadd.f32 %v3159, %v3265
    %3268 = vrot.lane.b32.xlu0 %v3265, 64
    %v3269 = vpop.permute.xlu0 %3268
    %v3272 = vrot.slane %v3063, 4
    %v3273 = vrot.slane %v3064, 4
    %v3276 = vsel %vm1691, %v3269, 0
    %3278 = vmatprep.subr.mxu0 %v2637
    %3279 = vmatpush1.msra.mxu0 %v2636
    %3280 = vmatprep.subr.mxu0 %v2639
    %3281 = vmatpush1.msra.mxu0 %v2638
    %3282 = vmatprep.subr.mxu0 %v2641
    %3283 = vmatpush1.msra.mxu0 %v2640
    %3284 = vmatprep.subr.mxu0 %v2643
    %3285 = vmatpush1.msra.mxu0 %v2642
    %3286 = vmatprep.subr.mxu0 %v2645
    %3287 = vmatpush1.msra.mxu0 %v2644
    %3288 = vmatprep.subr.mxu0 %v2647
    %3289 = vmatpush1.msra.mxu0 %v2646
    %3290 = vmatprep.subr.mxu0 %v2649
    %3291 = vmatpush1.msra.mxu0 %v2648
    %3292 = vmatprep.subr.mxu0 %v2651
    %3293 = vmatpush1.msra.mxu0 %v2650
    %3294 = vmatprep.subr.mxu0 0.0
    %3295 = vmatpush1.msra.mxu0 0.0
    %3296 = vmatprep.subr.mxu0 0.0
    %3297 = vmatpush1.msra.mxu0 0.0
    %3298 = vmatprep.subr.mxu0 0.0
    %3299 = vmatpush1.msra.mxu0 0.0
    %3300 = vmatprep.subr.mxu0 0.0
    %3301 = vmatpush1.msra.mxu0 0.0
    %3302 = vmatprep.subr.mxu0 0.0
    %3303 = vmatpush1.msra.mxu0 0.0
    %3304 = vmatprep.subr.mxu0 0.0
    %3305 = vmatpush1.msra.mxu0 0.0
    %3306 = vmatprep.subr.mxu0 0.0
    %3307 = vmatpush1.msra.mxu0 0.0
    %3308 = vmatprep.subr.mxu0 0.0
    %3309 = vmatpush1.msra.mxu0 0.0
    %3310 = vmatprep.subr.mxu0 0.0
    %3311 = vmatpush1.msra.mxu0 0.0
    %3312 = vmatprep.subr.mxu0 0.0
    %3313 = vmatpush1.msra.mxu0 0.0
    %3314 = vmatprep.subr.mxu0 0.0
    %3315 = vmatpush1.msra.mxu0 0.0
    %3316 = vmatprep.subr.mxu0 0.0
    %3317 = vmatpush1.msra.mxu0 0.0
    %3318 = vmatprep.subr.mxu0 0.0
    %3319 = vmatpush1.msra.mxu0 0.0
    %3320 = vmatprep.subr.mxu0 0.0
    %3321 = vmatpush1.msra.mxu0 0.0
    %3322 = vmatprep.subr.mxu0 0.0
    %3323 = vmatpush1.msra.mxu0 0.0
    %3324 = vmatprep.subr.mxu0 0.0
    %3325 = vmatpush1.msra.mxu0 0.0
    %3326 = vmatprep.subr.mxu0 0.0
    %3327 = vmatpush1.msra.mxu0 0.0
    %3328 = vmatprep.subr.mxu0 0.0
    %3329 = vmatpush1.msra.mxu0 0.0
    %3330 = vmatprep.subr.mxu0 0.0
    %3331 = vmatpush1.msra.mxu0 0.0
    %3332 = vmatprep.subr.mxu0 0.0
    %3333 = vmatpush1.msra.mxu0 0.0
    %3334 = vmatprep.subr.mxu0 0.0
    %3335 = vmatpush1.msra.mxu0 0.0
    %3336 = vmatprep.subr.mxu0 0.0
    %3337 = vmatpush1.msra.mxu0 0.0
    %3338 = vmatprep.subr.mxu0 0.0
    %3339 = vmatpush1.msra.mxu0 0.0
    %3340 = vmatprep.subr.mxu0 0.0
    %3341 = vmatpush1.msra.mxu0 0.0
    %3342 = vmatprep.mubr.f32.mxu0 0.0
    %3343 = vmatmul.mubr.f32.gmra.mrb[0].mxu0 %v3276
    %v3344 = vpop.f32.mrb[0].mxu0
    %v3345 = vadd.f32 %v3272, %v3344
    %v3346 = vpop.f32.mrb[0].mxu0
    %v3347 = vadd.f32 %v3273, %v3346
    %3348 = vdwg.mxu0
    %v3349 = vmul.f32 %v3345, 0.5
    %v3350 = vtanh.pop %v3349
    %v3351 = vmul.f32 %v3350, 0.5
    %v3352 = vadd.f32 %v3351, 0.5
    %v3353 = vtanh.pop %v3347
    %v3354 = vmul.f32 %v3347, 0.5
    %v3355 = vtanh.pop %v3354
    %v3356 = vmul.f32 %v3355, 0.5
    %v3357 = vadd.f32 %v3356, 0.5
    %v3358 = vmul.f32 %v3352, %v3263
    %v3359 = vmul.f32 %v3352, %v3353
    %3361 = vrot.lane.b32.xlu0 %v3359, 64
    %v3362 = vpop.permute.xlu0 %3361
    %v3364 = vadd.f32 %v3358, %v3362
    %v3365 = vtanh.pop %v3364
    %v3366 = vmul.f32 %v3357, %v3365
    %v3367 = vadd.f32 %v3266, %v3366
    %3369 = vrot.lane.b32.xlu0 %v3366, 64
    %v3370 = vpop.permute.xlu0 %3369
    %v3371 = vrot.slane %v3164, 6
    %v3372 = vrot.slane %v3165, 6
    %v3375 = vsel %vm1691, %v3370, 0
    %3377 = vmatprep.subr.mxu0 %v2637
    %3378 = vmatpush1.msra.mxu0 %v2636
    %3379 = vmatprep.subr.mxu0 %v2639
    %3380 = vmatpush1.msra.mxu0 %v2638
    %3381 = vmatprep.subr.mxu0 %v2641
    %3382 = vmatpush1.msra.mxu0 %v2640
    %3383 = vmatprep.subr.mxu0 %v2643
    %3384 = vmatpush1.msra.mxu0 %v2642
    %3385 = vmatprep.subr.mxu0 %v2645
    %3386 = vmatpush1.msra.mxu0 %v2644
    %3387 = vmatprep.subr.mxu0 %v2647
    %3388 = vmatpush1.msra.mxu0 %v2646
    %3389 = vmatprep.subr.mxu0 %v2649
    %3390 = vmatpush1.msra.mxu0 %v2648
    %3391 = vmatprep.subr.mxu0 %v2651
    %3392 = vmatpush1.msra.mxu0 %v2650
    %3393 = vmatprep.subr.mxu0 0.0
    %3394 = vmatpush1.msra.mxu0 0.0
    %3395 = vmatprep.subr.mxu0 0.0
    %3396 = vmatpush1.msra.mxu0 0.0
    %3397 = vmatprep.subr.mxu0 0.0
    %3398 = vmatpush1.msra.mxu0 0.0
    %3399 = vmatprep.subr.mxu0 0.0
    %3400 = vmatpush1.msra.mxu0 0.0
    %3401 = vmatprep.subr.mxu0 0.0
    %3402 = vmatpush1.msra.mxu0 0.0
    %3403 = vmatprep.subr.mxu0 0.0
    %3404 = vmatpush1.msra.mxu0 0.0
    %3405 = vmatprep.subr.mxu0 0.0
    %3406 = vmatpush1.msra.mxu0 0.0
    %3407 = vmatprep.subr.mxu0 0.0
    %3408 = vmatpush1.msra.mxu0 0.0
    %3409 = vmatprep.subr.mxu0 0.0
    %3410 = vmatpush1.msra.mxu0 0.0
    %3411 = vmatprep.subr.mxu0 0.0
    %3412 = vmatpush1.msra.mxu0 0.0
    %3413 = vmatprep.subr.mxu0 0.0
    %3414 = vmatpush1.msra.mxu0 0.0
    %3415 = vmatprep.subr.mxu0 0.0
    %3416 = vmatpush1.msra.mxu0 0.0
    %3417 = vmatprep.subr.mxu0 0.0
    %3418 = vmatpush1.msra.mxu0 0.0
    %3419 = vmatprep.subr.mxu0 0.0
    %3420 = vmatpush1.msra.mxu0 0.0
    %3421 = vmatprep.subr.mxu0 0.0
    %3422 = vmatpush1.msra.mxu0 0.0
    %3423 = vmatprep.subr.mxu0 0.0
    %3424 = vmatpush1.msra.mxu0 0.0
    %3425 = vmatprep.subr.mxu0 0.0
    %3426 = vmatpush1.msra.mxu0 0.0
    %3427 = vmatprep.subr.mxu0 0.0
    %3428 = vmatpush1.msra.mxu0 0.0
    %3429 = vmatprep.subr.mxu0 0.0
    %3430 = vmatpush1.msra.mxu0 0.0
    %3431 = vmatprep.subr.mxu0 0.0
    %3432 = vmatpush1.msra.mxu0 0.0
    %3433 = vmatprep.subr.mxu0 0.0
    %3434 = vmatpush1.msra.mxu0 0.0
    %3435 = vmatprep.subr.mxu0 0.0
    %3436 = vmatpush1.msra.mxu0 0.0
    %3437 = vmatprep.subr.mxu0 0.0
    %3438 = vmatpush1.msra.mxu0 0.0
    %3439 = vmatprep.subr.mxu0 0.0
    %3440 = vmatpush1.msra.mxu0 0.0
    %3441 = vmatprep.mubr.f32.mxu0 0.0
    %3442 = vmatmul.mubr.f32.gmra.mrb[0].mxu0 %v3375
    %v3443 = vpop.f32.mrb[0].mxu0
    %v3444 = vadd.f32 %v3371, %v3443
    %v3445 = vpop.f32.mrb[0].mxu0
    %v3446 = vadd.f32 %v3372, %v3445
    %3447 = vdwg.mxu0
    %v3448 = vmul.f32 %v3444, 0.5
    %v3449 = vtanh.pop %v3448
    %v3450 = vmul.f32 %v3449, 0.5
    %v3451 = vadd.f32 %v3450, 0.5
    %v3452 = vtanh.pop %v3446
    %v3453 = vmul.f32 %v3446, 0.5
    %v3454 = vtanh.pop %v3453
    %v3455 = vmul.f32 %v3454, 0.5
    %v3456 = vadd.f32 %v3455, 0.5
    %v3457 = vmul.f32 %v3451, %v3364
    %v3458 = vmul.f32 %v3451, %v3452
    %3460 = vrot.lane.b32.xlu0 %v3458, 64
    %v3461 = vpop.permute.xlu0 %3460
    %v3463 = vadd.f32 %v3457, %v3461
    %v3464 = vtanh.pop %v3463
    %v3465 = vmul.f32 %v3456, %v3464
    %v3466 = vadd.f32 %v3367, %v3465
    %3468 = vrot.lane.b32.xlu0 %v3466, 96
    %v3469 = vpop.permute.xlu0 %3468
    %v3471 = vadd.f32 %v3466, %v3469
    %v3472 = vmul.f32 %v3471, 0.125
    %v3473 = vld [vmem:[%s24] sm:$0xff]
    %v3474 = vld [vmem:[%s24 + $0x8] sm:$0xff]
    %v3475 = vld [vmem:[%s24 + $0x10] sm:$0xff]
    %v3476 = vld [vmem:[%s24 + $0x18] sm:$0xff]
    %v3477 = vld [vmem:[%s25] sm:$0xff]
    %v3478 = vld [vmem:[%s25 + $0x8] sm:$0xff]
    %v3479 = vld [vmem:[%s25 + $0x10] sm:$0xff]
    %v3480 = vld [vmem:[%s25 + $0x18] sm:$0xff]
    %3482 = vrot.lane.b32.xlu0 %v3472, 64
    %v3483 = vpop.permute.xlu0 %3482
    %v3484 = vsel %vm331, %v3483, 0
    %3486 = vmatprep.subr.mxu0 0.0
    %3487 = vmatpush1.msra.mxu0 %v3477
    %3488 = vmatprep.subr.mxu0 0.0
    %3489 = vmatpush1.msra.mxu0 %v3478
    %3490 = vmatprep.subr.mxu0 0.0
    %3491 = vmatpush1.msra.mxu0 %v3479
    %3492 = vmatprep.subr.mxu0 0.0
    %3493 = vmatpush1.msra.mxu0 %v3480
    %3494 = vmatprep.subr.mxu0 0.0
    %3495 = vmatpush1.msra.mxu0 0.0
    %3496 = vmatprep.subr.mxu0 0.0
    %3497 = vmatpush1.msra.mxu0 0.0
    %3498 = vmatprep.subr.mxu0 0.0
    %3499 = vmatpush1.msra.mxu0 0.0
    %3500 = vmatprep.subr.mxu0 0.0
    %3501 = vmatpush1.msra.mxu0 0.0
    %3502 = vmatprep.subr.mxu0 0.0
    %3503 = vmatpush1.msra.mxu0 0.0
    %3504 = vmatprep.subr.mxu0 0.0
    %3505 = vmatpush1.msra.mxu0 0.0
    %3506 = vmatprep.subr.mxu0 0.0
    %3507 = vmatpush1.msra.mxu0 0.0
    %3508 = vmatprep.subr.mxu0 0.0
    %3509 = vmatpush1.msra.mxu0 0.0
    %3510 = vmatprep.subr.mxu0 0.0
    %3511 = vmatpush1.msra.mxu0 0.0
    %3512 = vmatprep.subr.mxu0 0.0
    %3513 = vmatpush1.msra.mxu0 0.0
    %3514 = vmatprep.subr.mxu0 0.0
    %3515 = vmatpush1.msra.mxu0 0.0
    %3516 = vmatprep.subr.mxu0 0.0
    %3517 = vmatpush1.msra.mxu0 0.0
    %3518 = vmatprep.subr.mxu0 0.0
    %3519 = vmatpush1.msra.mxu0 0.0
    %3520 = vmatprep.subr.mxu0 0.0
    %3521 = vmatpush1.msra.mxu0 0.0
    %3522 = vmatprep.subr.mxu0 0.0
    %3523 = vmatpush1.msra.mxu0 0.0
    %3524 = vmatprep.subr.mxu0 0.0
    %3525 = vmatpush1.msra.mxu0 0.0
    %3526 = vmatprep.subr.mxu0 0.0
    %3527 = vmatpush1.msra.mxu0 0.0
    %3528 = vmatprep.subr.mxu0 0.0
    %3529 = vmatpush1.msra.mxu0 0.0
    %3530 = vmatprep.subr.mxu0 0.0
    %3531 = vmatpush1.msra.mxu0 0.0
    %3532 = vmatprep.subr.mxu0 0.0
    %3533 = vmatpush1.msra.mxu0 0.0
    %3534 = vmatprep.subr.mxu0 0.0
    %3535 = vmatpush1.msra.mxu0 0.0
    %3536 = vmatprep.subr.mxu0 0.0
    %3537 = vmatpush1.msra.mxu0 0.0
    %3538 = vmatprep.subr.mxu0 0.0
    %3539 = vmatpush1.msra.mxu0 0.0
    %3540 = vmatprep.subr.mxu0 0.0
    %3541 = vmatpush1.msra.mxu0 0.0
    %3542 = vmatprep.subr.mxu0 0.0
    %3543 = vmatpush1.msra.mxu0 0.0
    %3544 = vmatprep.subr.mxu0 0.0
    %3545 = vmatpush1.msra.mxu0 0.0
    %3546 = vmatprep.subr.mxu0 0.0
    %3547 = vmatpush1.msra.mxu0 0.0
    %3548 = vmatprep.subr.mxu0 0.0
    %3549 = vmatpush1.msra.mxu0 0.0
    %3550 = vmatprep.mubr.f32.mxu0 0.0
    %3551 = vmatmul.mubr.f32.gmra.mrb[0].mxu0 %v3484
    %v3552 = vpop.f32.mrb[0].mxu0
    %v3553 = vadd.f32 0.0, %v3552
    %v3554 = vpop.f32.mrb[0].mxu0
    %3555 = vdwg.mxu0
    %v3557 = vsel %vm331, %v1527, 0
    %3559 = vmatprep.subr.mxu0 0.0
    %3560 = vmatpush1.msra.mxu0 %v3473
    %3561 = vmatprep.subr.mxu0 0.0
    %3562 = vmatpush1.msra.mxu0 %v3474
    %3563 = vmatprep.subr.mxu0 0.0
    %3564 = vmatpush1.msra.mxu0 %v3475
    %3565 = vmatprep.subr.mxu0 0.0
    %3566 = vmatpush1.msra.mxu0 %v3476
    %3567 = vmatprep.subr.mxu0 0.0
    %3568 = vmatpush1.msra.mxu0 0.0
    %3569 = vmatprep.subr.mxu0 0.0
    %3570 = vmatpush1.msra.mxu0 0.0
    %3571 = vmatprep.subr.mxu0 0.0
    %3572 = vmatpush1.msra.mxu0 0.0
    %3573 = vmatprep.subr.mxu0 0.0
    %3574 = vmatpush1.msra.mxu0 0.0
    %3575 = vmatprep.subr.mxu0 0.0
    %3576 = vmatpush1.msra.mxu0 0.0
    %3577 = vmatprep.subr.mxu0 0.0
    %3578 = vmatpush1.msra.mxu0 0.0
    %3579 = vmatprep.subr.mxu0 0.0
    %3580 = vmatpush1.msra.mxu0 0.0
    %3581 = vmatprep.subr.mxu0 0.0
    %3582 = vmatpush1.msra.mxu0 0.0
    %3583 = vmatprep.subr.mxu0 0.0
    %3584 = vmatpush1.msra.mxu0 0.0
    %3585 = vmatprep.subr.mxu0 0.0
    %3586 = vmatpush1.msra.mxu0 0.0
    %3587 = vmatprep.subr.mxu0 0.0
    %3588 = vmatpush1.msra.mxu0 0.0
    %3589 = vmatprep.subr.mxu0 0.0
    %3590 = vmatpush1.msra.mxu0 0.0
    %3591 = vmatprep.subr.mxu0 0.0
    %3592 = vmatpush1.msra.mxu0 0.0
    %3593 = vmatprep.subr.mxu0 0.0
    %3594 = vmatpush1.msra.mxu0 0.0
    %3595 = vmatprep.subr.mxu0 0.0
    %3596 = vmatpush1.msra.mxu0 0.0
    %3597 = vmatprep.subr.mxu0 0.0
    %3598 = vmatpush1.msra.mxu0 0.0
    %3599 = vmatprep.subr.mxu0 0.0
    %3600 = vmatpush1.msra.mxu0 0.0
    %3601 = vmatprep.subr.mxu0 0.0
    %3602 = vmatpush1.msra.mxu0 0.0
    %3603 = vmatprep.subr.mxu0 0.0
    %3604 = vmatpush1.msra.mxu0 0.0
    %3605 = vmatprep.subr.mxu0 0.0
    %3606 = vmatpush1.msra.mxu0 0.0
    %3607 = vmatprep.subr.mxu0 0.0
    %3608 = vmatpush1.msra.mxu0 0.0
    %3609 = vmatprep.subr.mxu0 0.0
    %3610 = vmatpush1.msra.mxu0 0.0
    %3611 = vmatprep.subr.mxu0 0.0
    %3612 = vmatpush1.msra.mxu0 0.0
    %3613 = vmatprep.subr.mxu0 0.0
    %3614 = vmatpush1.msra.mxu0 0.0
    %3615 = vmatprep.subr.mxu0 0.0
    %3616 = vmatpush1.msra.mxu0 0.0
    %3617 = vmatprep.subr.mxu0 0.0
    %3618 = vmatpush1.msra.mxu0 0.0
    %3619 = vmatprep.subr.mxu0 0.0
    %3620 = vmatpush1.msra.mxu0 0.0
    %3621 = vmatprep.subr.mxu0 0.0
    %3622 = vmatpush1.msra.mxu0 0.0
    %3623 = vmatprep.mubr.f32.mxu0 0.0
    %3624 = vmatmul.mubr.f32.gmra.mrb[0].mxu0 %v3557
    %v3625 = vpop.f32.mrb[0].mxu0
    %v3626 = vadd.f32 %v3553, %v3625
    %v3627 = vpop.f32.mrb[0].mxu0
    %3628 = vdwg.mxu0
    %vm3629 = vcmask 58368
    %v3630 = vsel %vm3629, %v3626, 0.0
    %v3631 = vrot.slane %v3630, 4
    %v3632 = vadd.f32 %v3630, %v3631
    %v3633 = vrot.slane %v3632, 2
    %v3634 = vadd.f32 %v3632, %v3633
    %v3635 = vrot.slane %v3634, 1
    %v3636 = vadd.f32 %v3634, %v3635
    %v3637 = vrcp.pop 2.0
    %v3638 = vmul.f32 %v3636, %v3637
    %v3639 = vsub.f32 %v3626, %v3638
    %v3640 = vmul.f32 %v3639, %v3639
    %v3641 = vsel %vm3629, %v3640, 0.0
    %v3642 = vrot.slane %v3641, 4
    %v3643 = vadd.f32 %v3641, %v3642
    %v3644 = vrot.slane %v3643, 2
    %v3645 = vadd.f32 %v3643, %v3644
    %v3646 = vrot.slane %v3645, 1
    %v3647 = vadd.f32 %v3645, %v3646
    %v3648 = vmul.f32 %v3647, %v3637
    %v3649 = vadd.f32 %v3648, 1e-05
    %v3650 = vrsqrt.pop %v3649
    %v3651 = vmul.f32 %v3639, %v3650
    %v3652 = vld [vmem:[#allocation15] sm:$0x1]
    %v3654 = vlaneseq
    %v3655 = vshrl.u32 %v3654, 7
    %v3656 = vsub.s32 0, %v3655
    %v3657 = vrot.slane %v3652, %v3656
    %v3659 = vmul.f32 %v3651, %v3657
    %v3660 = vld [vmem:[#allocation17] sm:$0x1]
    %v3662 = vlaneseq
    %v3663 = vshrl.u32 %v3662, 7
    %v3664 = vsub.s32 0, %v3663
    %v3665 = vrot.slane %v3660, %v3664
    %v3667 = vadd.f32 %v3659, %v3665
    %v3668 = vsel %vm3629, %v3667, -inf
    %3669 = vmax.xlane.f32.xlu0 %v3668
    %v3670 = vpop.xlane.xlu0 %3669
    %v3671 = vsub.f32 %v3667, %v3670
    %v3672 = vmul.f32 %v3671, 1.442695
    %v3673 = vpow.pop %v3672
    %v3674 = vsel %vm3629, %v3673, 0.0
    %3675 = vadd.xlane.f32.xlu0 %v3674
    %v3676 = vpop.xlane.xlu0 %3675
    %v3677 = vrcp.pop %v3676
    %v3678 = vmul.f32 %v3673, %v3677
    %3679 = vst.msk [vmem:[#allocation18] sm:$0x3] %vm3629, %v3678
    // Predicated region
    $region150: #{cat_encoder_forward.1} parent=1 // pred_check
      _
    $region151: #{cat_encoder_forward.1} parent=1 // pred_check_branch
      %3681 = sbr.rel (0) target = $region153
    $region152: #{cat_encoder_forward.1} parent=1 // pred_region
      %s3683 = ssub.s32 32, 32
      %3684 = vsyncadd [#allocation5], %s3683
      %s3686 = sshll.u32 [#allocation18], 4
      %s3687 = int_to_ptr.vmem [resolvable:$true] %s3686
      %3689 = dma.vmem_to_hbm [thread:$0]  %s3687, 32, %s28, [#allocation5]
    $region153: #{cat_encoder_forward.1} parent=1 // pred_fallthru
      _
    // Predicated region
    $region154: #{cat_encoder_forward.1} parent=1 // pred_check
      _
    $region155: #{cat_encoder_forward.1} parent=1 // pred_check_branch
      %3691 = sbr.rel (0) target = $region157
    $region156: #{cat_encoder_forward.1} parent=1 // pred_region
      %3692 = dma.done [#allocation5], 32
    $region157: #{cat_encoder_forward.1} parent=1 // pred_fallthru
      _
    %3693 = vsyncpa [#allocation4], 1
    %3694 = vsyncpa [#allocation7], 1
    %3695 = vsyncpa [#allocation10], 1
    %3696 = vsyncpa [#allocation13], 1
    %3697 = vsyncpa [#allocation16], 1
    %3698 = vsyncpa [#allocation5], 1

</llo_original>
